<compile_context>
chip_gen: v6e
topology: v6e:2x2x1
jax: 0.10.0
libtpu: 0.0.40
codegen_flags: <defaults>
</compile_context>

<pallas_src>
import math
import functools

import jax
import jax.numpy as jnp
from jax.experimental import pallas as pl
from jax.experimental.pallas import tpu as pltpu

EPS = 1e-6
_MiB = 1024 * 1024


# ---------------------------------------------------------------------------
# In-kernel helpers (operate on one batch element / tile, f32 except MXU inputs)
# ---------------------------------------------------------------------------
def _layernorm(x, alpha, beta, eps=EPS):
    """Torch-style LayerNormalization: alpha*(x-mean)/(std_unbiased+eps)+beta (f32)."""
    d = x.shape[-1]
    mean = jnp.mean(x, axis=-1, keepdims=True)
    diff = x - mean
    var_unbiased = jnp.sum(diff * diff, axis=-1, keepdims=True) * (1.0 / (d - 1))
    std = jnp.sqrt(var_unbiased)
    inv = 1.0 / (std + eps)          # exact divide: one per row, keeps torch parity
    return alpha * (diff * inv) + beta


def _mha_precomputed_kv(xq_n, k, v, wq, wo, n_head):
    """Multi-head attention with K/V already projected (mask intentionally unused).

    xq_n : [TQ, D]   f32, already layer-normalized query source
    k, v : [Skv, D]  compute-dtype, already projected through w_k / w_v
    wq, wo : [D, D]  compute-dtype
    Returns [TQ, D] f32 (residual add done by the caller).
    """
    tq, d_model = xq_n.shape
    d_k = d_model // n_head
    cdt = wq.dtype

    q = jnp.dot(xq_n.astype(cdt), wq, preferred_element_type=jnp.float32)
    # Fold 1/sqrt(d_k) into q: O(S*D) multiplies instead of O(S^2).
    q = (q * (1.0 / math.sqrt(d_k))).astype(cdt)

    ctx = []
    for h in range(n_head):
        lo, hi = h * d_k, (h + 1) * d_k
        scores = jnp.einsum('qd,kd->qk', q[:, lo:hi], k[:, lo:hi],
                            preferred_element_type=jnp.float32)
        # mask intentionally NOT applied (reference discards the masked_fill result)
        m = jnp.max(scores, axis=-1, keepdims=True)
        e = jnp.exp(scores - m)
        p = e * pl.reciprocal(jnp.sum(e, axis=-1, keepdims=True), approx=True)
        ctx.append(jnp.dot(p.astype(cdt), v[:, lo:hi],
                           preferred_element_type=jnp.float32))      # [TQ, d_k]
    # Stitch heads and do ONE K=D projection through W_o (full MXU contraction fill).
    ctx = jnp.concatenate(ctx, axis=-1).astype(cdt)                  # [TQ, D]
    return jnp.dot(ctx, wo, preferred_element_type=jnp.float32)


# ---------------------------------------------------------------------------
# Fused decoder-block kernel: grid = (batch, query-tile)
# ---------------------------------------------------------------------------
def make_decoder_block_kernel(n_head: int):
    def kernel(xf_ref, xq_ref, enc_ref,
               ln0_a, ln0_b, sa_wq, sa_wk, sa_wv, sa_wo,
               ln1_a, ln1_b, ca_wq, ca_wk, ca_wv, ca_wo,
               ln2_a, ln2_b, ff_w1, ff_b1, ff_w2, ff_b2,
               o_ref,
               sa_k, sa_v, ca_k, ca_v):
        cdt = sa_wq.dtype

        # Hoisted K/V projections: computed once per batch element (tile axis is
        # sequential / "arbitrary"), reused by every query tile.
        @pl.when(pl.program_id(1) == 0)
        def _():
            xfn = _layernorm(xf_ref[0].astype(jnp.float32),
                             ln0_a[...], ln0_b[...]).astype(cdt)       # [Sq, D]
            sa_k[...] = jnp.dot(xfn, sa_wk[...],
                                preferred_element_type=jnp.float32).astype(cdt)
            sa_v[...] = jnp.dot(xfn, sa_wv[...],
                                preferred_element_type=jnp.float32).astype(cdt)
            ef = enc_ref[0].astype(cdt)                                # [Skv, D] (raw, no LN)
            ca_k[...] = jnp.dot(ef, ca_wk[...],
                                preferred_element_type=jnp.float32).astype(cdt)
            ca_v[...] = jnp.dot(ef, ca_wv[...],
                                preferred_element_type=jnp.float32).astype(cdt)

        x = xq_ref[0].astype(jnp.float32)        # [TQ, D] residual stream (f32)

        # --- residual 0: self-attention on norm(x) ------------------------------
        xn = _layernorm(x, ln0_a[...], ln0_b[...])
        x = x + _mha_precomputed_kv(xn, sa_k[...], sa_v[...],
                                    sa_wq[...], sa_wo[...], n_head)

        # --- residual 1: cross-attention (q = norm(x), kv = encoder_output) -----
        xn = _layernorm(x, ln1_a[...], ln1_b[...])
        x = x + _mha_precomputed_kv(xn, ca_k[...], ca_v[...],
                                    ca_wq[...], ca_wo[...], n_head)

        # --- residual 2: feed-forward (dropout = identity in eval mode) ---------
        xn = _layernorm(x, ln2_a[...], ln2_b[...])
        h = jnp.dot(xn.astype(cdt), ff_w1[...],
                    preferred_element_type=jnp.float32) + ff_b1[...]
        h = jnp.maximum(h, 0.0)
        x = x + (jnp.dot(h.astype(cdt), ff_w2[...],
                         preferred_element_type=jnp.float32) + ff_b2[...])

        o_ref[0] = x.astype(o_ref.dtype)

    return kernel


# ---------------------------------------------------------------------------
# Parameter preparation (one-time cast, outside the per-call path)
# ---------------------------------------------------------------------------
def prepare_params(params, compute_dtype=jnp.bfloat16):
    """Cast matmul weights to compute_dtype once; LN params / biases -> (1, n) f32."""
    w = lambda a: jnp.asarray(a, compute_dtype)
    v = lambda a: jnp.asarray(a, jnp.float32).reshape(1, -1)
    out = {}
    for name in ("sa_wq", "sa_wk", "sa_wv", "sa_wo",
                 "ca_wq", "ca_wk", "ca_wv", "ca_wo", "ff_w1", "ff_w2"):
        out[name] = w(params[name])
    for name in ("ln0_a", "ln0_b", "ln1_a", "ln1_b", "ln2_a", "ln2_b",
                 "ff_b1", "ff_b2"):
        out[name] = v(params[name])
    return out


# ---------------------------------------------------------------------------
# Wrapper
# ---------------------------------------------------------------------------
def decoder_block_forward(x, encoder_output, enc_mask, dec_mask, prepared, *,
                          n_head, tq=256):
    """Pallas equivalent of DecoderBlock.forward (eval mode).

    `prepared` must come from prepare_params().  enc_mask / dec_mask are accepted
    for API parity but unused (the reference's non-inplace masked_fill result is
    discarded, so masks are no-ops there too).
    """
    del enc_mask, dec_mask
    B, Sq, D = x.shape
    Skv = encoder_output.shape[1]
    assert D % n_head == 0, "d_model must be divisible by n_head"
    p = prepared
    cdt = p["sa_wq"].dtype
    Dff = p["ff_w1"].shape[1]

    # Query-tile size: full sequence if short, otherwise a sublane-aligned tile.
    TQ = Sq if Sq <= tq else max(8, (tq // 8) * 8)
    NT = pl.cdiv(Sq, TQ)

    once = pl.Buffered(1)   # grid-invariant params: single VMEM buffer, DMAed once
    wdd = pl.BlockSpec((D, D), lambda b, t: (0, 0), pipeline_mode=once)
    vspec = lambda n: pl.BlockSpec((1, n), lambda b, t: (0, 0), pipeline_mode=once)

    # ---- VMEM budget: footprint estimate, capped at physical capacity - headroom ----
    xbytes = jnp.dtype(x.dtype).itemsize
    wbytes = jnp.dtype(cdt).itemsize
    act_blocks = 2 * (Sq + 2 * TQ + Skv) * D * xbytes                      # double-buffered x/enc/out
    weight_block = (8 * D * D + 2 * D * Dff) * wbytes + (7 * D + Dff) * 4  # Buffered(1) params
    kv_scratch = 2 * (Sq + Skv) * D * wbytes                               # hoisted K/V
    temporaries = (2 * Sq * D + 8 * TQ * D + 2 * TQ * max(Sq, Skv) + 2 * TQ * Dff) * 4
    est = act_blocks + weight_block + kv_scratch + temporaries
    try:
        phys = int(pltpu.get_tpu_info().vmem_capacity_bytes)
    except Exception:
        phys = 64 * _MiB
    cap = max(phys - 16 * _MiB, 32 * _MiB)   # leave headroom for Mosaic scratch/metadata
    vmem_limit = int(min(max(int(1.5 * est), 32 * _MiB), cap))

    kern = make_decoder_block_kernel(n_head)
    return pl.pallas_call(
        kern,
        out_shape=jax.ShapeDtypeStruct((B, Sq, D), x.dtype),
        grid=(B, NT),
        in_specs=[
            pl.BlockSpec((1, Sq, D), lambda b, t: (b, 0, 0)),    # x, full seq (self-attn K/V src)
            pl.BlockSpec((1, TQ, D), lambda b, t: (b, t, 0)),    # x, query tile (residual stream)
            pl.BlockSpec((1, Skv, D), lambda b, t: (b, 0, 0)),   # encoder output
            vspec(D), vspec(D), wdd, wdd, wdd, wdd,              # LN0 + self-attn weights
            vspec(D), vspec(D), wdd, wdd, wdd, wdd,              # LN1 + cross-attn weights
            vspec(D), vspec(D),                                  # LN2
            pl.BlockSpec((D, Dff), lambda b, t: (0, 0), pipeline_mode=once), vspec(Dff),
            pl.BlockSpec((Dff, D), lambda b, t: (0, 0), pipeline_mode=once), vspec(D),
        ],
        out_specs=pl.BlockSpec((1, TQ, D), lambda b, t: (b, t, 0)),
        scratch_shapes=[
            pltpu.VMEM((Sq, D), cdt), pltpu.VMEM((Sq, D), cdt),     # self-attn K, V
            pltpu.VMEM((Skv, D), cdt), pltpu.VMEM((Skv, D), cdt),   # cross-attn K, V
        ],
        compiler_params=pltpu.CompilerParams(
            dimension_semantics=("parallel", "arbitrary"),
            vmem_limit_bytes=vmem_limit),
    )(x, x, encoder_output,
      p["ln0_a"], p["ln0_b"], p["sa_wq"], p["sa_wk"], p["sa_wv"], p["sa_wo"],
      p["ln1_a"], p["ln1_b"], p["ca_wq"], p["ca_wk"], p["ca_wv"], p["ca_wo"],
      p["ln2_a"], p["ln2_b"], p["ff_w1"], p["ff_b1"], p["ff_w2"], p["ff_b2"])


# ---------------------------------------------------------------------------
# Deterministic parameter init + demo
# ---------------------------------------------------------------------------
def init_params(key, d_model, d_ff):
    keys = jax.random.split(key, 12)
    s = 0.05
    return {
        # layernorm params (torch init: ones / zeros)
        "ln0_a": jnp.ones((d_model,), jnp.float32), "ln0_b": jnp.zeros((d_model,), jnp.float32),
        "ln1_a": jnp.ones((d_model,), jnp.float32), "ln1_b": jnp.zeros((d_model,), jnp.float32),
        "ln2_a": jnp.ones((d_model,), jnp.float32), "ln2_b": jnp.zeros((d_model,), jnp.float32),
        # self-attention projections (bias=False), stored as [in, out]
        "sa_wq": s * jax.random.normal(keys[0], (d_model, d_model), jnp.float32),
        "sa_wk": s * jax.random.normal(keys[1], (d_model, d_model), jnp.float32),
        "sa_wv": s * jax.random.normal(keys[2], (d_model, d_model), jnp.float32),
        "sa_wo": s * jax.random.normal(keys[3], (d_model, d_model), jnp.float32),
        # cross-attention projections
        "ca_wq": s * jax.random.normal(keys[4], (d_model, d_model), jnp.float32),
        "ca_wk": s * jax.random.normal(keys[5], (d_model, d_model), jnp.float32),
        "ca_wv": s * jax.random.normal(keys[6], (d_model, d_model), jnp.float32),
        "ca_wo": s * jax.random.normal(keys[7], (d_model, d_model), jnp.float32),
        # feed-forward (with biases)
        "ff_w1": s * jax.random.normal(keys[8], (d_model, d_ff), jnp.float32),
        "ff_b1": s * jax.random.normal(keys[9], (d_ff,), jnp.float32),
        "ff_w2": s * jax.random.normal(keys[10], (d_ff, d_model), jnp.float32),
        "ff_b2": s * jax.random.normal(keys[11], (d_model,), jnp.float32),
    }


if __name__ == "__main__":
    B, S_DEC, S_ENC = 2, 8, 8
    D_MODEL, N_HEAD, D_FF = 32, 4, 64

    key = jax.random.PRNGKey(0)
    k_x, k_enc, k_p = jax.random.split(key, 3)

    x = jax.random.normal(k_x, (B, S_DEC, D_MODEL), jnp.float32)
    encoder_output = jax.random.normal(k_enc, (B, S_ENC, D_MODEL), jnp.float32)
    # masks (API parity only; have no effect, matching the reference behaviour)
    dec_mask = jnp.tril(jnp.ones((1, 1, S_DEC, S_DEC), jnp.float32))
    enc_mask = jnp.ones((1, 1, 1, S_ENC), jnp.float32)

    params = init_params(k_p, D_MODEL, D_FF)
    prepared = prepare_params(params)   # one-time bf16 weight cast (outside per-call path)

    fwd = jax.jit(functools.partial(decoder_block_forward, n_head=N_HEAD))
    out = fwd(x, encoder_output, enc_mask, dec_mask, prepared)
    jax.block_until_ready(out)

    assert out.shape == (B, S_DEC, D_MODEL)
    assert bool(jnp.all(jnp.isfinite(out)))
    print("KERNEL_OK")
</pallas_src>

<mosaic_0001>
module attributes {stable_mosaic.version = 11 : i64} {
  func.func @kernel(%arg0: i32, %arg1: i32, %arg2: memref<1x8x32xf32, #tpu.memory_space<vmem>>, %arg3: memref<1x8x32xf32, #tpu.memory_space<vmem>>, %arg4: memref<1x8x32xf32, #tpu.memory_space<vmem>>, %arg5: memref<1x32xf32, #tpu.memory_space<vmem>>, %arg6: memref<1x32xf32, #tpu.memory_space<vmem>>, %arg7: memref<32x32xbf16, #tpu.memory_space<vmem>>, %arg8: memref<32x32xbf16, #tpu.memory_space<vmem>>, %arg9: memref<32x32xbf16, #tpu.memory_space<vmem>>, %arg10: memref<32x32xbf16, #tpu.memory_space<vmem>>, %arg11: memref<1x32xf32, #tpu.memory_space<vmem>>, %arg12: memref<1x32xf32, #tpu.memory_space<vmem>>, %arg13: memref<32x32xbf16, #tpu.memory_space<vmem>>, %arg14: memref<32x32xbf16, #tpu.memory_space<vmem>>, %arg15: memref<32x32xbf16, #tpu.memory_space<vmem>>, %arg16: memref<32x32xbf16, #tpu.memory_space<vmem>>, %arg17: memref<1x32xf32, #tpu.memory_space<vmem>>, %arg18: memref<1x32xf32, #tpu.memory_space<vmem>>, %arg19: memref<32x64xbf16, #tpu.memory_space<vmem>>, %arg20: memref<1x64xf32, #tpu.memory_space<vmem>>, %arg21: memref<64x32xbf16, #tpu.memory_space<vmem>>, %arg22: memref<1x32xf32, #tpu.memory_space<vmem>>, %arg23: memref<1x8x32xf32, #tpu.memory_space<vmem>>, %arg24: memref<8x32xbf16, #tpu.memory_space<vmem>>, %arg25: memref<8x32xbf16, #tpu.memory_space<vmem>>, %arg26: memref<8x32xbf16, #tpu.memory_space<vmem>>, %arg27: memref<8x32xbf16, #tpu.memory_space<vmem>>) attributes {dimension_semantics = [#tpu.dimension_semantics<parallel>, #tpu.dimension_semantics<arbitrary>], iteration_bounds = array<i64: 2, 1>, scalar_prefetch = 0 : i64, scratch_operands = 4 : i64, tpu.core_type = #tpu.core_type<tc>, window_params = [{transform_indices = @transform_0, window_bounds = array<i64: 1, 8, 32>}, {transform_indices = @transform_1, window_bounds = array<i64: 1, 8, 32>}, {transform_indices = @transform_2, window_bounds = array<i64: 1, 8, 32>}, {pipeline_mode = #tpu.pipeline_mode<synchronous>, transform_indices = @transform_3, window_bounds = array<i64: 1, 32>}, {pipeline_mode = #tpu.pipeline_mode<synchronous>, transform_indices = @transform_4, window_bounds = array<i64: 1, 32>}, {pipeline_mode = #tpu.pipeline_mode<synchronous>, transform_indices = @transform_5, window_bounds = array<i64: 32, 32>}, {pipeline_mode = #tpu.pipeline_mode<synchronous>, transform_indices = @transform_6, window_bounds = array<i64: 32, 32>}, {pipeline_mode = #tpu.pipeline_mode<synchronous>, transform_indices = @transform_7, window_bounds = array<i64: 32, 32>}, {pipeline_mode = #tpu.pipeline_mode<synchronous>, transform_indices = @transform_8, window_bounds = array<i64: 32, 32>}, {pipeline_mode = #tpu.pipeline_mode<synchronous>, transform_indices = @transform_9, window_bounds = array<i64: 1, 32>}, {pipeline_mode = #tpu.pipeline_mode<synchronous>, transform_indices = @transform_10, window_bounds = array<i64: 1, 32>}, {pipeline_mode = #tpu.pipeline_mode<synchronous>, transform_indices = @transform_11, window_bounds = array<i64: 32, 32>}, {pipeline_mode = #tpu.pipeline_mode<synchronous>, transform_indices = @transform_12, window_bounds = array<i64: 32, 32>}, {pipeline_mode = #tpu.pipeline_mode<synchronous>, transform_indices = @transform_13, window_bounds = array<i64: 32, 32>}, {pipeline_mode = #tpu.pipeline_mode<synchronous>, transform_indices = @transform_14, window_bounds = array<i64: 32, 32>}, {pipeline_mode = #tpu.pipeline_mode<synchronous>, transform_indices = @transform_15, window_bounds = array<i64: 1, 32>}, {pipeline_mode = #tpu.pipeline_mode<synchronous>, transform_indices = @transform_16, window_bounds = array<i64: 1, 32>}, {pipeline_mode = #tpu.pipeline_mode<synchronous>, transform_indices = @transform_17, window_bounds = array<i64: 32, 64>}, {pipeline_mode = #tpu.pipeline_mode<synchronous>, transform_indices = @transform_18, window_bounds = array<i64: 1, 64>}, {pipeline_mode = #tpu.pipeline_mode<synchronous>, transform_indices = @transform_19, window_bounds = array<i64: 64, 32>}, {pipeline_mode = #tpu.pipeline_mode<synchronous>, transform_indices = @transform_20, window_bounds = array<i64: 1, 32>}, {transform_indices = @transform_21, window_bounds = array<i64: 1, 8, 32>}]} {
    %c0_i32 = arith.constant 0 : i32
    %0 = arith.cmpi eq, %arg1, %c0_i32 : i32
    %1 = arith.extui %0 : i1 to i32
    %c0_i32_0 = arith.constant 0 : i32
    %2 = arith.cmpi ne, %1, %c0_i32_0 : i32
    scf.if %2 {
      %c0_100 = arith.constant 0 : index
      %c0_101 = arith.constant 0 : index
      %c0_102 = arith.constant 0 : index
      %249 = vector.load %arg2[%c0_100, %c0_101, %c0_102] : memref<1x8x32xf32, #tpu.memory_space<vmem>>, vector<1x8x32xf32>
      %250 = vector.shape_cast %249 : vector<1x8x32xf32> to vector<8x32xf32>
      %c0_103 = arith.constant 0 : index
      %c0_104 = arith.constant 0 : index
      %251 = vector.load %arg5[%c0_103, %c0_104] : memref<1x32xf32, #tpu.memory_space<vmem>>, vector<1x32xf32>
      %c0_105 = arith.constant 0 : index
      %c0_106 = arith.constant 0 : index
      %252 = vector.load %arg6[%c0_105, %c0_106] : memref<1x32xf32, #tpu.memory_space<vmem>>, vector<1x32xf32>
      %cst_107 = arith.constant dense<0.000000e+00> : vector<8xf32>
      %253 = vector.multi_reduction <add>, %250, %cst_107 [1] : vector<8x32xf32> to vector<8xf32>
      %254 = vector.shape_cast %253 : vector<8xf32> to vector<8x1xf32>
      %cst_108 = arith.constant 3.200000e+01 : f32
      %255 = vector.broadcast %cst_108 : f32 to vector<8x1xf32>
      %256 = arith.divf %254, %255 : vector<8x1xf32>
      %257 = vector.broadcast %256 : vector<8x1xf32> to vector<8x32xf32>
      %258 = arith.subf %250, %257 : vector<8x32xf32>
      %259 = arith.mulf %258, %258 : vector<8x32xf32>
      %cst_109 = arith.constant dense<0.000000e+00> : vector<8xf32>
      %260 = vector.multi_reduction <add>, %259, %cst_109 [1] : vector<8x32xf32> to vector<8xf32>
      %261 = vector.shape_cast %260 : vector<8xf32> to vector<8x1xf32>
      %cst_110 = arith.constant 0.0322580636 : f32
      %262 = vector.broadcast %cst_110 : f32 to vector<8x1xf32>
      %263 = arith.mulf %261, %262 : vector<8x1xf32>
      %264 = math.sqrt %263 : vector<8x1xf32>
      %cst_111 = arith.constant 9.99999997E-7 : f32
      %265 = vector.broadcast %cst_111 : f32 to vector<8x1xf32>
      %266 = arith.addf %264, %265 : vector<8x1xf32>
      %cst_112 = arith.constant 1.000000e+00 : f32
      %267 = vector.broadcast %cst_112 : f32 to vector<8x1xf32>
      %268 = arith.divf %267, %266 : vector<8x1xf32>
      %269 = vector.broadcast %268 : vector<8x1xf32> to vector<8x32xf32>
      %270 = arith.mulf %258, %269 : vector<8x32xf32>
      %271 = vector.broadcast %251 : vector<1x32xf32> to vector<8x32xf32>
      %272 = arith.mulf %271, %270 : vector<8x32xf32>
      %273 = vector.broadcast %252 : vector<1x32xf32> to vector<8x32xf32>
      %274 = arith.addf %272, %273 : vector<8x32xf32>
      %275 = arith.truncf %274 : vector<8x32xf32> to vector<8x32xbf16>
      %c0_113 = arith.constant 0 : index
      %c0_114 = arith.constant 0 : index
      %276 = vector.load %arg8[%c0_113, %c0_114] : memref<32x32xbf16, #tpu.memory_space<vmem>>, vector<32x32xbf16>
      %cst_115 = arith.constant dense<0.000000e+00> : vector<8x32xf32>
      %277 = tpu.matmul %275, %276, %cst_115 {dimension_numbers = #tpu.dot_dimension_numbers<[1], [0], [0], [1], [0, 0, 1, 1], [], []>} : vector<8x32xbf16>, vector<32x32xbf16>, vector<8x32xf32> -> vector<8x32xf32>
      %278 = arith.truncf %277 : vector<8x32xf32> to vector<8x32xbf16>
      %c0_116 = arith.constant 0 : index
      %c0_117 = arith.constant 0 : index
      %279 = vector.load %arg24[%c0_116, %c0_117] : memref<8x32xbf16, #tpu.memory_space<vmem>>, vector<8x32xbf16>
      tpu.vector_store %arg24[%c0_116, %c0_117], %278 {strides = array<i32>} : memref<8x32xbf16, #tpu.memory_space<vmem>>, vector<8x32xbf16>,
      %c0_118 = arith.constant 0 : index
      %c0_119 = arith.constant 0 : index
      %280 = vector.load %arg9[%c0_118, %c0_119] : memref<32x32xbf16, #tpu.memory_space<vmem>>, vector<32x32xbf16>
      %cst_120 = arith.constant dense<0.000000e+00> : vector<8x32xf32>
      %281 = tpu.matmul %275, %280, %cst_120 {dimension_numbers = #tpu.dot_dimension_numbers<[1], [0], [0], [1], [0, 0, 1, 1], [], []>} : vector<8x32xbf16>, vector<32x32xbf16>, vector<8x32xf32> -> vector<8x32xf32>
      %282 = arith.truncf %281 : vector<8x32xf32> to vector<8x32xbf16>
      %c0_121 = arith.constant 0 : index
      %c0_122 = arith.constant 0 : index
      %283 = vector.load %arg25[%c0_121, %c0_122] : memref<8x32xbf16, #tpu.memory_space<vmem>>, vector<8x32xbf16>
      tpu.vector_store %arg25[%c0_121, %c0_122], %282 {strides = array<i32>} : memref<8x32xbf16, #tpu.memory_space<vmem>>, vector<8x32xbf16>,
      %c0_123 = arith.constant 0 : index
      %c0_124 = arith.constant 0 : index
      %c0_125 = arith.constant 0 : index
      %284 = vector.load %arg4[%c0_123, %c0_124, %c0_125] : memref<1x8x32xf32, #tpu.memory_space<vmem>>, vector<1x8x32xf32>
      %285 = vector.shape_cast %284 : vector<1x8x32xf32> to vector<8x32xf32>
      %286 = arith.truncf %285 : vector<8x32xf32> to vector<8x32xbf16>
      %c0_126 = arith.constant 0 : index
      %c0_127 = arith.constant 0 : index
      %287 = vector.load %arg14[%c0_126, %c0_127] : memref<32x32xbf16, #tpu.memory_space<vmem>>, vector<32x32xbf16>
      %cst_128 = arith.constant dense<0.000000e+00> : vector<8x32xf32>
      %288 = tpu.matmul %286, %287, %cst_128 {dimension_numbers = #tpu.dot_dimension_numbers<[1], [0], [0], [1], [0, 0, 1, 1], [], []>} : vector<8x32xbf16>, vector<32x32xbf16>, vector<8x32xf32> -> vector<8x32xf32>
      %289 = arith.truncf %288 : vector<8x32xf32> to vector<8x32xbf16>
      %c0_129 = arith.constant 0 : index
      %c0_130 = arith.constant 0 : index
      %290 = vector.load %arg26[%c0_129, %c0_130] : memref<8x32xbf16, #tpu.memory_space<vmem>>, vector<8x32xbf16>
      tpu.vector_store %arg26[%c0_129, %c0_130], %289 {strides = array<i32>} : memref<8x32xbf16, #tpu.memory_space<vmem>>, vector<8x32xbf16>,
      %c0_131 = arith.constant 0 : index
      %c0_132 = arith.constant 0 : index
      %291 = vector.load %arg15[%c0_131, %c0_132] : memref<32x32xbf16, #tpu.memory_space<vmem>>, vector<32x32xbf16>
      %cst_133 = arith.constant dense<0.000000e+00> : vector<8x32xf32>
      %292 = tpu.matmul %286, %291, %cst_133 {dimension_numbers = #tpu.dot_dimension_numbers<[1], [0], [0], [1], [0, 0, 1, 1], [], []>} : vector<8x32xbf16>, vector<32x32xbf16>, vector<8x32xf32> -> vector<8x32xf32>
      %293 = arith.truncf %292 : vector<8x32xf32> to vector<8x32xbf16>
      %c0_134 = arith.constant 0 : index
      %c0_135 = arith.constant 0 : index
      %294 = vector.load %arg27[%c0_134, %c0_135] : memref<8x32xbf16, #tpu.memory_space<vmem>>, vector<8x32xbf16>
      tpu.vector_store %arg27[%c0_134, %c0_135], %293 {strides = array<i32>} : memref<8x32xbf16, #tpu.memory_space<vmem>>, vector<8x32xbf16>,
    } else {
    }
    %c0 = arith.constant 0 : index
    %c0_1 = arith.constant 0 : index
    %c0_2 = arith.constant 0 : index
    %3 = vector.load %arg3[%c0, %c0_1, %c0_2] : memref<1x8x32xf32, #tpu.memory_space<vmem>>, vector<1x8x32xf32>
    %4 = vector.shape_cast %3 : vector<1x8x32xf32> to vector<8x32xf32>
    %c0_3 = arith.constant 0 : index
    %c0_4 = arith.constant 0 : index
    %5 = vector.load %arg5[%c0_3, %c0_4] : memref<1x32xf32, #tpu.memory_space<vmem>>, vector<1x32xf32>
    %c0_5 = arith.constant 0 : index
    %c0_6 = arith.constant 0 : index
    %6 = vector.load %arg6[%c0_5, %c0_6] : memref<1x32xf32, #tpu.memory_space<vmem>>, vector<1x32xf32>
    %cst = arith.constant dense<0.000000e+00> : vector<8xf32>
    %7 = vector.multi_reduction <add>, %4, %cst [1] : vector<8x32xf32> to vector<8xf32>
    %8 = vector.shape_cast %7 : vector<8xf32> to vector<8x1xf32>
    %cst_7 = arith.constant 3.200000e+01 : f32
    %9 = vector.broadcast %cst_7 : f32 to vector<8x1xf32>
    %10 = arith.divf %8, %9 : vector<8x1xf32>
    %11 = vector.broadcast %10 : vector<8x1xf32> to vector<8x32xf32>
    %12 = arith.subf %4, %11 : vector<8x32xf32>
    %13 = arith.mulf %12, %12 : vector<8x32xf32>
    %cst_8 = arith.constant dense<0.000000e+00> : vector<8xf32>
    %14 = vector.multi_reduction <add>, %13, %cst_8 [1] : vector<8x32xf32> to vector<8xf32>
    %15 = vector.shape_cast %14 : vector<8xf32> to vector<8x1xf32>
    %cst_9 = arith.constant 0.0322580636 : f32
    %16 = vector.broadcast %cst_9 : f32 to vector<8x1xf32>
    %17 = arith.mulf %15, %16 : vector<8x1xf32>
    %18 = math.sqrt %17 : vector<8x1xf32>
    %cst_10 = arith.constant 9.99999997E-7 : f32
    %19 = vector.broadcast %cst_10 : f32 to vector<8x1xf32>
    %20 = arith.addf %18, %19 : vector<8x1xf32>
    %cst_11 = arith.constant 1.000000e+00 : f32
    %21 = vector.broadcast %cst_11 : f32 to vector<8x1xf32>
    %22 = arith.divf %21, %20 : vector<8x1xf32>
    %23 = vector.broadcast %22 : vector<8x1xf32> to vector<8x32xf32>
    %24 = arith.mulf %12, %23 : vector<8x32xf32>
    %25 = vector.broadcast %5 : vector<1x32xf32> to vector<8x32xf32>
    %26 = arith.mulf %25, %24 : vector<8x32xf32>
    %27 = vector.broadcast %6 : vector<1x32xf32> to vector<8x32xf32>
    %28 = arith.addf %26, %27 : vector<8x32xf32>
    %c0_12 = arith.constant 0 : index
    %c0_13 = arith.constant 0 : index
    %29 = vector.load %arg24[%c0_12, %c0_13] : memref<8x32xbf16, #tpu.memory_space<vmem>>, vector<8x32xbf16>
    %c0_14 = arith.constant 0 : index
    %c0_15 = arith.constant 0 : index
    %30 = vector.load %arg25[%c0_14, %c0_15] : memref<8x32xbf16, #tpu.memory_space<vmem>>, vector<8x32xbf16>
    %c0_16 = arith.constant 0 : index
    %c0_17 = arith.constant 0 : index
    %31 = vector.load %arg7[%c0_16, %c0_17] : memref<32x32xbf16, #tpu.memory_space<vmem>>, vector<32x32xbf16>
    %c0_18 = arith.constant 0 : index
    %c0_19 = arith.constant 0 : index
    %32 = vector.load %arg10[%c0_18, %c0_19] : memref<32x32xbf16, #tpu.memory_space<vmem>>, vector<32x32xbf16>
    %33 = arith.truncf %28 : vector<8x32xf32> to vector<8x32xbf16>
    %cst_20 = arith.constant dense<0.000000e+00> : vector<8x32xf32>
    %34 = tpu.matmul %33, %31, %cst_20 {dimension_numbers = #tpu.dot_dimension_numbers<[1], [0], [0], [1], [0, 0, 1, 1], [], []>} : vector<8x32xbf16>, vector<32x32xbf16>, vector<8x32xf32> -> vector<8x32xf32>
    %cst_21 = arith.constant 0.353553385 : f32
    %35 = vector.broadcast %cst_21 : f32 to vector<8x32xf32>
    %36 = arith.mulf %34, %35 : vector<8x32xf32>
    %37 = arith.truncf %36 : vector<8x32xf32> to vector<8x32xbf16>
    %38 = vector.extract_strided_slice %37 {offsets = [0, 0], sizes = [8, 8], strides = [1, 1]} : vector<8x32xbf16> to vector<8x8xbf16>
    %39 = vector.extract_strided_slice %29 {offsets = [0, 0], sizes = [8, 8], strides = [1, 1]} : vector<8x32xbf16> to vector<8x8xbf16>
    "tpu.trace_start"() <{level = 10 : i32, message = "qd,kd->qk"}> : () -> ()
    %cst_22 = arith.constant dense<0.000000e+00> : vector<8x8xf32>
    %40 = tpu.matmul %38, %39, %cst_22 {dimension_numbers = #tpu.dot_dimension_numbers<[1], [1], [0], [0], [0, 0, 1, 0], [], []>} : vector<8x8xbf16>, vector<8x8xbf16>, vector<8x8xf32> -> vector<8x8xf32>
    "tpu.trace_stop"() : () -> ()
    %cst_23 = arith.constant dense<0xFF800000> : vector<8xf32>
    %41 = vector.multi_reduction <maximumf>, %40, %cst_23 [1] : vector<8x8xf32> to vector<8xf32>
    %42 = vector.shape_cast %41 : vector<8xf32> to vector<8x1xf32>
    %43 = vector.broadcast %42 : vector<8x1xf32> to vector<8x8xf32>
    %44 = arith.subf %40, %43 : vector<8x8xf32>
    %45 = math.exp %44 : vector<8x8xf32>
    %cst_24 = arith.constant dense<0.000000e+00> : vector<8xf32>
    %46 = vector.multi_reduction <add>, %45, %cst_24 [1] : vector<8x8xf32> to vector<8xf32>
    %47 = vector.shape_cast %46 : vector<8xf32> to vector<8x1xf32>
    %48 = tpu.reciprocal %47 {approx = true} : vector<8x1xf32> -> vector<8x1xf32>
    %49 = vector.broadcast %48 : vector<8x1xf32> to vector<8x8xf32>
    %50 = arith.mulf %45, %49 : vector<8x8xf32>
    %51 = arith.truncf %50 : vector<8x8xf32> to vector<8x8xbf16>
    %52 = vector.extract_strided_slice %30 {offsets = [0, 0], sizes = [8, 8], strides = [1, 1]} : vector<8x32xbf16> to vector<8x8xbf16>
    %cst_25 = arith.constant dense<0.000000e+00> : vector<8x8xf32>
    %53 = tpu.matmul %51, %52, %cst_25 {dimension_numbers = #tpu.dot_dimension_numbers<[1], [0], [0], [1], [0, 0, 1, 1], [], []>} : vector<8x8xbf16>, vector<8x8xbf16>, vector<8x8xf32> -> vector<8x8xf32>
    %54 = vector.extract_strided_slice %37 {offsets = [0, 8], sizes = [8, 8], strides = [1, 1]} : vector<8x32xbf16> to vector<8x8xbf16>
    %55 = vector.extract_strided_slice %29 {offsets = [0, 8], sizes = [8, 8], strides = [1, 1]} : vector<8x32xbf16> to vector<8x8xbf16>
    "tpu.trace_start"() <{level = 10 : i32, message = "qd,kd->qk"}> : () -> ()
    %cst_26 = arith.constant dense<0.000000e+00> : vector<8x8xf32>
    %56 = tpu.matmul %54, %55, %cst_26 {dimension_numbers = #tpu.dot_dimension_numbers<[1], [1], [0], [0], [0, 0, 1, 0], [], []>} : vector<8x8xbf16>, vector<8x8xbf16>, vector<8x8xf32> -> vector<8x8xf32>
    "tpu.trace_stop"() : () -> ()
    %cst_27 = arith.constant dense<0xFF800000> : vector<8xf32>
    %57 = vector.multi_reduction <maximumf>, %56, %cst_27 [1] : vector<8x8xf32> to vector<8xf32>
    %58 = vector.shape_cast %57 : vector<8xf32> to vector<8x1xf32>
    %59 = vector.broadcast %58 : vector<8x1xf32> to vector<8x8xf32>
    %60 = arith.subf %56, %59 : vector<8x8xf32>
    %61 = math.exp %60 : vector<8x8xf32>
    %cst_28 = arith.constant dense<0.000000e+00> : vector<8xf32>
    %62 = vector.multi_reduction <add>, %61, %cst_28 [1] : vector<8x8xf32> to vector<8xf32>
    %63 = vector.shape_cast %62 : vector<8xf32> to vector<8x1xf32>
    %64 = tpu.reciprocal %63 {approx = true} : vector<8x1xf32> -> vector<8x1xf32>
    %65 = vector.broadcast %64 : vector<8x1xf32> to vector<8x8xf32>
    %66 = arith.mulf %61, %65 : vector<8x8xf32>
    %67 = arith.truncf %66 : vector<8x8xf32> to vector<8x8xbf16>
    %68 = vector.extract_strided_slice %30 {offsets = [0, 8], sizes = [8, 8], strides = [1, 1]} : vector<8x32xbf16> to vector<8x8xbf16>
    %cst_29 = arith.constant dense<0.000000e+00> : vector<8x8xf32>
    %69 = tpu.matmul %67, %68, %cst_29 {dimension_numbers = #tpu.dot_dimension_numbers<[1], [0], [0], [1], [0, 0, 1, 1], [], []>} : vector<8x8xbf16>, vector<8x8xbf16>, vector<8x8xf32> -> vector<8x8xf32>
    %70 = vector.extract_strided_slice %37 {offsets = [0, 16], sizes = [8, 8], strides = [1, 1]} : vector<8x32xbf16> to vector<8x8xbf16>
    %71 = vector.extract_strided_slice %29 {offsets = [0, 16], sizes = [8, 8], strides = [1, 1]} : vector<8x32xbf16> to vector<8x8xbf16>
    "tpu.trace_start"() <{level = 10 : i32, message = "qd,kd->qk"}> : () -> ()
    %cst_30 = arith.constant dense<0.000000e+00> : vector<8x8xf32>
    %72 = tpu.matmul %70, %71, %cst_30 {dimension_numbers = #tpu.dot_dimension_numbers<[1], [1], [0], [0], [0, 0, 1, 0], [], []>} : vector<8x8xbf16>, vector<8x8xbf16>, vector<8x8xf32> -> vector<8x8xf32>
    "tpu.trace_stop"() : () -> ()
    %cst_31 = arith.constant dense<0xFF800000> : vector<8xf32>
    %73 = vector.multi_reduction <maximumf>, %72, %cst_31 [1] : vector<8x8xf32> to vector<8xf32>
    %74 = vector.shape_cast %73 : vector<8xf32> to vector<8x1xf32>
    %75 = vector.broadcast %74 : vector<8x1xf32> to vector<8x8xf32>
    %76 = arith.subf %72, %75 : vector<8x8xf32>
    %77 = math.exp %76 : vector<8x8xf32>
    %cst_32 = arith.constant dense<0.000000e+00> : vector<8xf32>
    %78 = vector.multi_reduction <add>, %77, %cst_32 [1] : vector<8x8xf32> to vector<8xf32>
    %79 = vector.shape_cast %78 : vector<8xf32> to vector<8x1xf32>
    %80 = tpu.reciprocal %79 {approx = true} : vector<8x1xf32> -> vector<8x1xf32>
    %81 = vector.broadcast %80 : vector<8x1xf32> to vector<8x8xf32>
    %82 = arith.mulf %77, %81 : vector<8x8xf32>
    %83 = arith.truncf %82 : vector<8x8xf32> to vector<8x8xbf16>
    %84 = vector.extract_strided_slice %30 {offsets = [0, 16], sizes = [8, 8], strides = [1, 1]} : vector<8x32xbf16> to vector<8x8xbf16>
    %cst_33 = arith.constant dense<0.000000e+00> : vector<8x8xf32>
    %85 = tpu.matmul %83, %84, %cst_33 {dimension_numbers = #tpu.dot_dimension_numbers<[1], [0], [0], [1], [0, 0, 1, 1], [], []>} : vector<8x8xbf16>, vector<8x8xbf16>, vector<8x8xf32> -> vector<8x8xf32>
    %86 = vector.extract_strided_slice %37 {offsets = [0, 24], sizes = [8, 8], strides = [1, 1]} : vector<8x32xbf16> to vector<8x8xbf16>
    %87 = vector.extract_strided_slice %29 {offsets = [0, 24], sizes = [8, 8], strides = [1, 1]} : vector<8x32xbf16> to vector<8x8xbf16>
    "tpu.trace_start"() <{level = 10 : i32, message = "qd,kd->qk"}> : () -> ()
    %cst_34 = arith.constant dense<0.000000e+00> : vector<8x8xf32>
    %88 = tpu.matmul %86, %87, %cst_34 {dimension_numbers = #tpu.dot_dimension_numbers<[1], [1], [0], [0], [0, 0, 1, 0], [], []>} : vector<8x8xbf16>, vector<8x8xbf16>, vector<8x8xf32> -> vector<8x8xf32>
    "tpu.trace_stop"() : () -> ()
    %cst_35 = arith.constant dense<0xFF800000> : vector<8xf32>
    %89 = vector.multi_reduction <maximumf>, %88, %cst_35 [1] : vector<8x8xf32> to vector<8xf32>
    %90 = vector.shape_cast %89 : vector<8xf32> to vector<8x1xf32>
    %91 = vector.broadcast %90 : vector<8x1xf32> to vector<8x8xf32>
    %92 = arith.subf %88, %91 : vector<8x8xf32>
    %93 = math.exp %92 : vector<8x8xf32>
    %cst_36 = arith.constant dense<0.000000e+00> : vector<8xf32>
    %94 = vector.multi_reduction <add>, %93, %cst_36 [1] : vector<8x8xf32> to vector<8xf32>
    %95 = vector.shape_cast %94 : vector<8xf32> to vector<8x1xf32>
    %96 = tpu.reciprocal %95 {approx = true} : vector<8x1xf32> -> vector<8x1xf32>
    %97 = vector.broadcast %96 : vector<8x1xf32> to vector<8x8xf32>
    %98 = arith.mulf %93, %97 : vector<8x8xf32>
    %99 = arith.truncf %98 : vector<8x8xf32> to vector<8x8xbf16>
    %100 = vector.extract_strided_slice %30 {offsets = [0, 24], sizes = [8, 8], strides = [1, 1]} : vector<8x32xbf16> to vector<8x8xbf16>
    %cst_37 = arith.constant dense<0.000000e+00> : vector<8x8xf32>
    %101 = tpu.matmul %99, %100, %cst_37 {dimension_numbers = #tpu.dot_dimension_numbers<[1], [0], [0], [1], [0, 0, 1, 1], [], []>} : vector<8x8xbf16>, vector<8x8xbf16>, vector<8x8xf32> -> vector<8x8xf32>
    %102 = tpu.concatenate %53, %69, %85, %101 in 1 : vector<8x8xf32>, vector<8x8xf32>, vector<8x8xf32>, vector<8x8xf32> -> vector<8x32xf32>
    %103 = arith.truncf %102 : vector<8x32xf32> to vector<8x32xbf16>
    %cst_38 = arith.constant dense<0.000000e+00> : vector<8x32xf32>
    %104 = tpu.matmul %103, %32, %cst_38 {dimension_numbers = #tpu.dot_dimension_numbers<[1], [0], [0], [1], [0, 0, 1, 1], [], []>} : vector<8x32xbf16>, vector<32x32xbf16>, vector<8x32xf32> -> vector<8x32xf32>
    %105 = arith.addf %4, %104 : vector<8x32xf32>
    %c0_39 = arith.constant 0 : index
    %c0_40 = arith.constant 0 : index
    %106 = vector.load %arg11[%c0_39, %c0_40] : memref<1x32xf32, #tpu.memory_space<vmem>>, vector<1x32xf32>
    %c0_41 = arith.constant 0 : index
    %c0_42 = arith.constant 0 : index
    %107 = vector.load %arg12[%c0_41, %c0_42] : memref<1x32xf32, #tpu.memory_space<vmem>>, vector<1x32xf32>
    %cst_43 = arith.constant dense<0.000000e+00> : vector<8xf32>
    %108 = vector.multi_reduction <add>, %105, %cst_43 [1] : vector<8x32xf32> to vector<8xf32>
    %109 = vector.shape_cast %108 : vector<8xf32> to vector<8x1xf32>
    %cst_44 = arith.constant 3.200000e+01 : f32
    %110 = vector.broadcast %cst_44 : f32 to vector<8x1xf32>
    %111 = arith.divf %109, %110 : vector<8x1xf32>
    %112 = vector.broadcast %111 : vector<8x1xf32> to vector<8x32xf32>
    %113 = arith.subf %105, %112 : vector<8x32xf32>
    %114 = arith.mulf %113, %113 : vector<8x32xf32>
    %cst_45 = arith.constant dense<0.000000e+00> : vector<8xf32>
    %115 = vector.multi_reduction <add>, %114, %cst_45 [1] : vector<8x32xf32> to vector<8xf32>
    %116 = vector.shape_cast %115 : vector<8xf32> to vector<8x1xf32>
    %cst_46 = arith.constant 0.0322580636 : f32
    %117 = vector.broadcast %cst_46 : f32 to vector<8x1xf32>
    %118 = arith.mulf %116, %117 : vector<8x1xf32>
    %119 = math.sqrt %118 : vector<8x1xf32>
    %cst_47 = arith.constant 9.99999997E-7 : f32
    %120 = vector.broadcast %cst_47 : f32 to vector<8x1xf32>
    %121 = arith.addf %119, %120 : vector<8x1xf32>
    %cst_48 = arith.constant 1.000000e+00 : f32
    %122 = vector.broadcast %cst_48 : f32 to vector<8x1xf32>
    %123 = arith.divf %122, %121 : vector<8x1xf32>
    %124 = vector.broadcast %123 : vector<8x1xf32> to vector<8x32xf32>
    %125 = arith.mulf %113, %124 : vector<8x32xf32>
    %126 = vector.broadcast %106 : vector<1x32xf32> to vector<8x32xf32>
    %127 = arith.mulf %126, %125 : vector<8x32xf32>
    %128 = vector.broadcast %107 : vector<1x32xf32> to vector<8x32xf32>
    %129 = arith.addf %127, %128 : vector<8x32xf32>
    %c0_49 = arith.constant 0 : index
    %c0_50 = arith.constant 0 : index
    %130 = vector.load %arg26[%c0_49, %c0_50] : memref<8x32xbf16, #tpu.memory_space<vmem>>, vector<8x32xbf16>
    %c0_51 = arith.constant 0 : index
    %c0_52 = arith.constant 0 : index
    %131 = vector.load %arg27[%c0_51, %c0_52] : memref<8x32xbf16, #tpu.memory_space<vmem>>, vector<8x32xbf16>
    %c0_53 = arith.constant 0 : index
    %c0_54 = arith.constant 0 : index
    %132 = vector.load %arg13[%c0_53, %c0_54] : memref<32x32xbf16, #tpu.memory_space<vmem>>, vector<32x32xbf16>
    %c0_55 = arith.constant 0 : index
    %c0_56 = arith.constant 0 : index
    %133 = vector.load %arg16[%c0_55, %c0_56] : memref<32x32xbf16, #tpu.memory_space<vmem>>, vector<32x32xbf16>
    %134 = arith.truncf %129 : vector<8x32xf32> to vector<8x32xbf16>
    %cst_57 = arith.constant dense<0.000000e+00> : vector<8x32xf32>
    %135 = tpu.matmul %134, %132, %cst_57 {dimension_numbers = #tpu.dot_dimension_numbers<[1], [0], [0], [1], [0, 0, 1, 1], [], []>} : vector<8x32xbf16>, vector<32x32xbf16>, vector<8x32xf32> -> vector<8x32xf32>
    %cst_58 = arith.constant 0.353553385 : f32
    %136 = vector.broadcast %cst_58 : f32 to vector<8x32xf32>
    %137 = arith.mulf %135, %136 : vector<8x32xf32>
    %138 = arith.truncf %137 : vector<8x32xf32> to vector<8x32xbf16>
    %139 = vector.extract_strided_slice %138 {offsets = [0, 0], sizes = [8, 8], strides = [1, 1]} : vector<8x32xbf16> to vector<8x8xbf16>
    %140 = vector.extract_strided_slice %130 {offsets = [0, 0], sizes = [8, 8], strides = [1, 1]} : vector<8x32xbf16> to vector<8x8xbf16>
    "tpu.trace_start"() <{level = 10 : i32, message = "qd,kd->qk"}> : () -> ()
    %cst_59 = arith.constant dense<0.000000e+00> : vector<8x8xf32>
    %141 = tpu.matmul %139, %140, %cst_59 {dimension_numbers = #tpu.dot_dimension_numbers<[1], [1], [0], [0], [0, 0, 1, 0], [], []>} : vector<8x8xbf16>, vector<8x8xbf16>, vector<8x8xf32> -> vector<8x8xf32>
    "tpu.trace_stop"() : () -> ()
    %cst_60 = arith.constant dense<0xFF800000> : vector<8xf32>
    %142 = vector.multi_reduction <maximumf>, %141, %cst_60 [1] : vector<8x8xf32> to vector<8xf32>
    %143 = vector.shape_cast %142 : vector<8xf32> to vector<8x1xf32>
    %144 = vector.broadcast %143 : vector<8x1xf32> to vector<8x8xf32>
    %145 = arith.subf %141, %144 : vector<8x8xf32>
    %146 = math.exp %145 : vector<8x8xf32>
    %cst_61 = arith.constant dense<0.000000e+00> : vector<8xf32>
    %147 = vector.multi_reduction <add>, %146, %cst_61 [1] : vector<8x8xf32> to vector<8xf32>
    %148 = vector.shape_cast %147 : vector<8xf32> to vector<8x1xf32>
    %149 = tpu.reciprocal %148 {approx = true} : vector<8x1xf32> -> vector<8x1xf32>
    %150 = vector.broadcast %149 : vector<8x1xf32> to vector<8x8xf32>
    %151 = arith.mulf %146, %150 : vector<8x8xf32>
    %152 = arith.truncf %151 : vector<8x8xf32> to vector<8x8xbf16>
    %153 = vector.extract_strided_slice %131 {offsets = [0, 0], sizes = [8, 8], strides = [1, 1]} : vector<8x32xbf16> to vector<8x8xbf16>
    %cst_62 = arith.constant dense<0.000000e+00> : vector<8x8xf32>
    %154 = tpu.matmul %152, %153, %cst_62 {dimension_numbers = #tpu.dot_dimension_numbers<[1], [0], [0], [1], [0, 0, 1, 1], [], []>} : vector<8x8xbf16>, vector<8x8xbf16>, vector<8x8xf32> -> vector<8x8xf32>
    %155 = vector.extract_strided_slice %138 {offsets = [0, 8], sizes = [8, 8], strides = [1, 1]} : vector<8x32xbf16> to vector<8x8xbf16>
    %156 = vector.extract_strided_slice %130 {offsets = [0, 8], sizes = [8, 8], strides = [1, 1]} : vector<8x32xbf16> to vector<8x8xbf16>
    "tpu.trace_start"() <{level = 10 : i32, message = "qd,kd->qk"}> : () -> ()
    %cst_63 = arith.constant dense<0.000000e+00> : vector<8x8xf32>
    %157 = tpu.matmul %155, %156, %cst_63 {dimension_numbers = #tpu.dot_dimension_numbers<[1], [1], [0], [0], [0, 0, 1, 0], [], []>} : vector<8x8xbf16>, vector<8x8xbf16>, vector<8x8xf32> -> vector<8x8xf32>
    "tpu.trace_stop"() : () -> ()
    %cst_64 = arith.constant dense<0xFF800000> : vector<8xf32>
    %158 = vector.multi_reduction <maximumf>, %157, %cst_64 [1] : vector<8x8xf32> to vector<8xf32>
    %159 = vector.shape_cast %158 : vector<8xf32> to vector<8x1xf32>
    %160 = vector.broadcast %159 : vector<8x1xf32> to vector<8x8xf32>
    %161 = arith.subf %157, %160 : vector<8x8xf32>
    %162 = math.exp %161 : vector<8x8xf32>
    %cst_65 = arith.constant dense<0.000000e+00> : vector<8xf32>
    %163 = vector.multi_reduction <add>, %162, %cst_65 [1] : vector<8x8xf32> to vector<8xf32>
    %164 = vector.shape_cast %163 : vector<8xf32> to vector<8x1xf32>
    %165 = tpu.reciprocal %164 {approx = true} : vector<8x1xf32> -> vector<8x1xf32>
    %166 = vector.broadcast %165 : vector<8x1xf32> to vector<8x8xf32>
    %167 = arith.mulf %162, %166 : vector<8x8xf32>
    %168 = arith.truncf %167 : vector<8x8xf32> to vector<8x8xbf16>
    %169 = vector.extract_strided_slice %131 {offsets = [0, 8], sizes = [8, 8], strides = [1, 1]} : vector<8x32xbf16> to vector<8x8xbf16>
    %cst_66 = arith.constant dense<0.000000e+00> : vector<8x8xf32>
    %170 = tpu.matmul %168, %169, %cst_66 {dimension_numbers = #tpu.dot_dimension_numbers<[1], [0], [0], [1], [0, 0, 1, 1], [], []>} : vector<8x8xbf16>, vector<8x8xbf16>, vector<8x8xf32> -> vector<8x8xf32>
    %171 = vector.extract_strided_slice %138 {offsets = [0, 16], sizes = [8, 8], strides = [1, 1]} : vector<8x32xbf16> to vector<8x8xbf16>
    %172 = vector.extract_strided_slice %130 {offsets = [0, 16], sizes = [8, 8], strides = [1, 1]} : vector<8x32xbf16> to vector<8x8xbf16>
    "tpu.trace_start"() <{level = 10 : i32, message = "qd,kd->qk"}> : () -> ()
    %cst_67 = arith.constant dense<0.000000e+00> : vector<8x8xf32>
    %173 = tpu.matmul %171, %172, %cst_67 {dimension_numbers = #tpu.dot_dimension_numbers<[1], [1], [0], [0], [0, 0, 1, 0], [], []>} : vector<8x8xbf16>, vector<8x8xbf16>, vector<8x8xf32> -> vector<8x8xf32>
    "tpu.trace_stop"() : () -> ()
    %cst_68 = arith.constant dense<0xFF800000> : vector<8xf32>
    %174 = vector.multi_reduction <maximumf>, %173, %cst_68 [1] : vector<8x8xf32> to vector<8xf32>
    %175 = vector.shape_cast %174 : vector<8xf32> to vector<8x1xf32>
    %176 = vector.broadcast %175 : vector<8x1xf32> to vector<8x8xf32>
    %177 = arith.subf %173, %176 : vector<8x8xf32>
    %178 = math.exp %177 : vector<8x8xf32>
    %cst_69 = arith.constant dense<0.000000e+00> : vector<8xf32>
    %179 = vector.multi_reduction <add>, %178, %cst_69 [1] : vector<8x8xf32> to vector<8xf32>
    %180 = vector.shape_cast %179 : vector<8xf32> to vector<8x1xf32>
    %181 = tpu.reciprocal %180 {approx = true} : vector<8x1xf32> -> vector<8x1xf32>
    %182 = vector.broadcast %181 : vector<8x1xf32> to vector<8x8xf32>
    %183 = arith.mulf %178, %182 : vector<8x8xf32>
    %184 = arith.truncf %183 : vector<8x8xf32> to vector<8x8xbf16>
    %185 = vector.extract_strided_slice %131 {offsets = [0, 16], sizes = [8, 8], strides = [1, 1]} : vector<8x32xbf16> to vector<8x8xbf16>
    %cst_70 = arith.constant dense<0.000000e+00> : vector<8x8xf32>
    %186 = tpu.matmul %184, %185, %cst_70 {dimension_numbers = #tpu.dot_dimension_numbers<[1], [0], [0], [1], [0, 0, 1, 1], [], []>} : vector<8x8xbf16>, vector<8x8xbf16>, vector<8x8xf32> -> vector<8x8xf32>
    %187 = vector.extract_strided_slice %138 {offsets = [0, 24], sizes = [8, 8], strides = [1, 1]} : vector<8x32xbf16> to vector<8x8xbf16>
    %188 = vector.extract_strided_slice %130 {offsets = [0, 24], sizes = [8, 8], strides = [1, 1]} : vector<8x32xbf16> to vector<8x8xbf16>
    "tpu.trace_start"() <{level = 10 : i32, message = "qd,kd->qk"}> : () -> ()
    %cst_71 = arith.constant dense<0.000000e+00> : vector<8x8xf32>
    %189 = tpu.matmul %187, %188, %cst_71 {dimension_numbers = #tpu.dot_dimension_numbers<[1], [1], [0], [0], [0, 0, 1, 0], [], []>} : vector<8x8xbf16>, vector<8x8xbf16>, vector<8x8xf32> -> vector<8x8xf32>
    "tpu.trace_stop"() : () -> ()
    %cst_72 = arith.constant dense<0xFF800000> : vector<8xf32>
    %190 = vector.multi_reduction <maximumf>, %189, %cst_72 [1] : vector<8x8xf32> to vector<8xf32>
    %191 = vector.shape_cast %190 : vector<8xf32> to vector<8x1xf32>
    %192 = vector.broadcast %191 : vector<8x1xf32> to vector<8x8xf32>
    %193 = arith.subf %189, %192 : vector<8x8xf32>
    %194 = math.exp %193 : vector<8x8xf32>
    %cst_73 = arith.constant dense<0.000000e+00> : vector<8xf32>
    %195 = vector.multi_reduction <add>, %194, %cst_73 [1] : vector<8x8xf32> to vector<8xf32>
    %196 = vector.shape_cast %195 : vector<8xf32> to vector<8x1xf32>
    %197 = tpu.reciprocal %196 {approx = true} : vector<8x1xf32> -> vector<8x1xf32>
    %198 = vector.broadcast %197 : vector<8x1xf32> to vector<8x8xf32>
    %199 = arith.mulf %194, %198 : vector<8x8xf32>
    %200 = arith.truncf %199 : vector<8x8xf32> to vector<8x8xbf16>
    %201 = vector.extract_strided_slice %131 {offsets = [0, 24], sizes = [8, 8], strides = [1, 1]} : vector<8x32xbf16> to vector<8x8xbf16>
    %cst_74 = arith.constant dense<0.000000e+00> : vector<8x8xf32>
    %202 = tpu.matmul %200, %201, %cst_74 {dimension_numbers = #tpu.dot_dimension_numbers<[1], [0], [0], [1], [0, 0, 1, 1], [], []>} : vector<8x8xbf16>, vector<8x8xbf16>, vector<8x8xf32> -> vector<8x8xf32>
    %203 = tpu.concatenate %154, %170, %186, %202 in 1 : vector<8x8xf32>, vector<8x8xf32>, vector<8x8xf32>, vector<8x8xf32> -> vector<8x32xf32>
    %204 = arith.truncf %203 : vector<8x32xf32> to vector<8x32xbf16>
    %cst_75 = arith.constant dense<0.000000e+00> : vector<8x32xf32>
    %205 = tpu.matmul %204, %133, %cst_75 {dimension_numbers = #tpu.dot_dimension_numbers<[1], [0], [0], [1], [0, 0, 1, 1], [], []>} : vector<8x32xbf16>, vector<32x32xbf16>, vector<8x32xf32> -> vector<8x32xf32>
    %206 = arith.addf %105, %205 : vector<8x32xf32>
    %c0_76 = arith.constant 0 : index
    %c0_77 = arith.constant 0 : index
    %207 = vector.load %arg17[%c0_76, %c0_77] : memref<1x32xf32, #tpu.memory_space<vmem>>, vector<1x32xf32>
    %c0_78 = arith.constant 0 : index
    %c0_79 = arith.constant 0 : index
    %208 = vector.load %arg18[%c0_78, %c0_79] : memref<1x32xf32, #tpu.memory_space<vmem>>, vector<1x32xf32>
    %cst_80 = arith.constant dense<0.000000e+00> : vector<8xf32>
    %209 = vector.multi_reduction <add>, %206, %cst_80 [1] : vector<8x32xf32> to vector<8xf32>
    %210 = vector.shape_cast %209 : vector<8xf32> to vector<8x1xf32>
    %cst_81 = arith.constant 3.200000e+01 : f32
    %211 = vector.broadcast %cst_81 : f32 to vector<8x1xf32>
    %212 = arith.divf %210, %211 : vector<8x1xf32>
    %213 = vector.broadcast %212 : vector<8x1xf32> to vector<8x32xf32>
    %214 = arith.subf %206, %213 : vector<8x32xf32>
    %215 = arith.mulf %214, %214 : vector<8x32xf32>
    %cst_82 = arith.constant dense<0.000000e+00> : vector<8xf32>
    %216 = vector.multi_reduction <add>, %215, %cst_82 [1] : vector<8x32xf32> to vector<8xf32>
    %217 = vector.shape_cast %216 : vector<8xf32> to vector<8x1xf32>
    %cst_83 = arith.constant 0.0322580636 : f32
    %218 = vector.broadcast %cst_83 : f32 to vector<8x1xf32>
    %219 = arith.mulf %217, %218 : vector<8x1xf32>
    %220 = math.sqrt %219 : vector<8x1xf32>
    %cst_84 = arith.constant 9.99999997E-7 : f32
    %221 = vector.broadcast %cst_84 : f32 to vector<8x1xf32>
    %222 = arith.addf %220, %221 : vector<8x1xf32>
    %cst_85 = arith.constant 1.000000e+00 : f32
    %223 = vector.broadcast %cst_85 : f32 to vector<8x1xf32>
    %224 = arith.divf %223, %222 : vector<8x1xf32>
    %225 = vector.broadcast %224 : vector<8x1xf32> to vector<8x32xf32>
    %226 = arith.mulf %214, %225 : vector<8x32xf32>
    %227 = vector.broadcast %207 : vector<1x32xf32> to vector<8x32xf32>
    %228 = arith.mulf %227, %226 : vector<8x32xf32>
    %229 = vector.broadcast %208 : vector<1x32xf32> to vector<8x32xf32>
    %230 = arith.addf %228, %229 : vector<8x32xf32>
    %231 = arith.truncf %230 : vector<8x32xf32> to vector<8x32xbf16>
    %c0_86 = arith.constant 0 : index
    %c0_87 = arith.constant 0 : index
    %232 = vector.load %arg19[%c0_86, %c0_87] : memref<32x64xbf16, #tpu.memory_space<vmem>>, vector<32x64xbf16>
    %cst_88 = arith.constant dense<0.000000e+00> : vector<8x64xf32>
    %233 = tpu.matmul %231, %232, %cst_88 {dimension_numbers = #tpu.dot_dimension_numbers<[1], [0], [0], [1], [0, 0, 1, 1], [], []>} : vector<8x32xbf16>, vector<32x64xbf16>, vector<8x64xf32> -> vector<8x64xf32>
    %c0_89 = arith.constant 0 : index
    %c0_90 = arith.constant 0 : index
    %234 = vector.load %arg20[%c0_89, %c0_90] : memref<1x64xf32, #tpu.memory_space<vmem>>, vector<1x64xf32>
    %235 = vector.broadcast %234 : vector<1x64xf32> to vector<8x64xf32>
    %236 = arith.addf %233, %235 : vector<8x64xf32>
    %cst_91 = arith.constant 0.000000e+00 : f32
    %237 = vector.broadcast %cst_91 : f32 to vector<8x64xf32>
    %238 = arith.maximumf %236, %237 : vector<8x64xf32>
    %239 = arith.truncf %238 : vector<8x64xf32> to vector<8x64xbf16>
    %c0_92 = arith.constant 0 : index
    %c0_93 = arith.constant 0 : index
    %240 = vector.load %arg21[%c0_92, %c0_93] : memref<64x32xbf16, #tpu.memory_space<vmem>>, vector<64x32xbf16>
    %cst_94 = arith.constant dense<0.000000e+00> : vector<8x32xf32>
    %241 = tpu.matmul %239, %240, %cst_94 {dimension_numbers = #tpu.dot_dimension_numbers<[1], [0], [0], [1], [0, 0, 1, 1], [], []>} : vector<8x64xbf16>, vector<64x32xbf16>, vector<8x32xf32> -> vector<8x32xf32>
    %c0_95 = arith.constant 0 : index
    %c0_96 = arith.constant 0 : index
    %242 = vector.load %arg22[%c0_95, %c0_96] : memref<1x32xf32, #tpu.memory_space<vmem>>, vector<1x32xf32>
    %243 = vector.broadcast %242 : vector<1x32xf32> to vector<8x32xf32>
    %244 = arith.addf %241, %243 : vector<8x32xf32>
    %245 = arith.addf %206, %244 : vector<8x32xf32>
    %c0_97 = arith.constant 0 : index
    %c0_98 = arith.constant 0 : index
    %c0_99 = arith.constant 0 : index
    %246 = vector.load %arg23[%c0_97, %c0_98, %c0_99] : memref<1x8x32xf32, #tpu.memory_space<vmem>>, vector<1x8x32xf32>
    %247 = vector.shape_cast %246 : vector<1x8x32xf32> to vector<8x32xf32>
    %248 = vector.shape_cast %245 : vector<8x32xf32> to vector<1x8x32xf32>
    tpu.vector_store %arg23[%c0_97, %c0_98, %c0_99], %248 {strides = array<i32>} : memref<1x8x32xf32, #tpu.memory_space<vmem>>, vector<1x8x32xf32>,
    return
  }
  func.func @transform_0(%arg0: i32, %arg1: i32) -> (i32, i32, i32) {
    %c0_i32 = arith.constant 0 : i32
    %c0_i32_0 = arith.constant 0 : i32
    %c0_i32_1 = arith.constant 0 : i32
    return %arg0, %c0_i32, %c0_i32_0 : i32, i32, i32
  }
  func.func @transform_1(%arg0: i32, %arg1: i32) -> (i32, i32, i32) {
    %c0_i32 = arith.constant 0 : i32
    %c0_i32_0 = arith.constant 0 : i32
    return %arg0, %arg1, %c0_i32 : i32, i32, i32
  }
  func.func @transform_2(%arg0: i32, %arg1: i32) -> (i32, i32, i32) {
    %c0_i32 = arith.constant 0 : i32
    %c0_i32_0 = arith.constant 0 : i32
    %c0_i32_1 = arith.constant 0 : i32
    return %arg0, %c0_i32, %c0_i32_0 : i32, i32, i32
  }
  func.func @transform_3(%arg0: i32, %arg1: i32) -> (i32, i32) {
    %c0_i32 = arith.constant 0 : i32
    %c0_i32_0 = arith.constant 0 : i32
    %c0_i32_1 = arith.constant 0 : i32
    return %c0_i32, %c0_i32_0 : i32, i32
  }
  func.func @transform_4(%arg0: i32, %arg1: i32) -> (i32, i32) {
    %c0_i32 = arith.constant 0 : i32
    %c0_i32_0 = arith.constant 0 : i32
    %c0_i32_1 = arith.constant 0 : i32
    return %c0_i32, %c0_i32_0 : i32, i32
  }
  func.func @transform_5(%arg0: i32, %arg1: i32) -> (i32, i32) {
    %c0_i32 = arith.constant 0 : i32
    %c0_i32_0 = arith.constant 0 : i32
    %c0_i32_1 = arith.constant 0 : i32
    return %c0_i32, %c0_i32_0 : i32, i32
  }
  func.func @transform_6(%arg0: i32, %arg1: i32) -> (i32, i32) {
    %c0_i32 = arith.constant 0 : i32
    %c0_i32_0 = arith.constant 0 : i32
    %c0_i32_1 = arith.constant 0 : i32
    return %c0_i32, %c0_i32_0 : i32, i32
  }
  func.func @transform_7(%arg0: i32, %arg1: i32) -> (i32, i32) {
    %c0_i32 = arith.constant 0 : i32
    %c0_i32_0 = arith.constant 0 : i32
    %c0_i32_1 = arith.constant 0 : i32
    return %c0_i32, %c0_i32_0 : i32, i32
  }
  func.func @transform_8(%arg0: i32, %arg1: i32) -> (i32, i32) {
    %c0_i32 = arith.constant 0 : i32
    %c0_i32_0 = arith.constant 0 : i32
    %c0_i32_1 = arith.constant 0 : i32
    return %c0_i32, %c0_i32_0 : i32, i32
  }
  func.func @transform_9(%arg0: i32, %arg1: i32) -> (i32, i32) {
    %c0_i32 = arith.constant 0 : i32
    %c0_i32_0 = arith.constant 0 : i32
    %c0_i32_1 = arith.constant 0 : i32
    return %c0_i32, %c0_i32_0 : i32, i32
  }
  func.func @transform_10(%arg0: i32, %arg1: i32) -> (i32, i32) {
    %c0_i32 = arith.constant 0 : i32
    %c0_i32_0 = arith.constant 0 : i32
    %c0_i32_1 = arith.constant 0 : i32
    return %c0_i32, %c0_i32_0 : i32, i32
  }
  func.func @transform_11(%arg0: i32, %arg1: i32) -> (i32, i32) {
    %c0_i32 = arith.constant 0 : i32
    %c0_i32_0 = arith.constant 0 : i32
    %c0_i32_1 = arith.constant 0 : i32
    return %c0_i32, %c0_i32_0 : i32, i32
  }
  func.func @transform_12(%arg0: i32, %arg1: i32) -> (i32, i32) {
    %c0_i32 = arith.constant 0 : i32
    %c0_i32_0 = arith.constant 0 : i32
    %c0_i32_1 = arith.constant 0 : i32
    return %c0_i32, %c0_i32_0 : i32, i32
  }
  func.func @transform_13(%arg0: i32, %arg1: i32) -> (i32, i32) {
    %c0_i32 = arith.constant 0 : i32
    %c0_i32_0 = arith.constant 0 : i32
    %c0_i32_1 = arith.constant 0 : i32
    return %c0_i32, %c0_i32_0 : i32, i32
  }
  func.func @transform_14(%arg0: i32, %arg1: i32) -> (i32, i32) {
    %c0_i32 = arith.constant 0 : i32
    %c0_i32_0 = arith.constant 0 : i32
    %c0_i32_1 = arith.constant 0 : i32
    return %c0_i32, %c0_i32_0 : i32, i32
  }
  func.func @transform_15(%arg0: i32, %arg1: i32) -> (i32, i32) {
    %c0_i32 = arith.constant 0 : i32
    %c0_i32_0 = arith.constant 0 : i32
    %c0_i32_1 = arith.constant 0 : i32
    return %c0_i32, %c0_i32_0 : i32, i32
  }
  func.func @transform_16(%arg0: i32, %arg1: i32) -> (i32, i32) {
    %c0_i32 = arith.constant 0 : i32
    %c0_i32_0 = arith.constant 0 : i32
    %c0_i32_1 = arith.constant 0 : i32
    return %c0_i32, %c0_i32_0 : i32, i32
  }
  func.func @transform_17(%arg0: i32, %arg1: i32) -> (i32, i32) {
    %c0_i32 = arith.constant 0 : i32
    %c0_i32_0 = arith.constant 0 : i32
    %c0_i32_1 = arith.constant 0 : i32
    return %c0_i32, %c0_i32_0 : i32, i32
  }
  func.func @transform_18(%arg0: i32, %arg1: i32) -> (i32, i32) {
    %c0_i32 = arith.constant 0 : i32
    %c0_i32_0 = arith.constant 0 : i32
    %c0_i32_1 = arith.constant 0 : i32
    return %c0_i32, %c0_i32_0 : i32, i32
  }
  func.func @transform_19(%arg0: i32, %arg1: i32) -> (i32, i32) {
    %c0_i32 = arith.constant 0 : i32
    %c0_i32_0 = arith.constant 0 : i32
    %c0_i32_1 = arith.constant 0 : i32
    return %c0_i32, %c0_i32_0 : i32, i32
  }
  func.func @transform_20(%arg0: i32, %arg1: i32) -> (i32, i32) {
    %c0_i32 = arith.constant 0 : i32
    %c0_i32_0 = arith.constant 0 : i32
    %c0_i32_1 = arith.constant 0 : i32
    return %c0_i32, %c0_i32_0 : i32, i32
  }
  func.func @transform_21(%arg0: i32, %arg1: i32) -> (i32, i32, i32) {
    %c0_i32 = arith.constant 0 : i32
    %c0_i32_0 = arith.constant 0 : i32
    return %arg0, %arg1, %c0_i32 : i32, i32, i32
  }
}

</mosaic_0001>

<llo_original>
// kernel: decoder_block_forward.1
$region0: #{decoder_block_forward.1}
  #allocation0 [shape = 'u32[]', space=smem, size = 0x4, offset = 0x4, fixed_abs, tag = 'smem constant byte address 0x4 - core index']
  #allocation1 [shape = 'u32[144,128]{1,0:T(1,128)}', space=vmem, size = 0x12000, scoped, tag = 'internal scratch']
  #allocation2 [shape = 'bf16[8,32]{1,0:T(8,128)(2,1)}', space=vmem, size = 0x800, scoped, tag = 'scratch operand']
  #allocation3 [shape = 'bf16[8,32]{1,0:T(8,128)(2,1)}', space=vmem, size = 0x800, scoped, tag = 'scratch operand']
  #allocation4 [shape = 'bf16[8,32]{1,0:T(8,128)(2,1)}', space=vmem, size = 0x800, scoped, tag = 'scratch operand']
  #allocation5 [shape = 'bf16[8,32]{1,0:T(8,128)(2,1)}', space=vmem, size = 0x800, scoped, tag = 'scratch operand']
  %s0 = inlined_call_operand.vmem [shape: f32[2,8,32], index: 0, kind: input, shape index: {}, may-alias: {0,1}]
  %s1 = inlined_call_operand.vmem [shape: f32[2,8,32], index: 1, kind: input, shape index: {}, may-alias: {0,1}]
  %s2 = inlined_call_operand.vmem [shape: f32[2,8,32], index: 2, kind: input, shape index: {}]
  %s3 = inlined_call_operand.hbm [shape: f32[1,32], index: 3, kind: input, shape index: {}]
  %s4 = inlined_call_operand.hbm [shape: f32[1,32], index: 4, kind: input, shape index: {}]
  %s5 = inlined_call_operand.vmem [shape: bf16[32,32], index: 5, kind: input, shape index: {}]
  %s6 = inlined_call_operand.hbm [shape: bf16[32,32], index: 6, kind: input, shape index: {}]
  %s7 = inlined_call_operand.vmem [shape: bf16[32,32], index: 7, kind: input, shape index: {}]
  %s8 = inlined_call_operand.hbm [shape: bf16[32,32], index: 8, kind: input, shape index: {}]
  %s9 = inlined_call_operand.hbm [shape: f32[1,32], index: 9, kind: input, shape index: {}]
  %s10 = inlined_call_operand.hbm [shape: f32[1,32], index: 10, kind: input, shape index: {}]
  %s11 = inlined_call_operand.hbm [shape: bf16[32,32], index: 11, kind: input, shape index: {}]
  %s12 = inlined_call_operand.hbm [shape: bf16[32,32], index: 12, kind: input, shape index: {}]
  %s13 = inlined_call_operand.hbm [shape: bf16[32,32], index: 13, kind: input, shape index: {}]
  %s14 = inlined_call_operand.hbm [shape: bf16[32,32], index: 14, kind: input, shape index: {}]
  %s15 = inlined_call_operand.hbm [shape: f32[1,32], index: 15, kind: input, shape index: {}]
  %s16 = inlined_call_operand.hbm [shape: f32[1,32], index: 16, kind: input, shape index: {}]
  %s17 = inlined_call_operand.hbm [shape: bf16[32,64], index: 17, kind: input, shape index: {}]
  %s18 = inlined_call_operand.hbm [shape: f32[1,64], index: 18, kind: input, shape index: {}]
  %s19 = inlined_call_operand.vmem [shape: bf16[64,32], index: 19, kind: input, shape index: {}]
  %s20 = inlined_call_operand.hbm [shape: f32[1,32], index: 20, kind: input, shape index: {}]
  %s21 = inlined_call_operand.hbm [shape: f32[2,8,32], index: 21, kind: output, shape index: {}]
  %s22 = sld [smem:[#allocation0]]
  $region181: #{decoder_block_forward.1} parent=0
    _
  %s24 = ssub.s32 1, %s22
  %s25 = scalar_select 0, %s24, %s22
  $region1: #{decoder_block_forward.1} parent=0
    #allocation6 [shape = 'u8[512]{0}', space=vmem, size = 0x400, scoped, tag = 'input window, operand 3, single buffered']
    #allocation7 [shape = 's32[2]{0}', space=sflag, size = 0x8, scoped, tag = 'scoped memory for decoder_block_forward.1']
    #allocation8 [shape = 's32[2]{0}', space=sflag, size = 0x8, scoped, tag = 'scoped memory for decoder_block_forward.1']
    #allocation9 [shape = 'u8[512]{0}', space=vmem, size = 0x400, scoped, tag = 'input window, operand 4, single buffered']
    #allocation10 [shape = 's32[1]{0}', space=sflag, size = 0x4, scoped, tag = 'scoped memory for decoder_block_forward.1']
    #allocation11 [shape = 'u8[8192]{0}', space=vmem, size = 0x2000, scoped, tag = 'input window, operand 6, single buffered']
    #allocation12 [shape = 'u8[8192]{0}', space=vmem, size = 0x2000, scoped, tag = 'input window, operand 8, single buffered']
    #allocation13 [shape = 's32[1]{0}', space=sflag, size = 0x4, scoped, tag = 'scoped memory for decoder_block_forward.1']
    #allocation14 [shape = 'u8[512]{0}', space=vmem, size = 0x400, scoped, tag = 'input window, operand 9, single buffered']
    #allocation15 [shape = 'u8[512]{0}', space=vmem, size = 0x400, scoped, tag = 'input window, operand 10, single buffered']
    #allocation16 [shape = 's32[1]{0}', space=sflag, size = 0x4, scoped, tag = 'scoped memory for decoder_block_forward.1']
    #allocation17 [shape = 'u8[8192]{0}', space=vmem, size = 0x2000, scoped, tag = 'input window, operand 11, single buffered']
    #allocation18 [shape = 'u8[8192]{0}', space=vmem, size = 0x2000, scoped, tag = 'input window, operand 12, single buffered']
    #allocation19 [shape = 's32[1]{0}', space=sflag, size = 0x4, scoped, tag = 'scoped memory for decoder_block_forward.1']
    #allocation20 [shape = 'u8[8192]{0}', space=vmem, size = 0x2000, scoped, tag = 'input window, operand 13, single buffered']
    #allocation21 [shape = 'u8[8192]{0}', space=vmem, size = 0x2000, scoped, tag = 'input window, operand 14, single buffered']
    #allocation22 [shape = 's32[1]{0}', space=sflag, size = 0x4, scoped, tag = 'scoped memory for decoder_block_forward.1']
    #allocation23 [shape = 'u8[512]{0}', space=vmem, size = 0x400, scoped, tag = 'input window, operand 15, single buffered']
    #allocation24 [shape = 'u8[512]{0}', space=vmem, size = 0x400, scoped, tag = 'input window, operand 16, single buffered']
    #allocation25 [shape = 's32[1]{0}', space=sflag, size = 0x4, scoped, tag = 'scoped memory for decoder_block_forward.1']
    #allocation26 [shape = 'u8[8192]{0}', space=vmem, size = 0x2000, scoped, tag = 'input window, operand 17, single buffered']
    #allocation27 [shape = 'u8[512]{0}', space=vmem, size = 0x400, scoped, tag = 'input window, operand 18, single buffered']
    #allocation28 [shape = 's32[1]{0}', space=sflag, size = 0x4, scoped, tag = 'scoped memory for decoder_block_forward.1']
    #allocation29 [shape = 'u8[512]{0}', space=vmem, size = 0x400, scoped, tag = 'input window, operand 20, single buffered']
    #allocation30 [shape = 'u8[8192]{0}', space=vmem, size = 0x2000, scoped, tag = 'output window, operand 0']
    %26 = vsyncpa [#allocation7], 0
    %27 = vsyncpa [#allocation10], 0
    %28 = vsyncpa [#allocation13], 0
    %29 = vsyncpa [#allocation16], 0
    %30 = vsyncpa [#allocation19], 0
    %31 = vsyncpa [#allocation22], 0
    %32 = vsyncpa [#allocation25], 0
    %33 = vsyncpa [#allocation28], 0
    %34 = vsyncpa [#allocation8], 0
    %s35 = scalar_lea.sflag [#allocation8], 1
    %36 = vsyncpa %s35, 0
    loop: start=0, step=1, limit=4
    $region2: #{decoder_block_forward.1} parent=1 // loop_pre_header
      _
    $region3: #{decoder_block_forward.1} parent=1 // loop_header
      %s38 = sphi 0, %s42
      %p39 = scmp.ge.s32.totalorder %s38, 4
      %s45 = sphi 0, %s57
      %s46 = sphi 0, %s53
      %s47 = sphi 0, %s45
      %s48 = sphi 0, %s46
      %s49 = sphi 0, %s47
      %s50 = sphi 0, %s48
      %s60 = sphi 0, %s62
      %s63 = sphi 0, %s60
      %s64 = sphi 0, %s63
      %s80 = sphi 0, %s64
      %s88 = sphi 0, %s90
      %s91 = sphi 0, %s88
      %s92 = sphi 0, %s91
      %s108 = sphi 0, %s92
      %s114 = sphi 0, %s116
      %s117 = sphi 0, %s114
      %s118 = sphi 0, %s117
      %s134 = sphi 0, %s118
      %s138 = sphi 0, %s138
      %s140 = sphi 0, %s138
      %s141 = sphi 0, %s140
      %s155 = sphi 0, %s141
      %s159 = sphi 0, %s159
      %s161 = sphi 0, %s159
      %s162 = sphi 0, %s161
      %s176 = sphi 0, %s162
      %s180 = sphi 0, %s180
      %s182 = sphi 0, %s180
      %s183 = sphi 0, %s182
      %s197 = sphi 0, %s183
      %s201 = sphi 0, %s201
      %s203 = sphi 0, %s201
      %s204 = sphi 0, %s203
      %s218 = sphi 0, %s204
      %s222 = sphi 0, %s222
      %s224 = sphi 0, %s222
      %s225 = sphi 0, %s224
      %s239 = sphi 0, %s225
      %s243 = sphi 0, %s243
      %s245 = sphi 0, %s243
      %s246 = sphi 0, %s245
      %s260 = sphi 0, %s246
      %s264 = sphi 0, %s264
      %s266 = sphi 0, %s264
      %s267 = sphi 0, %s266
      %s281 = sphi 0, %s267
      %s285 = sphi 0, %s285
      %s287 = sphi 0, %s285
      %s288 = sphi 0, %s287
      %s302 = sphi 0, %s288
      %s306 = sphi 0, %s306
      %s308 = sphi 0, %s306
      %s309 = sphi 0, %s308
      %s323 = sphi 0, %s309
      %s327 = sphi 0, %s327
      %s329 = sphi 0, %s327
      %s330 = sphi 0, %s329
      %s344 = sphi 0, %s330
      %s348 = sphi 0, %s348
      %s350 = sphi 0, %s348
      %s351 = sphi 0, %s350
      %s365 = sphi 0, %s351
      %s369 = sphi 0, %s369
      %s371 = sphi 0, %s369
      %s372 = sphi 0, %s371
      %s386 = sphi 0, %s372
      %s390 = sphi 0, %s390
      %s392 = sphi 0, %s390
      %s393 = sphi 0, %s392
      %s407 = sphi 0, %s393
      %s411 = sphi 0, %s411
      %s413 = sphi 0, %s411
      %s414 = sphi 0, %s413
      %s428 = sphi 0, %s414
      %s432 = sphi 0, %s432
      %s434 = sphi 0, %s432
      %s435 = sphi 0, %s434
      %s449 = sphi 0, %s435
      %s453 = sphi 0, %s453
      %s455 = sphi 0, %s453
      %s456 = sphi 0, %s455
      %s470 = sphi 0, %s456
      %s474 = sphi 0, %s474
      %s476 = sphi 0, %s474
      %s477 = sphi 0, %s476
      %s491 = sphi 0, %s477
      %s495 = sphi 0, %s495
      %s497 = sphi 0, %s495
      %s498 = sphi 0, %s497
      %s512 = sphi 0, %s498
      %s520 = sphi 0, %s522
      %s523 = sphi 0, %s520
      %s524 = sphi 0, %s523
      %s540 = sphi 0, %s524
    $region4: #{decoder_block_forward.1} parent=1 // loop_header_branch
      %41 = sbr.rel (%p39) target = $region8
    $region5: #{decoder_block_forward.1} parent=1 // loop_body
      %s43 = ssub.s32 %s38, 1
      %s44 = ssub.s32 %s38, 2
      %s51 = sadd.s32 1, %s46
      %p52 = scmp.ge.s32.totalorder %s51, 1
      %s53 = scalar_select %p52, 0, %s51
      %s54 = sadd.s32 1, %s45
      %s55 = scalar_select %p52, %s54, %s45
      %p56 = scmp.ge.s32.totalorder %s55, 2
      %s57 = scalar_select %p56, 0, %s55
      %s58 = ssub.s32 %s45, %s57
      %p59 = scmp.eq.s32.totalorder %s58, 0
      %s61 = sadd.s32 %s60, 1
      %s62 = scalar_select %p59, %s60, %s61
      %p65 = pneg %p59
      %p66 = scmp.eq.s32.totalorder %s38, 1
      %p67 = por %p65, %p66
      %p68 = scmp.ne.s32.totalorder %s60, %s63
      %p69 = scmp.eq.s32.totalorder %s38, 0
      %p70 = por %p68, %p69
      %p71 = scmp.ne.s32.totalorder %s60, %s63
      %p72 = scmp.eq.s32.totalorder %s43, 1
      %p73 = por %p71, %p72
      %p74 = scmp.ne.s32.totalorder %s63, %s64
      %p75 = scmp.eq.s32.totalorder %s43, 0
      %p76 = por %p74, %p75
      %p77 = scmp.ne.s32.totalorder %s63, %s64
      %p78 = scmp.eq.s32.totalorder %s44, 1
      %p79 = por %p77, %p78
      %p81 = scmp.ne.s32.totalorder %s64, %s80
      %p82 = scmp.eq.s32.totalorder %s44, 0
      %p83 = por %p81, %p82
      %s84 = ssub.s32 %s45, %s57
      %s85 = ssub.s32 %s46, %s53
      %s86 = sor.u32 %s84, %s85
      %p87 = scmp.eq.s32.totalorder %s86, 0
      %s89 = sadd.s32 %s88, 1
      %s90 = scalar_select %p87, %s88, %s89
      %p93 = pneg %p87
      %p94 = scmp.eq.s32.totalorder %s38, 1
      %p95 = por %p93, %p94
      %p96 = scmp.ne.s32.totalorder %s88, %s91
      %p97 = scmp.eq.s32.totalorder %s38, 0
      %p98 = por %p96, %p97
      %p99 = scmp.ne.s32.totalorder %s88, %s91
      %p100 = scmp.eq.s32.totalorder %s43, 1
      %p101 = por %p99, %p100
      %p102 = scmp.ne.s32.totalorder %s91, %s92
      %p103 = scmp.eq.s32.totalorder %s43, 0
      %p104 = por %p102, %p103
      %p105 = scmp.ne.s32.totalorder %s91, %s92
      %p106 = scmp.eq.s32.totalorder %s44, 1
      %p107 = por %p105, %p106
      %p109 = scmp.ne.s32.totalorder %s92, %s108
      %p110 = scmp.eq.s32.totalorder %s44, 0
      %p111 = por %p109, %p110
      %s112 = ssub.s32 %s45, %s57
      %p113 = scmp.eq.s32.totalorder %s112, 0
      %s115 = sadd.s32 %s114, 1
      %s116 = scalar_select %p113, %s114, %s115
      %p119 = pneg %p113
      %p120 = scmp.eq.s32.totalorder %s38, 1
      %p121 = por %p119, %p120
      %p122 = scmp.ne.s32.totalorder %s114, %s117
      %p123 = scmp.eq.s32.totalorder %s38, 0
      %p124 = por %p122, %p123
      %p125 = scmp.ne.s32.totalorder %s114, %s117
      %p126 = scmp.eq.s32.totalorder %s43, 1
      %p127 = por %p125, %p126
      %p128 = scmp.ne.s32.totalorder %s117, %s118
      %p129 = scmp.eq.s32.totalorder %s43, 0
      %p130 = por %p128, %p129
      %p131 = scmp.ne.s32.totalorder %s117, %s118
      %p132 = scmp.eq.s32.totalorder %s44, 1
      %p133 = por %p131, %p132
      %p135 = scmp.ne.s32.totalorder %s118, %s134
      %p136 = scmp.eq.s32.totalorder %s44, 0
      %p137 = por %p135, %p136
      %s139 = sadd.s32 %s138, 1
      %p142 = scmp.eq.s32.totalorder %s38, 1
      %p143 = scmp.ne.s32.totalorder %s138, %s140
      %p144 = scmp.eq.s32.totalorder %s38, 0
      %p145 = por %p143, %p144
      %p146 = scmp.ne.s32.totalorder %s138, %s140
      %p147 = scmp.eq.s32.totalorder %s43, 1
      %p148 = por %p146, %p147
      %p149 = scmp.ne.s32.totalorder %s140, %s141
      %p150 = scmp.eq.s32.totalorder %s43, 0
      %p151 = por %p149, %p150
      %p152 = scmp.ne.s32.totalorder %s140, %s141
      %p153 = scmp.eq.s32.totalorder %s44, 1
      %p154 = por %p152, %p153
      %p156 = scmp.ne.s32.totalorder %s141, %s155
      %p157 = scmp.eq.s32.totalorder %s44, 0
      %p158 = por %p156, %p157
      %s160 = sadd.s32 %s159, 1
      %p163 = scmp.eq.s32.totalorder %s38, 1
      %p164 = scmp.ne.s32.totalorder %s159, %s161
      %p165 = scmp.eq.s32.totalorder %s38, 0
      %p166 = por %p164, %p165
      %p167 = scmp.ne.s32.totalorder %s159, %s161
      %p168 = scmp.eq.s32.totalorder %s43, 1
      %p169 = por %p167, %p168
      %p170 = scmp.ne.s32.totalorder %s161, %s162
      %p171 = scmp.eq.s32.totalorder %s43, 0
      %p172 = por %p170, %p171
      %p173 = scmp.ne.s32.totalorder %s161, %s162
      %p174 = scmp.eq.s32.totalorder %s44, 1
      %p175 = por %p173, %p174
      %p177 = scmp.ne.s32.totalorder %s162, %s176
      %p178 = scmp.eq.s32.totalorder %s44, 0
      %p179 = por %p177, %p178
      %s181 = sadd.s32 %s180, 1
      %p184 = scmp.eq.s32.totalorder %s38, 1
      %p185 = scmp.ne.s32.totalorder %s180, %s182
      %p186 = scmp.eq.s32.totalorder %s38, 0
      %p187 = por %p185, %p186
      %p188 = scmp.ne.s32.totalorder %s180, %s182
      %p189 = scmp.eq.s32.totalorder %s43, 1
      %p190 = por %p188, %p189
      %p191 = scmp.ne.s32.totalorder %s182, %s183
      %p192 = scmp.eq.s32.totalorder %s43, 0
      %p193 = por %p191, %p192
      %p194 = scmp.ne.s32.totalorder %s182, %s183
      %p195 = scmp.eq.s32.totalorder %s44, 1
      %p196 = por %p194, %p195
      %p198 = scmp.ne.s32.totalorder %s183, %s197
      %p199 = scmp.eq.s32.totalorder %s44, 0
      %p200 = por %p198, %p199
      %s202 = sadd.s32 %s201, 1
      %p205 = scmp.eq.s32.totalorder %s38, 1
      %p206 = scmp.ne.s32.totalorder %s201, %s203
      %p207 = scmp.eq.s32.totalorder %s38, 0
      %p208 = por %p206, %p207
      %p209 = scmp.ne.s32.totalorder %s201, %s203
      %p210 = scmp.eq.s32.totalorder %s43, 1
      %p211 = por %p209, %p210
      %p212 = scmp.ne.s32.totalorder %s203, %s204
      %p213 = scmp.eq.s32.totalorder %s43, 0
      %p214 = por %p212, %p213
      %p215 = scmp.ne.s32.totalorder %s203, %s204
      %p216 = scmp.eq.s32.totalorder %s44, 1
      %p217 = por %p215, %p216
      %p219 = scmp.ne.s32.totalorder %s204, %s218
      %p220 = scmp.eq.s32.totalorder %s44, 0
      %p221 = por %p219, %p220
      %s223 = sadd.s32 %s222, 1
      %p226 = scmp.eq.s32.totalorder %s38, 1
      %p227 = scmp.ne.s32.totalorder %s222, %s224
      %p228 = scmp.eq.s32.totalorder %s38, 0
      %p229 = por %p227, %p228
      %p230 = scmp.ne.s32.totalorder %s222, %s224
      %p231 = scmp.eq.s32.totalorder %s43, 1
      %p232 = por %p230, %p231
      %p233 = scmp.ne.s32.totalorder %s224, %s225
      %p234 = scmp.eq.s32.totalorder %s43, 0
      %p235 = por %p233, %p234
      %p236 = scmp.ne.s32.totalorder %s224, %s225
      %p237 = scmp.eq.s32.totalorder %s44, 1
      %p238 = por %p236, %p237
      %p240 = scmp.ne.s32.totalorder %s225, %s239
      %p241 = scmp.eq.s32.totalorder %s44, 0
      %p242 = por %p240, %p241
      %s244 = sadd.s32 %s243, 1
      %p247 = scmp.eq.s32.totalorder %s38, 1
      %p248 = scmp.ne.s32.totalorder %s243, %s245
      %p249 = scmp.eq.s32.totalorder %s38, 0
      %p250 = por %p248, %p249
      %p251 = scmp.ne.s32.totalorder %s243, %s245
      %p252 = scmp.eq.s32.totalorder %s43, 1
      %p253 = por %p251, %p252
      %p254 = scmp.ne.s32.totalorder %s245, %s246
      %p255 = scmp.eq.s32.totalorder %s43, 0
      %p256 = por %p254, %p255
      %p257 = scmp.ne.s32.totalorder %s245, %s246
      %p258 = scmp.eq.s32.totalorder %s44, 1
      %p259 = por %p257, %p258
      %p261 = scmp.ne.s32.totalorder %s246, %s260
      %p262 = scmp.eq.s32.totalorder %s44, 0
      %p263 = por %p261, %p262
      %s265 = sadd.s32 %s264, 1
      %p268 = scmp.eq.s32.totalorder %s38, 1
      %p269 = scmp.ne.s32.totalorder %s264, %s266
      %p270 = scmp.eq.s32.totalorder %s38, 0
      %p271 = por %p269, %p270
      %p272 = scmp.ne.s32.totalorder %s264, %s266
      %p273 = scmp.eq.s32.totalorder %s43, 1
      %p274 = por %p272, %p273
      %p275 = scmp.ne.s32.totalorder %s266, %s267
      %p276 = scmp.eq.s32.totalorder %s43, 0
      %p277 = por %p275, %p276
      %p278 = scmp.ne.s32.totalorder %s266, %s267
      %p279 = scmp.eq.s32.totalorder %s44, 1
      %p280 = por %p278, %p279
      %p282 = scmp.ne.s32.totalorder %s267, %s281
      %p283 = scmp.eq.s32.totalorder %s44, 0
      %p284 = por %p282, %p283
      %s286 = sadd.s32 %s285, 1
      %p289 = scmp.eq.s32.totalorder %s38, 1
      %p290 = scmp.ne.s32.totalorder %s285, %s287
      %p291 = scmp.eq.s32.totalorder %s38, 0
      %p292 = por %p290, %p291
      %p293 = scmp.ne.s32.totalorder %s285, %s287
      %p294 = scmp.eq.s32.totalorder %s43, 1
      %p295 = por %p293, %p294
      %p296 = scmp.ne.s32.totalorder %s287, %s288
      %p297 = scmp.eq.s32.totalorder %s43, 0
      %p298 = por %p296, %p297
      %p299 = scmp.ne.s32.totalorder %s287, %s288
      %p300 = scmp.eq.s32.totalorder %s44, 1
      %p301 = por %p299, %p300
      %p303 = scmp.ne.s32.totalorder %s288, %s302
      %p304 = scmp.eq.s32.totalorder %s44, 0
      %p305 = por %p303, %p304
      %s307 = sadd.s32 %s306, 1
      %p310 = scmp.eq.s32.totalorder %s38, 1
      %p311 = scmp.ne.s32.totalorder %s306, %s308
      %p312 = scmp.eq.s32.totalorder %s38, 0
      %p313 = por %p311, %p312
      %p314 = scmp.ne.s32.totalorder %s306, %s308
      %p315 = scmp.eq.s32.totalorder %s43, 1
      %p316 = por %p314, %p315
      %p317 = scmp.ne.s32.totalorder %s308, %s309
      %p318 = scmp.eq.s32.totalorder %s43, 0
      %p319 = por %p317, %p318
      %p320 = scmp.ne.s32.totalorder %s308, %s309
      %p321 = scmp.eq.s32.totalorder %s44, 1
      %p322 = por %p320, %p321
      %p324 = scmp.ne.s32.totalorder %s309, %s323
      %p325 = scmp.eq.s32.totalorder %s44, 0
      %p326 = por %p324, %p325
      %s328 = sadd.s32 %s327, 1
      %p331 = scmp.eq.s32.totalorder %s38, 1
      %p332 = scmp.ne.s32.totalorder %s327, %s329
      %p333 = scmp.eq.s32.totalorder %s38, 0
      %p334 = por %p332, %p333
      %p335 = scmp.ne.s32.totalorder %s327, %s329
      %p336 = scmp.eq.s32.totalorder %s43, 1
      %p337 = por %p335, %p336
      %p338 = scmp.ne.s32.totalorder %s329, %s330
      %p339 = scmp.eq.s32.totalorder %s43, 0
      %p340 = por %p338, %p339
      %p341 = scmp.ne.s32.totalorder %s329, %s330
      %p342 = scmp.eq.s32.totalorder %s44, 1
      %p343 = por %p341, %p342
      %p345 = scmp.ne.s32.totalorder %s330, %s344
      %p346 = scmp.eq.s32.totalorder %s44, 0
      %p347 = por %p345, %p346
      %s349 = sadd.s32 %s348, 1
      %p352 = scmp.eq.s32.totalorder %s38, 1
      %p353 = scmp.ne.s32.totalorder %s348, %s350
      %p354 = scmp.eq.s32.totalorder %s38, 0
      %p355 = por %p353, %p354
      %p356 = scmp.ne.s32.totalorder %s348, %s350
      %p357 = scmp.eq.s32.totalorder %s43, 1
      %p358 = por %p356, %p357
      %p359 = scmp.ne.s32.totalorder %s350, %s351
      %p360 = scmp.eq.s32.totalorder %s43, 0
      %p361 = por %p359, %p360
      %p362 = scmp.ne.s32.totalorder %s350, %s351
      %p363 = scmp.eq.s32.totalorder %s44, 1
      %p364 = por %p362, %p363
      %p366 = scmp.ne.s32.totalorder %s351, %s365
      %p367 = scmp.eq.s32.totalorder %s44, 0
      %p368 = por %p366, %p367
      %s370 = sadd.s32 %s369, 1
      %p373 = scmp.eq.s32.totalorder %s38, 1
      %p374 = scmp.ne.s32.totalorder %s369, %s371
      %p375 = scmp.eq.s32.totalorder %s38, 0
      %p376 = por %p374, %p375
      %p377 = scmp.ne.s32.totalorder %s369, %s371
      %p378 = scmp.eq.s32.totalorder %s43, 1
      %p379 = por %p377, %p378
      %p380 = scmp.ne.s32.totalorder %s371, %s372
      %p381 = scmp.eq.s32.totalorder %s43, 0
      %p382 = por %p380, %p381
      %p383 = scmp.ne.s32.totalorder %s371, %s372
      %p384 = scmp.eq.s32.totalorder %s44, 1
      %p385 = por %p383, %p384
      %p387 = scmp.ne.s32.totalorder %s372, %s386
      %p388 = scmp.eq.s32.totalorder %s44, 0
      %p389 = por %p387, %p388
      %s391 = sadd.s32 %s390, 1
      %p394 = scmp.eq.s32.totalorder %s38, 1
      %p395 = scmp.ne.s32.totalorder %s390, %s392
      %p396 = scmp.eq.s32.totalorder %s38, 0
      %p397 = por %p395, %p396
      %p398 = scmp.ne.s32.totalorder %s390, %s392
      %p399 = scmp.eq.s32.totalorder %s43, 1
      %p400 = por %p398, %p399
      %p401 = scmp.ne.s32.totalorder %s392, %s393
      %p402 = scmp.eq.s32.totalorder %s43, 0
      %p403 = por %p401, %p402
      %p404 = scmp.ne.s32.totalorder %s392, %s393
      %p405 = scmp.eq.s32.totalorder %s44, 1
      %p406 = por %p404, %p405
      %p408 = scmp.ne.s32.totalorder %s393, %s407
      %p409 = scmp.eq.s32.totalorder %s44, 0
      %p410 = por %p408, %p409
      %s412 = sadd.s32 %s411, 1
      %p415 = scmp.eq.s32.totalorder %s38, 1
      %p416 = scmp.ne.s32.totalorder %s411, %s413
      %p417 = scmp.eq.s32.totalorder %s38, 0
      %p418 = por %p416, %p417
      %p419 = scmp.ne.s32.totalorder %s411, %s413
      %p420 = scmp.eq.s32.totalorder %s43, 1
      %p421 = por %p419, %p420
      %p422 = scmp.ne.s32.totalorder %s413, %s414
      %p423 = scmp.eq.s32.totalorder %s43, 0
      %p424 = por %p422, %p423
      %p425 = scmp.ne.s32.totalorder %s413, %s414
      %p426 = scmp.eq.s32.totalorder %s44, 1
      %p427 = por %p425, %p426
      %p429 = scmp.ne.s32.totalorder %s414, %s428
      %p430 = scmp.eq.s32.totalorder %s44, 0
      %p431 = por %p429, %p430
      %s433 = sadd.s32 %s432, 1
      %p436 = scmp.eq.s32.totalorder %s38, 1
      %p437 = scmp.ne.s32.totalorder %s432, %s434
      %p438 = scmp.eq.s32.totalorder %s38, 0
      %p439 = por %p437, %p438
      %p440 = scmp.ne.s32.totalorder %s432, %s434
      %p441 = scmp.eq.s32.totalorder %s43, 1
      %p442 = por %p440, %p441
      %p443 = scmp.ne.s32.totalorder %s434, %s435
      %p444 = scmp.eq.s32.totalorder %s43, 0
      %p445 = por %p443, %p444
      %p446 = scmp.ne.s32.totalorder %s434, %s435
      %p447 = scmp.eq.s32.totalorder %s44, 1
      %p448 = por %p446, %p447
      %p450 = scmp.ne.s32.totalorder %s435, %s449
      %p451 = scmp.eq.s32.totalorder %s44, 0
      %p452 = por %p450, %p451
      %s454 = sadd.s32 %s453, 1
      %p457 = scmp.eq.s32.totalorder %s38, 1
      %p458 = scmp.ne.s32.totalorder %s453, %s455
      %p459 = scmp.eq.s32.totalorder %s38, 0
      %p460 = por %p458, %p459
      %p461 = scmp.ne.s32.totalorder %s453, %s455
      %p462 = scmp.eq.s32.totalorder %s43, 1
      %p463 = por %p461, %p462
      %p464 = scmp.ne.s32.totalorder %s455, %s456
      %p465 = scmp.eq.s32.totalorder %s43, 0
      %p466 = por %p464, %p465
      %p467 = scmp.ne.s32.totalorder %s455, %s456
      %p468 = scmp.eq.s32.totalorder %s44, 1
      %p469 = por %p467, %p468
      %p471 = scmp.ne.s32.totalorder %s456, %s470
      %p472 = scmp.eq.s32.totalorder %s44, 0
      %p473 = por %p471, %p472
      %s475 = sadd.s32 %s474, 1
      %p478 = scmp.eq.s32.totalorder %s38, 1
      %p479 = scmp.ne.s32.totalorder %s474, %s476
      %p480 = scmp.eq.s32.totalorder %s38, 0
      %p481 = por %p479, %p480
      %p482 = scmp.ne.s32.totalorder %s474, %s476
      %p483 = scmp.eq.s32.totalorder %s43, 1
      %p484 = por %p482, %p483
      %p485 = scmp.ne.s32.totalorder %s476, %s477
      %p486 = scmp.eq.s32.totalorder %s43, 0
      %p487 = por %p485, %p486
      %p488 = scmp.ne.s32.totalorder %s476, %s477
      %p489 = scmp.eq.s32.totalorder %s44, 1
      %p490 = por %p488, %p489
      %p492 = scmp.ne.s32.totalorder %s477, %s491
      %p493 = scmp.eq.s32.totalorder %s44, 0
      %p494 = por %p492, %p493
      %s496 = sadd.s32 %s495, 1
      %p499 = scmp.eq.s32.totalorder %s38, 1
      %p500 = scmp.ne.s32.totalorder %s495, %s497
      %p501 = scmp.eq.s32.totalorder %s38, 0
      %p502 = por %p500, %p501
      %p503 = scmp.ne.s32.totalorder %s495, %s497
      %p504 = scmp.eq.s32.totalorder %s43, 1
      %p505 = por %p503, %p504
      %p506 = scmp.ne.s32.totalorder %s497, %s498
      %p507 = scmp.eq.s32.totalorder %s43, 0
      %p508 = por %p506, %p507
      %p509 = scmp.ne.s32.totalorder %s497, %s498
      %p510 = scmp.eq.s32.totalorder %s44, 1
      %p511 = por %p509, %p510
      %p513 = scmp.ne.s32.totalorder %s498, %s512
      %p514 = scmp.eq.s32.totalorder %s44, 0
      %p515 = por %p513, %p514
      %s516 = ssub.s32 %s45, %s57
      %s517 = ssub.s32 %s46, %s53
      %s518 = sor.u32 %s516, %s517
      %p519 = scmp.eq.s32.totalorder %s518, 0
      %s521 = sadd.s32 %s520, 1
      %s522 = scalar_select %p519, %s520, %s521
      %p525 = pneg %p519
      %p526 = scmp.eq.s32.totalorder %s38, 1
      %p527 = por %p525, %p526
      %p528 = scmp.ne.s32.totalorder %s520, %s523
      %p529 = scmp.eq.s32.totalorder %s38, 0
      %p530 = por %p528, %p529
      %p531 = scmp.ne.s32.totalorder %s520, %s523
      %p532 = scmp.eq.s32.totalorder %s43, 1
      %p533 = por %p531, %p532
      %p534 = scmp.ne.s32.totalorder %s523, %s524
      %p535 = scmp.eq.s32.totalorder %s43, 0
      %p536 = por %p534, %p535
      %p537 = scmp.ne.s32.totalorder %s523, %s524
      %p538 = scmp.eq.s32.totalorder %s44, 1
      %p539 = por %p537, %p538
      %p541 = scmp.ne.s32.totalorder %s524, %s540
      %p542 = scmp.eq.s32.totalorder %s44, 0
      %p543 = por %p541, %p542
      %p544 = scmp.le.s32.totalorder 1, %s38
      %p545 = scmp.lt.s32.totalorder %s38, 3
      %p546 = pnand %p544, %p545
      %p547 = pneg %p546
      // Predicated region
      $region9: #{decoder_block_forward.1} parent=5 // pred_check
        _
      $region10: #{decoder_block_forward.1} parent=5 // pred_check_branch
        %549 = sbr.rel (%p546) target = $region12
      $region11: #{decoder_block_forward.1} parent=5 // pred_region
        %s550 = ssub.s32 %s38, 1
        // Predicated region
        $region13: #{decoder_block_forward.1} parent=11 // pred_check
          %p551 = pneg %p151
        $region14: #{decoder_block_forward.1} parent=11 // pred_check_branch
          %553 = sbr.rel (%p551) target = $region16
        $region15: #{decoder_block_forward.1} parent=11 // pred_region
          %s555 = ssub.s32 16, 16
          %556 = vsyncadd [#allocation7], %s555
          %s558 = sshll.u32 [#allocation6], 4
          %s559 = int_to_ptr.vmem [resolvable:$true] %s558
          %561 = dma.hbm_to_vmem [thread:$0]  %s3, 16, %s559, [#allocation7]
        $region16: #{decoder_block_forward.1} parent=11 // pred_fallthru
          _
        // Predicated region
        $region17: #{decoder_block_forward.1} parent=11 // pred_check
          %p562 = pneg %p172
        $region18: #{decoder_block_forward.1} parent=11 // pred_check_branch
          %564 = sbr.rel (%p562) target = $region20
        $region19: #{decoder_block_forward.1} parent=11 // pred_region
          %s566 = ssub.s32 16, 16
          %567 = vsyncadd [#allocation10], %s566
          %s569 = sshll.u32 [#allocation9], 4
          %s570 = int_to_ptr.vmem [resolvable:$true] %s569
          %572 = dma.hbm_to_vmem [thread:$0]  %s4, 16, %s570, [#allocation10]
        $region20: #{decoder_block_forward.1} parent=11 // pred_fallthru
          _
        // Predicated region
        $region21: #{decoder_block_forward.1} parent=11 // pred_check
          %p573 = pneg %p193
        $region22: #{decoder_block_forward.1} parent=11 // pred_check_branch
          %575 = sbr.rel (%p573) target = $region24
        $region23: #{decoder_block_forward.1} parent=11 // pred_region
          _
        $region24: #{decoder_block_forward.1} parent=11 // pred_fallthru
          _
        // Predicated region
        $region25: #{decoder_block_forward.1} parent=11 // pred_check
          %p576 = pneg %p214
        $region26: #{decoder_block_forward.1} parent=11 // pred_check_branch
          %578 = sbr.rel (%p576) target = $region28
        $region27: #{decoder_block_forward.1} parent=11 // pred_region
          %s580 = ssub.s32 256, 256
          %581 = vsyncadd [#allocation10], %s580
          %s582 = sshll.u32 [#allocation11], 4
          %s583 = int_to_ptr.vmem [resolvable:$true] %s582
          %588 = dma.hbm_to_vmem [thread:$0]  %s6, 256, %s583, [#allocation10], 64, 64, 4
        $region28: #{decoder_block_forward.1} parent=11 // pred_fallthru
          _
        // Predicated region
        $region29: #{decoder_block_forward.1} parent=11 // pred_check
          %p589 = pneg %p235
        $region30: #{decoder_block_forward.1} parent=11 // pred_check_branch
          %591 = sbr.rel (%p589) target = $region32
        $region31: #{decoder_block_forward.1} parent=11 // pred_region
          _
        $region32: #{decoder_block_forward.1} parent=11 // pred_fallthru
          _
        // Predicated region
        $region33: #{decoder_block_forward.1} parent=11 // pred_check
          %p592 = pneg %p256
        $region34: #{decoder_block_forward.1} parent=11 // pred_check_branch
          %594 = sbr.rel (%p592) target = $region36
        $region35: #{decoder_block_forward.1} parent=11 // pred_region
          %s596 = ssub.s32 256, 256
          %597 = vsyncadd [#allocation13], %s596
          %s598 = sshll.u32 [#allocation12], 4
          %s599 = int_to_ptr.vmem [resolvable:$true] %s598
          %604 = dma.hbm_to_vmem [thread:$0]  %s8, 256, %s599, [#allocation13], 64, 64, 4
        $region36: #{decoder_block_forward.1} parent=11 // pred_fallthru
          _
        // Predicated region
        $region37: #{decoder_block_forward.1} parent=11 // pred_check
          %p605 = pneg %p277
        $region38: #{decoder_block_forward.1} parent=11 // pred_check_branch
          %607 = sbr.rel (%p605) target = $region40
        $region39: #{decoder_block_forward.1} parent=11 // pred_region
          %s609 = ssub.s32 16, 16
          %610 = vsyncadd [#allocation13], %s609
          %s612 = sshll.u32 [#allocation14], 4
          %s613 = int_to_ptr.vmem [resolvable:$true] %s612
          %615 = dma.hbm_to_vmem [thread:$0]  %s9, 16, %s613, [#allocation13]
        $region40: #{decoder_block_forward.1} parent=11 // pred_fallthru
          _
        // Predicated region
        $region41: #{decoder_block_forward.1} parent=11 // pred_check
          %p616 = pneg %p298
        $region42: #{decoder_block_forward.1} parent=11 // pred_check_branch
          %618 = sbr.rel (%p616) target = $region44
        $region43: #{decoder_block_forward.1} parent=11 // pred_region
          %s620 = ssub.s32 16, 16
          %621 = vsyncadd [#allocation16], %s620
          %s623 = sshll.u32 [#allocation15], 4
          %s624 = int_to_ptr.vmem [resolvable:$true] %s623
          %626 = dma.hbm_to_vmem [thread:$0]  %s10, 16, %s624, [#allocation16]
        $region44: #{decoder_block_forward.1} parent=11 // pred_fallthru
          _
        // Predicated region
        $region45: #{decoder_block_forward.1} parent=11 // pred_check
          %p627 = pneg %p319
        $region46: #{decoder_block_forward.1} parent=11 // pred_check_branch
          %629 = sbr.rel (%p627) target = $region48
        $region47: #{decoder_block_forward.1} parent=11 // pred_region
          %s631 = ssub.s32 256, 256
          %632 = vsyncadd [#allocation16], %s631
          %s633 = sshll.u32 [#allocation17], 4
          %s634 = int_to_ptr.vmem [resolvable:$true] %s633
          %639 = dma.hbm_to_vmem [thread:$0]  %s11, 256, %s634, [#allocation16], 64, 64, 4
        $region48: #{decoder_block_forward.1} parent=11 // pred_fallthru
          _
        // Predicated region
        $region49: #{decoder_block_forward.1} parent=11 // pred_check
          %p640 = pneg %p340
        $region50: #{decoder_block_forward.1} parent=11 // pred_check_branch
          %642 = sbr.rel (%p640) target = $region52
        $region51: #{decoder_block_forward.1} parent=11 // pred_region
          %s644 = ssub.s32 256, 256
          %645 = vsyncadd [#allocation19], %s644
          %s646 = sshll.u32 [#allocation18], 4
          %s647 = int_to_ptr.vmem [resolvable:$true] %s646
          %652 = dma.hbm_to_vmem [thread:$0]  %s12, 256, %s647, [#allocation19], 64, 64, 4
        $region52: #{decoder_block_forward.1} parent=11 // pred_fallthru
          _
        // Predicated region
        $region53: #{decoder_block_forward.1} parent=11 // pred_check
          %p653 = pneg %p361
        $region54: #{decoder_block_forward.1} parent=11 // pred_check_branch
          %655 = sbr.rel (%p653) target = $region56
        $region55: #{decoder_block_forward.1} parent=11 // pred_region
          %s657 = ssub.s32 256, 256
          %658 = vsyncadd [#allocation19], %s657
          %s659 = sshll.u32 [#allocation20], 4
          %s660 = int_to_ptr.vmem [resolvable:$true] %s659
          %665 = dma.hbm_to_vmem [thread:$0]  %s13, 256, %s660, [#allocation19], 64, 64, 4
        $region56: #{decoder_block_forward.1} parent=11 // pred_fallthru
          _
        // Predicated region
        $region57: #{decoder_block_forward.1} parent=11 // pred_check
          %p666 = pneg %p382
        $region58: #{decoder_block_forward.1} parent=11 // pred_check_branch
          %668 = sbr.rel (%p666) target = $region60
        $region59: #{decoder_block_forward.1} parent=11 // pred_region
          %s670 = ssub.s32 256, 256
          %671 = vsyncadd [#allocation22], %s670
          %s672 = sshll.u32 [#allocation21], 4
          %s673 = int_to_ptr.vmem [resolvable:$true] %s672
          %678 = dma.hbm_to_vmem [thread:$0]  %s14, 256, %s673, [#allocation22], 64, 64, 4
        $region60: #{decoder_block_forward.1} parent=11 // pred_fallthru
          _
        // Predicated region
        $region61: #{decoder_block_forward.1} parent=11 // pred_check
          %p679 = pneg %p403
        $region62: #{decoder_block_forward.1} parent=11 // pred_check_branch
          %681 = sbr.rel (%p679) target = $region64
        $region63: #{decoder_block_forward.1} parent=11 // pred_region
          %s683 = ssub.s32 16, 16
          %684 = vsyncadd [#allocation22], %s683
          %s686 = sshll.u32 [#allocation23], 4
          %s687 = int_to_ptr.vmem [resolvable:$true] %s686
          %689 = dma.hbm_to_vmem [thread:$0]  %s15, 16, %s687, [#allocation22]
        $region64: #{decoder_block_forward.1} parent=11 // pred_fallthru
          _
        // Predicated region
        $region65: #{decoder_block_forward.1} parent=11 // pred_check
          %p690 = pneg %p424
        $region66: #{decoder_block_forward.1} parent=11 // pred_check_branch
          %692 = sbr.rel (%p690) target = $region68
        $region67: #{decoder_block_forward.1} parent=11 // pred_region
          %s694 = ssub.s32 16, 16
          %695 = vsyncadd [#allocation25], %s694
          %s697 = sshll.u32 [#allocation24], 4
          %s698 = int_to_ptr.vmem [resolvable:$true] %s697
          %700 = dma.hbm_to_vmem [thread:$0]  %s16, 16, %s698, [#allocation25]
        $region68: #{decoder_block_forward.1} parent=11 // pred_fallthru
          _
        // Predicated region
        $region69: #{decoder_block_forward.1} parent=11 // pred_check
          %p701 = pneg %p445
        $region70: #{decoder_block_forward.1} parent=11 // pred_check_branch
          %703 = sbr.rel (%p701) target = $region72
        $region71: #{decoder_block_forward.1} parent=11 // pred_region
          %s705 = ssub.s32 256, 256
          %706 = vsyncadd [#allocation25], %s705
          %s707 = sshll.u32 [#allocation26], 4
          %s708 = int_to_ptr.vmem [resolvable:$true] %s707
          %713 = dma.hbm_to_vmem [thread:$0]  %s17, 256, %s708, [#allocation25], 64, 64, 4
        $region72: #{decoder_block_forward.1} parent=11 // pred_fallthru
          _
        // Predicated region
        $region73: #{decoder_block_forward.1} parent=11 // pred_check
          %p714 = pneg %p466
        $region74: #{decoder_block_forward.1} parent=11 // pred_check_branch
          %716 = sbr.rel (%p714) target = $region76
        $region75: #{decoder_block_forward.1} parent=11 // pred_region
          %s718 = ssub.s32 16, 16
          %719 = vsyncadd [#allocation28], %s718
          %s721 = sshll.u32 [#allocation27], 4
          %s722 = int_to_ptr.vmem [resolvable:$true] %s721
          %724 = dma.hbm_to_vmem [thread:$0]  %s18, 16, %s722, [#allocation28]
        $region76: #{decoder_block_forward.1} parent=11 // pred_fallthru
          _
        // Predicated region
        $region77: #{decoder_block_forward.1} parent=11 // pred_check
          %p725 = pneg %p487
        $region78: #{decoder_block_forward.1} parent=11 // pred_check_branch
          %727 = sbr.rel (%p725) target = $region80
        $region79: #{decoder_block_forward.1} parent=11 // pred_region
          _
        $region80: #{decoder_block_forward.1} parent=11 // pred_fallthru
          _
        // Predicated region
        $region81: #{decoder_block_forward.1} parent=11 // pred_check
          %p728 = pneg %p508
        $region82: #{decoder_block_forward.1} parent=11 // pred_check_branch
          %730 = sbr.rel (%p728) target = $region84
        $region83: #{decoder_block_forward.1} parent=11 // pred_region
          %s732 = ssub.s32 16, 16
          %733 = vsyncadd [#allocation28], %s732
          %s735 = sshll.u32 [#allocation29], 4
          %s736 = int_to_ptr.vmem [resolvable:$true] %s735
          %738 = dma.hbm_to_vmem [thread:$0]  %s20, 16, %s736, [#allocation28]
        $region84: #{decoder_block_forward.1} parent=11 // pred_fallthru
          _
      $region12: #{decoder_block_forward.1} parent=5 // pred_fallthru
        _
      %p739 = scmp.lt.s32.totalorder %s38, 2
      // Predicated region
      $region85: #{decoder_block_forward.1} parent=5 // pred_check
        %p740 = pneg %p739
      $region86: #{decoder_block_forward.1} parent=5 // pred_check_branch
        %742 = sbr.rel (%p740) target = $region88
      $region87: #{decoder_block_forward.1} parent=5 // pred_region
        // Predicated region
        $region89: #{decoder_block_forward.1} parent=87 // pred_check
          %p743 = pneg %p70
        $region90: #{decoder_block_forward.1} parent=87 // pred_check_branch
          %745 = sbr.rel (%p743) target = $region92
        $region91: #{decoder_block_forward.1} parent=87 // pred_region
          %p746 = scmp.lt.s32.totalorder %s45, 1
          %s747 = scalar_select %p746, %s45, 1
          %s748 = smul.addr %s747, 8
          %s749 = scalar_lea.vmem %s0, %s748
        $region92: #{decoder_block_forward.1} parent=87 // pred_fallthru
          _
        // Predicated region
        $region93: #{decoder_block_forward.1} parent=87 // pred_check
          %p750 = pneg %p98
        $region94: #{decoder_block_forward.1} parent=87 // pred_check_branch
          %752 = sbr.rel (%p750) target = $region96
        $region95: #{decoder_block_forward.1} parent=87 // pred_region
          %p753 = scmp.lt.s32.totalorder %s45, 1
          %s754 = scalar_select %p753, %s45, 1
          %p755 = scmp.lt.s32.totalorder %s46, 0
          %s756 = scalar_select %p755, %s46, 0
          %s757 = sadd.s32 %s756, %s754
          %s758 = smul.addr %s757, 8
          %s759 = scalar_lea.vmem %s1, %s758
        $region96: #{decoder_block_forward.1} parent=87 // pred_fallthru
          _
        // Predicated region
        $region97: #{decoder_block_forward.1} parent=87 // pred_check
          %p760 = pneg %p124
        $region98: #{decoder_block_forward.1} parent=87 // pred_check_branch
          %762 = sbr.rel (%p760) target = $region100
        $region99: #{decoder_block_forward.1} parent=87 // pred_region
          %p763 = scmp.lt.s32.totalorder %s45, 1
          %s764 = scalar_select %p763, %s45, 1
          %s765 = smul.addr %s764, 8
          %s766 = scalar_lea.vmem %s2, %s765
        $region100: #{decoder_block_forward.1} parent=87 // pred_fallthru
          _
      $region88: #{decoder_block_forward.1} parent=5 // pred_fallthru
        _
      %p767 = scmp.le.s32.totalorder 1, %s38
      %p768 = scmp.lt.s32.totalorder %s38, 3
      %p769 = pnand %p767, %p768
      %p770 = pneg %p769
      // Predicated region
      $region101: #{decoder_block_forward.1} parent=5 // pred_check
        _
      $region102: #{decoder_block_forward.1} parent=5 // pred_check_branch
        %772 = sbr.rel (%p769) target = $region104
      $region103: #{decoder_block_forward.1} parent=5 // pred_region
        %s773 = ssub.s32 %s38, 1
        // Predicated region
        $region105: #{decoder_block_forward.1} parent=103 // pred_check
          %p774 = pneg %p151
        $region106: #{decoder_block_forward.1} parent=103 // pred_check_branch
          %776 = sbr.rel (%p774) target = $region108
        $region107: #{decoder_block_forward.1} parent=103 // pred_region
          %777 = dma.done [#allocation7], 16
        $region108: #{decoder_block_forward.1} parent=103 // pred_fallthru
          _
        // Predicated region
        $region109: #{decoder_block_forward.1} parent=103 // pred_check
          %p778 = pneg %p172
        $region110: #{decoder_block_forward.1} parent=103 // pred_check_branch
          %780 = sbr.rel (%p778) target = $region112
        $region111: #{decoder_block_forward.1} parent=103 // pred_region
          %781 = dma.done [#allocation10], 16
        $region112: #{decoder_block_forward.1} parent=103 // pred_fallthru
          _
        // Predicated region
        $region113: #{decoder_block_forward.1} parent=103 // pred_check
          %p782 = pneg %p214
        $region114: #{decoder_block_forward.1} parent=103 // pred_check_branch
          %784 = sbr.rel (%p782) target = $region116
        $region115: #{decoder_block_forward.1} parent=103 // pred_region
          %785 = dma.done [#allocation10], 256
        $region116: #{decoder_block_forward.1} parent=103 // pred_fallthru
          _
        // Predicated region
        $region117: #{decoder_block_forward.1} parent=103 // pred_check
          %p786 = pneg %p256
        $region118: #{decoder_block_forward.1} parent=103 // pred_check_branch
          %788 = sbr.rel (%p786) target = $region120
        $region119: #{decoder_block_forward.1} parent=103 // pred_region
          %789 = dma.done [#allocation13], 256
        $region120: #{decoder_block_forward.1} parent=103 // pred_fallthru
          _
        // Predicated region
        $region121: #{decoder_block_forward.1} parent=103 // pred_check
          %p790 = pneg %p277
        $region122: #{decoder_block_forward.1} parent=103 // pred_check_branch
          %792 = sbr.rel (%p790) target = $region124
        $region123: #{decoder_block_forward.1} parent=103 // pred_region
          %793 = dma.done [#allocation13], 16
        $region124: #{decoder_block_forward.1} parent=103 // pred_fallthru
          _
        // Predicated region
        $region125: #{decoder_block_forward.1} parent=103 // pred_check
          %p794 = pneg %p298
        $region126: #{decoder_block_forward.1} parent=103 // pred_check_branch
          %796 = sbr.rel (%p794) target = $region128
        $region127: #{decoder_block_forward.1} parent=103 // pred_region
          %797 = dma.done [#allocation16], 16
        $region128: #{decoder_block_forward.1} parent=103 // pred_fallthru
          _
        // Predicated region
        $region129: #{decoder_block_forward.1} parent=103 // pred_check
          %p798 = pneg %p319
        $region130: #{decoder_block_forward.1} parent=103 // pred_check_branch
          %800 = sbr.rel (%p798) target = $region132
        $region131: #{decoder_block_forward.1} parent=103 // pred_region
          %801 = dma.done [#allocation16], 256
        $region132: #{decoder_block_forward.1} parent=103 // pred_fallthru
          _
        // Predicated region
        $region133: #{decoder_block_forward.1} parent=103 // pred_check
          %p802 = pneg %p340
        $region134: #{decoder_block_forward.1} parent=103 // pred_check_branch
          %804 = sbr.rel (%p802) target = $region136
        $region135: #{decoder_block_forward.1} parent=103 // pred_region
          %805 = dma.done [#allocation19], 256
        $region136: #{decoder_block_forward.1} parent=103 // pred_fallthru
          _
        // Predicated region
        $region137: #{decoder_block_forward.1} parent=103 // pred_check
          %p806 = pneg %p361
        $region138: #{decoder_block_forward.1} parent=103 // pred_check_branch
          %808 = sbr.rel (%p806) target = $region140
        $region139: #{decoder_block_forward.1} parent=103 // pred_region
          %809 = dma.done [#allocation19], 256
        $region140: #{decoder_block_forward.1} parent=103 // pred_fallthru
          _
        // Predicated region
        $region141: #{decoder_block_forward.1} parent=103 // pred_check
          %p810 = pneg %p382
        $region142: #{decoder_block_forward.1} parent=103 // pred_check_branch
          %812 = sbr.rel (%p810) target = $region144
        $region143: #{decoder_block_forward.1} parent=103 // pred_region
          %813 = dma.done [#allocation22], 256
        $region144: #{decoder_block_forward.1} parent=103 // pred_fallthru
          _
        // Predicated region
        $region145: #{decoder_block_forward.1} parent=103 // pred_check
          %p814 = pneg %p403
        $region146: #{decoder_block_forward.1} parent=103 // pred_check_branch
          %816 = sbr.rel (%p814) target = $region148
        $region147: #{decoder_block_forward.1} parent=103 // pred_region
          %817 = dma.done [#allocation22], 16
        $region148: #{decoder_block_forward.1} parent=103 // pred_fallthru
          _
        // Predicated region
        $region149: #{decoder_block_forward.1} parent=103 // pred_check
          %p818 = pneg %p424
        $region150: #{decoder_block_forward.1} parent=103 // pred_check_branch
          %820 = sbr.rel (%p818) target = $region152
        $region151: #{decoder_block_forward.1} parent=103 // pred_region
          %821 = dma.done [#allocation25], 16
        $region152: #{decoder_block_forward.1} parent=103 // pred_fallthru
          _
        // Predicated region
        $region153: #{decoder_block_forward.1} parent=103 // pred_check
          %p822 = pneg %p445
        $region154: #{decoder_block_forward.1} parent=103 // pred_check_branch
          %824 = sbr.rel (%p822) target = $region156
        $region155: #{decoder_block_forward.1} parent=103 // pred_region
          %825 = dma.done [#allocation25], 256
        $region156: #{decoder_block_forward.1} parent=103 // pred_fallthru
          _
        // Predicated region
        $region157: #{decoder_block_forward.1} parent=103 // pred_check
          %p826 = pneg %p466
        $region158: #{decoder_block_forward.1} parent=103 // pred_check_branch
          %828 = sbr.rel (%p826) target = $region160
        $region159: #{decoder_block_forward.1} parent=103 // pred_region
          %829 = dma.done [#allocation28], 16
        $region160: #{decoder_block_forward.1} parent=103 // pred_fallthru
          _
        // Predicated region
        $region161: #{decoder_block_forward.1} parent=103 // pred_check
          %p830 = pneg %p508
        $region162: #{decoder_block_forward.1} parent=103 // pred_check_branch
          %832 = sbr.rel (%p830) target = $region164
        $region163: #{decoder_block_forward.1} parent=103 // pred_region
          %833 = dma.done [#allocation28], 16
        $region164: #{decoder_block_forward.1} parent=103 // pred_fallthru
          _
        %p834 = scmp.lt.s32.totalorder %s47, 1
        %s835 = scalar_select %p834, %s47, 1
        %s836 = smul.addr %s835, 8
        %s837 = scalar_lea.vmem %s0, %s836
        %p838 = pneg %p76
        %p839 = pneg %p73
        %p840 = scmp.lt.s32.totalorder %s47, 1
        %s841 = scalar_select %p840, %s47, 1
        %p842 = scmp.lt.s32.totalorder %s48, 0
        %s843 = scalar_select %p842, %s48, 0
        %s844 = sadd.s32 %s843, %s841
        %s845 = smul.addr %s844, 8
        %s846 = scalar_lea.vmem %s1, %s845
        %p847 = pneg %p104
        %p848 = pneg %p101
        %p849 = scmp.lt.s32.totalorder %s47, 1
        %s850 = scalar_select %p849, %s47, 1
        %s851 = smul.addr %s850, 8
        %s852 = scalar_lea.vmem %s2, %s851
        %p853 = pneg %p130
        %p854 = pneg %p127
        %p855 = pneg %p151
        %p856 = pneg %p148
        %p857 = pneg %p172
        %p858 = pneg %p169
        %p859 = pneg %p193
        %p860 = pneg %p190
        %p861 = pneg %p214
        %p862 = pneg %p211
        %p863 = pneg %p235
        %p864 = pneg %p232
        %p865 = pneg %p256
        %p866 = pneg %p253
        %p867 = pneg %p277
        %p868 = pneg %p274
        %p869 = pneg %p298
        %p870 = pneg %p295
        %p871 = pneg %p319
        %p872 = pneg %p316
        %p873 = pneg %p340
        %p874 = pneg %p337
        %p875 = pneg %p361
        %p876 = pneg %p358
        %p877 = pneg %p382
        %p878 = pneg %p379
        %p879 = pneg %p403
        %p880 = pneg %p400
        %p881 = pneg %p424
        %p882 = pneg %p421
        %p883 = pneg %p445
        %p884 = pneg %p442
        %p885 = pneg %p466
        %p886 = pneg %p463
        %p887 = pneg %p487
        %p888 = pneg %p484
        %p889 = pneg %p508
        %p890 = pneg %p505
        %p891 = pneg %p536
        %p892 = pneg %p533
        %s893 = sand.u32 %s523, 1
        %s894 = scalar_lea.sflag [#allocation8], %s893
        %s895 = sand.u32 %s523, 1
        %s896 = smul.addr %s895, 8
        %s897 = scalar_lea.vmem [#allocation30], %s896
        %p898 = scmp.lt.s32.totalorder %s47, 1
        %s899 = scalar_select %p898, %s47, 1
        %s900 = smul.addr %s899, 8
        %s901 = scalar_lea.vmem %s0, %s900
        %p902 = scmp.lt.s32.totalorder %s47, 1
        %s903 = scalar_select %p902, %s47, 1
        %p904 = scmp.lt.s32.totalorder %s48, 0
        %s905 = scalar_select %p904, %s48, 0
        %s906 = sadd.s32 %s905, %s903
        %s907 = smul.addr %s906, 8
        %s908 = scalar_lea.vmem %s1, %s907
        %p909 = scmp.lt.s32.totalorder %s47, 1
        %s910 = scalar_select %p909, %s47, 1
        %s911 = smul.addr %s910, 8
        %s912 = scalar_lea.vmem %s2, %s911
        %p914 = scmp.eq.s32.totalorder %s48, 0
        // Predicated region
        $region165: #{decoder_block_forward.1} parent=103 // pred_check
          %p915 = pneg %p914
        $region166: #{decoder_block_forward.1} parent=103 // pred_check_branch
          %917 = sbr.rel (%p915) target = $region168
        $region167: #{decoder_block_forward.1} parent=103 // pred_region
          %v918 = vld [vmem:[%s901] sm:$0xff]
          %v919 = vld [vmem:[#allocation6] sm:$0x1]
          %v920 = vld [vmem:[#allocation9] sm:$0x1]
          %vm921 = vcmask 261120
          %v922 = vsel %vm921, %v918, 0.0
          %923 = vadd.xlane.f32.xlu0 %v922
          %v924 = vpop.xlane.xlu0 %923
          %v925 = vrcp.pop 32.0
          %v926 = vmul.f32 %v924, %v925
          %v927 = vsub.f32 %v918, %v926
          %v928 = vmul.f32 %v927, %v927
          %v929 = vsel %vm921, %v928, 0.0
          %930 = vadd.xlane.f32.xlu0 %v929
          %v931 = vpop.xlane.xlu0 %930
          %v932 = vmul.f32 %v931, 0.032258064
          %v933 = vrsqrt.pop %v932
          %v934 = vmul.f32 %v932, %v933
          %vm935 = vcmp.eq.f32.partialorder %v932, inf
          %v936 = vsel %vm935, %v932, %v934
          %vm937 = vcmp.eq.f32.partialorder %v932, 0.0
          %v938 = vand.u32 %v932, 2147483648
          %v939 = vsel %vm937, %v938, %v936
          %v940 = vadd.f32 %v939, 1e-06
          %v941 = vrcp.pop %v940
          %v942 = vmul.f32 1.0, %v941
          %v943 = vmul.f32 %v927, %v942
          %v945 = vlaneseq
          %v946 = vshrl.u32 %v945, 7
          %v947 = vsub.s32 0, %v946
          %v948 = vrot.slane %v919, %v947
          %v950 = vmul.f32 %v948, %v943
          %v952 = vlaneseq
          %v953 = vshrl.u32 %v952, 7
          %v954 = vsub.s32 0, %v953
          %v955 = vrot.slane %v920, %v954
          %v957 = vadd.f32 %v950, %v955
          %v958 = vpack.c.bf16 %v957, %v957
          %v959 = vld [vmem:[#allocation11] sm:$0xf]
          %v960 = vld [vmem:[#allocation11 + $0x4] sm:$0xf]
          %v961 = vld [vmem:[#allocation11 + $0x8] sm:$0xf]
          %v962 = vld [vmem:[#allocation11 + $0xc] sm:$0xf]
          %v967 = vunpack.c.l.b16 %v959
          %v968 = vunpack.c.l.b16 %v960
          %v969 = vunpack.c.l.b16 %v961
          %v970 = vunpack.c.l.b16 %v962
          %v971 = vpack.c.b16 %v968, %v967
          %v972 = vpack.c.b16 %v970, %v969
          %v976 = vsel %vm921, %v958, 0
          %978 = vmatprep.subr.bf16.mxu0 0
          %979 = vmatpush1.bf16.msra.mxu0 0
          %980 = vmatprep.subr.bf16.mxu0 0
          %981 = vmatpush1.bf16.msra.mxu0 0
          %982 = vmatprep.subr.bf16.mxu0 0
          %983 = vmatpush1.bf16.msra.mxu0 0
          %984 = vmatprep.subr.bf16.mxu0 0
          %985 = vmatpush1.bf16.msra.mxu0 0
          %986 = vmatprep.subr.bf16.mxu0 0
          %987 = vmatpush1.bf16.msra.mxu0 0
          %988 = vmatprep.subr.bf16.mxu0 0
          %989 = vmatpush1.bf16.msra.mxu0 0
          %990 = vmatprep.subr.bf16.mxu0 0
          %991 = vmatpush1.bf16.msra.mxu0 %v972
          %992 = vmatprep.subr.bf16.mxu0 0
          %993 = vmatpush1.bf16.msra.mxu0 %v971
          %994 = vmatprep.subr.bf16.mxu0 0
          %995 = vmatpush2.bf16.msra.mxu0 0
          %996 = vmatprep.subr.bf16.mxu0 0
          %997 = vmatpush2.bf16.msra.mxu0 0
          %998 = vmatprep.subr.bf16.mxu0 0
          %999 = vmatpush2.bf16.msra.mxu0 0
          %1000 = vmatprep.subr.bf16.mxu0 0
          %1001 = vmatpush2.bf16.msra.mxu0 0
          %1002 = vmatprep.subr.bf16.mxu0 0
          %1003 = vmatpush2.bf16.msra.mxu0 0
          %1004 = vmatprep.subr.bf16.mxu0 0
          %1005 = vmatpush2.bf16.msra.mxu0 0
          %1006 = vmatprep.subr.bf16.mxu0 0
          %1007 = vmatpush2.bf16.msra.mxu0 0
          %1008 = vmatprep.subr.bf16.mxu0 0
          %1009 = vmatpush2.bf16.msra.mxu0 0
          %1010 = vmatprep.mubr.bf16.mxu0 0
          %1011 = vmatmul.mubr.bf16.gmra.mxu0 %v976
          %v1012 = vpop.f32.mrf.mxu0
          %v1013 = vadd.f32 0.0, %v1012
          %v1014 = vpop.f32.mrf.mxu0
          %v1015 = vpop.f32.mrf.mxu0
          %v1016 = vpop.f32.mrf.mxu0
          %1017 = vdwg.mxu0
          %v1018 = vpack.c.bf16 %v1013, %v1013
          %vm1019 = vcmask 257024
          %1020 = vst.msk [vmem:[#allocation2] sm:$0xf] %vm1019, %v1018
          %v1021 = vld [vmem:[%s7] sm:$0xf]
          %v1022 = vld [vmem:[%s7 + $0x4] sm:$0xf]
          %v1023 = vld [vmem:[%s7 + $0x8] sm:$0xf]
          %v1024 = vld [vmem:[%s7 + $0xc] sm:$0xf]
          %v1029 = vunpack.c.l.b16 %v1021
          %v1030 = vunpack.c.l.b16 %v1022
          %v1031 = vunpack.c.l.b16 %v1023
          %v1032 = vunpack.c.l.b16 %v1024
          %v1033 = vpack.c.b16 %v1030, %v1029
          %v1034 = vpack.c.b16 %v1032, %v1031
          %1037 = vmatprep.subr.bf16.mxu0 0
          %1038 = vmatpush1.bf16.msra.mxu0 0
          %1039 = vmatprep.subr.bf16.mxu0 0
          %1040 = vmatpush1.bf16.msra.mxu0 0
          %1041 = vmatprep.subr.bf16.mxu0 0
          %1042 = vmatpush1.bf16.msra.mxu0 0
          %1043 = vmatprep.subr.bf16.mxu0 0
          %1044 = vmatpush1.bf16.msra.mxu0 0
          %1045 = vmatprep.subr.bf16.mxu0 0
          %1046 = vmatpush1.bf16.msra.mxu0 0
          %1047 = vmatprep.subr.bf16.mxu0 0
          %1048 = vmatpush1.bf16.msra.mxu0 0
          %1049 = vmatprep.subr.bf16.mxu0 0
          %1050 = vmatpush1.bf16.msra.mxu0 %v1034
          %1051 = vmatprep.subr.bf16.mxu0 0
          %1052 = vmatpush1.bf16.msra.mxu0 %v1033
          %1053 = vmatprep.subr.bf16.mxu0 0
          %1054 = vmatpush2.bf16.msra.mxu0 0
          %1055 = vmatprep.subr.bf16.mxu0 0
          %1056 = vmatpush2.bf16.msra.mxu0 0
          %1057 = vmatprep.subr.bf16.mxu0 0
          %1058 = vmatpush2.bf16.msra.mxu0 0
          %1059 = vmatprep.subr.bf16.mxu0 0
          %1060 = vmatpush2.bf16.msra.mxu0 0
          %1061 = vmatprep.subr.bf16.mxu0 0
          %1062 = vmatpush2.bf16.msra.mxu0 0
          %1063 = vmatprep.subr.bf16.mxu0 0
          %1064 = vmatpush2.bf16.msra.mxu0 0
          %1065 = vmatprep.subr.bf16.mxu0 0
          %1066 = vmatpush2.bf16.msra.mxu0 0
          %1067 = vmatprep.subr.bf16.mxu0 0
          %1068 = vmatpush2.bf16.msra.mxu0 0
          %1069 = vmatprep.mubr.bf16.mxu0 0
          %1070 = vmatmul.mubr.bf16.gmra.mxu0 %v976
          %v1071 = vpop.f32.mrf.mxu0
          %v1072 = vadd.f32 0.0, %v1071
          %v1073 = vpop.f32.mrf.mxu0
          %v1074 = vpop.f32.mrf.mxu0
          %v1075 = vpop.f32.mrf.mxu0
          %1076 = vdwg.mxu0
          %v1077 = vpack.c.bf16 %v1072, %v1072
          %1078 = vst.msk [vmem:[#allocation3] sm:$0xf] %vm1019, %v1077
          %v1079 = vld [vmem:[%s912] sm:$0xff]
          %v1080 = vpack.c.bf16 %v1079, %v1079
          %v1081 = vld [vmem:[#allocation18] sm:$0xf]
          %v1082 = vld [vmem:[#allocation18 + $0x4] sm:$0xf]
          %v1083 = vld [vmem:[#allocation18 + $0x8] sm:$0xf]
          %v1084 = vld [vmem:[#allocation18 + $0xc] sm:$0xf]
          %v1089 = vunpack.c.l.b16 %v1081
          %v1090 = vunpack.c.l.b16 %v1082
          %v1091 = vunpack.c.l.b16 %v1083
          %v1092 = vunpack.c.l.b16 %v1084
          %v1093 = vpack.c.b16 %v1090, %v1089
          %v1094 = vpack.c.b16 %v1092, %v1091
          %v1098 = vsel %vm921, %v1080, 0
          %1100 = vmatprep.subr.bf16.mxu0 0
          %1101 = vmatpush1.bf16.msra.mxu0 0
          %1102 = vmatprep.subr.bf16.mxu0 0
          %1103 = vmatpush1.bf16.msra.mxu0 0
          %1104 = vmatprep.subr.bf16.mxu0 0
          %1105 = vmatpush1.bf16.msra.mxu0 0
          %1106 = vmatprep.subr.bf16.mxu0 0
          %1107 = vmatpush1.bf16.msra.mxu0 0
          %1108 = vmatprep.subr.bf16.mxu0 0
          %1109 = vmatpush1.bf16.msra.mxu0 0
          %1110 = vmatprep.subr.bf16.mxu0 0
          %1111 = vmatpush1.bf16.msra.mxu0 0
          %1112 = vmatprep.subr.bf16.mxu0 0
          %1113 = vmatpush1.bf16.msra.mxu0 %v1094
          %1114 = vmatprep.subr.bf16.mxu0 0
          %1115 = vmatpush1.bf16.msra.mxu0 %v1093
          %1116 = vmatprep.subr.bf16.mxu0 0
          %1117 = vmatpush2.bf16.msra.mxu0 0
          %1118 = vmatprep.subr.bf16.mxu0 0
          %1119 = vmatpush2.bf16.msra.mxu0 0
          %1120 = vmatprep.subr.bf16.mxu0 0
          %1121 = vmatpush2.bf16.msra.mxu0 0
          %1122 = vmatprep.subr.bf16.mxu0 0
          %1123 = vmatpush2.bf16.msra.mxu0 0
          %1124 = vmatprep.subr.bf16.mxu0 0
          %1125 = vmatpush2.bf16.msra.mxu0 0
          %1126 = vmatprep.subr.bf16.mxu0 0
          %1127 = vmatpush2.bf16.msra.mxu0 0
          %1128 = vmatprep.subr.bf16.mxu0 0
          %1129 = vmatpush2.bf16.msra.mxu0 0
          %1130 = vmatprep.subr.bf16.mxu0 0
          %1131 = vmatpush2.bf16.msra.mxu0 0
          %1132 = vmatprep.mubr.bf16.mxu0 0
          %1133 = vmatmul.mubr.bf16.gmra.mxu0 %v1098
          %v1134 = vpop.f32.mrf.mxu0
          %v1135 = vadd.f32 0.0, %v1134
          %v1136 = vpop.f32.mrf.mxu0
          %v1137 = vpop.f32.mrf.mxu0
          %v1138 = vpop.f32.mrf.mxu0
          %1139 = vdwg.mxu0
          %v1140 = vpack.c.bf16 %v1135, %v1135
          %1141 = vst.msk [vmem:[#allocation4] sm:$0xf] %vm1019, %v1140
          %v1142 = vld [vmem:[#allocation20] sm:$0xf]
          %v1143 = vld [vmem:[#allocation20 + $0x4] sm:$0xf]
          %v1144 = vld [vmem:[#allocation20 + $0x8] sm:$0xf]
          %v1145 = vld [vmem:[#allocation20 + $0xc] sm:$0xf]
          %v1150 = vunpack.c.l.b16 %v1142
          %v1151 = vunpack.c.l.b16 %v1143
          %v1152 = vunpack.c.l.b16 %v1144
          %v1153 = vunpack.c.l.b16 %v1145
          %v1154 = vpack.c.b16 %v1151, %v1150
          %v1155 = vpack.c.b16 %v1153, %v1152
          %1158 = vmatprep.subr.bf16.mxu0 0
          %1159 = vmatpush1.bf16.msra.mxu0 0
          %1160 = vmatprep.subr.bf16.mxu0 0
          %1161 = vmatpush1.bf16.msra.mxu0 0
          %1162 = vmatprep.subr.bf16.mxu0 0
          %1163 = vmatpush1.bf16.msra.mxu0 0
          %1164 = vmatprep.subr.bf16.mxu0 0
          %1165 = vmatpush1.bf16.msra.mxu0 0
          %1166 = vmatprep.subr.bf16.mxu0 0
          %1167 = vmatpush1.bf16.msra.mxu0 0
          %1168 = vmatprep.subr.bf16.mxu0 0
          %1169 = vmatpush1.bf16.msra.mxu0 0
          %1170 = vmatprep.subr.bf16.mxu0 0
          %1171 = vmatpush1.bf16.msra.mxu0 %v1155
          %1172 = vmatprep.subr.bf16.mxu0 0
          %1173 = vmatpush1.bf16.msra.mxu0 %v1154
          %1174 = vmatprep.subr.bf16.mxu0 0
          %1175 = vmatpush2.bf16.msra.mxu0 0
          %1176 = vmatprep.subr.bf16.mxu0 0
          %1177 = vmatpush2.bf16.msra.mxu0 0
          %1178 = vmatprep.subr.bf16.mxu0 0
          %1179 = vmatpush2.bf16.msra.mxu0 0
          %1180 = vmatprep.subr.bf16.mxu0 0
          %1181 = vmatpush2.bf16.msra.mxu0 0
          %1182 = vmatprep.subr.bf16.mxu0 0
          %1183 = vmatpush2.bf16.msra.mxu0 0
          %1184 = vmatprep.subr.bf16.mxu0 0
          %1185 = vmatpush2.bf16.msra.mxu0 0
          %1186 = vmatprep.subr.bf16.mxu0 0
          %1187 = vmatpush2.bf16.msra.mxu0 0
          %1188 = vmatprep.subr.bf16.mxu0 0
          %1189 = vmatpush2.bf16.msra.mxu0 0
          %1190 = vmatprep.mubr.bf16.mxu0 0
          %1191 = vmatmul.mubr.bf16.gmra.mxu0 %v1098
          %v1192 = vpop.f32.mrf.mxu0
          %v1193 = vadd.f32 0.0, %v1192
          %v1194 = vpop.f32.mrf.mxu0
          %v1195 = vpop.f32.mrf.mxu0
          %v1196 = vpop.f32.mrf.mxu0
          %1197 = vdwg.mxu0
          %v1198 = vpack.c.bf16 %v1193, %v1193
          %1199 = vst.msk [vmem:[#allocation5] sm:$0xf] %vm1019, %v1198
        $region168: #{decoder_block_forward.1} parent=103 // pred_fallthru
          _
        %v1200 = vld [vmem:[%s908] sm:$0xff]
        %v1201 = vld [vmem:[#allocation6] sm:$0x1]
        %v1202 = vld [vmem:[#allocation9] sm:$0x1]
        %vm1203 = vcmask 261120
        %v1204 = vsel %vm1203, %v1200, 0.0
        %1205 = vadd.xlane.f32.xlu0 %v1204
        %v1206 = vpop.xlane.xlu0 %1205
        %v1207 = vrcp.pop 32.0
        %v1208 = vmul.f32 %v1206, %v1207
        %v1209 = vsub.f32 %v1200, %v1208
        %v1210 = vmul.f32 %v1209, %v1209
        %v1211 = vsel %vm1203, %v1210, 0.0
        %1212 = vadd.xlane.f32.xlu0 %v1211
        %v1213 = vpop.xlane.xlu0 %1212
        %v1214 = vmul.f32 %v1213, 0.032258064
        %v1215 = vrsqrt.pop %v1214
        %v1216 = vmul.f32 %v1214, %v1215
        %vm1217 = vcmp.eq.f32.partialorder %v1214, inf
        %v1218 = vsel %vm1217, %v1214, %v1216
        %vm1219 = vcmp.eq.f32.partialorder %v1214, 0.0
        %v1220 = vand.u32 %v1214, 2147483648
        %v1221 = vsel %vm1219, %v1220, %v1218
        %v1222 = vadd.f32 %v1221, 1e-06
        %v1223 = vrcp.pop %v1222
        %v1224 = vmul.f32 1.0, %v1223
        %v1225 = vmul.f32 %v1209, %v1224
        %v1227 = vlaneseq
        %v1228 = vshrl.u32 %v1227, 7
        %v1229 = vsub.s32 0, %v1228
        %v1230 = vrot.slane %v1201, %v1229
        %v1232 = vmul.f32 %v1230, %v1225
        %v1234 = vlaneseq
        %v1235 = vshrl.u32 %v1234, 7
        %v1236 = vsub.s32 0, %v1235
        %v1237 = vrot.slane %v1202, %v1236
        %v1239 = vadd.f32 %v1232, %v1237
        %v1240 = vld [vmem:[#allocation2] sm:$0xf]
        %v1241 = vld [vmem:[#allocation3] sm:$0xf]
        %v1242 = vld [vmem:[%s5] sm:$0xf]
        %v1243 = vld [vmem:[%s5 + $0x4] sm:$0xf]
        %v1244 = vld [vmem:[%s5 + $0x8] sm:$0xf]
        %v1245 = vld [vmem:[%s5 + $0xc] sm:$0xf]
        %v1246 = vld [vmem:[#allocation12] sm:$0xf]
        %v1247 = vld [vmem:[#allocation12 + $0x4] sm:$0xf]
        %v1248 = vld [vmem:[#allocation12 + $0x8] sm:$0xf]
        %v1249 = vld [vmem:[#allocation12 + $0xc] sm:$0xf]
        %v1250 = vpack.c.bf16 %v1239, %v1239
        %v1255 = vunpack.c.l.b16 %v1242
        %v1256 = vunpack.c.l.b16 %v1243
        %v1257 = vunpack.c.l.b16 %v1244
        %v1258 = vunpack.c.l.b16 %v1245
        %v1259 = vpack.c.b16 %v1256, %v1255
        %v1260 = vpack.c.b16 %v1258, %v1257
        %v1264 = vsel %vm1203, %v1250, 0
        %1266 = vmatprep.subr.bf16.mxu0 0
        %1267 = vmatpush1.bf16.msra.mxu0 0
        %1268 = vmatprep.subr.bf16.mxu0 0
        %1269 = vmatpush1.bf16.msra.mxu0 0
        %1270 = vmatprep.subr.bf16.mxu0 0
        %1271 = vmatpush1.bf16.msra.mxu0 0
        %1272 = vmatprep.subr.bf16.mxu0 0
        %1273 = vmatpush1.bf16.msra.mxu0 0
        %1274 = vmatprep.subr.bf16.mxu0 0
        %1275 = vmatpush1.bf16.msra.mxu0 0
        %1276 = vmatprep.subr.bf16.mxu0 0
        %1277 = vmatpush1.bf16.msra.mxu0 0
        %1278 = vmatprep.subr.bf16.mxu0 0
        %1279 = vmatpush1.bf16.msra.mxu0 %v1260
        %1280 = vmatprep.subr.bf16.mxu0 0
        %1281 = vmatpush1.bf16.msra.mxu0 %v1259
        %1282 = vmatprep.subr.bf16.mxu0 0
        %1283 = vmatpush2.bf16.msra.mxu0 0
        %1284 = vmatprep.subr.bf16.mxu0 0
        %1285 = vmatpush2.bf16.msra.mxu0 0
        %1286 = vmatprep.subr.bf16.mxu0 0
        %1287 = vmatpush2.bf16.msra.mxu0 0
        %1288 = vmatprep.subr.bf16.mxu0 0
        %1289 = vmatpush2.bf16.msra.mxu0 0
        %1290 = vmatprep.subr.bf16.mxu0 0
        %1291 = vmatpush2.bf16.msra.mxu0 0
        %1292 = vmatprep.subr.bf16.mxu0 0
        %1293 = vmatpush2.bf16.msra.mxu0 0
        %1294 = vmatprep.subr.bf16.mxu0 0
        %1295 = vmatpush2.bf16.msra.mxu0 0
        %1296 = vmatprep.subr.bf16.mxu0 0
        %1297 = vmatpush2.bf16.msra.mxu0 0
        %1298 = vmatprep.mubr.bf16.mxu0 0
        %1299 = vmatmul.mubr.bf16.gmra.mxu0 %v1264
        %v1300 = vpop.f32.mrf.mxu0
        %v1301 = vadd.f32 0.0, %v1300
        %v1302 = vpop.f32.mrf.mxu0
        %v1303 = vpop.f32.mrf.mxu0
        %v1304 = vpop.f32.mrf.mxu0
        %1305 = vdwg.mxu0
        %v1306 = vmul.f32 %v1301, 0.35355338
        %v1307 = vpack.c.bf16 %v1306, %v1306
        %vm1308 = vcmask 64512
        %v1310 = vsel %vm1308, %v1307, 0
        %v1313 = vsel %vm1308, %v1240, 0
        %1315 = vmatprep.subr.bf16.mxu0 0
        %1316 = vmatpush1.bf16.xpose.msra.mxu0 0
        %1317 = vmatprep.subr.bf16.mxu0 0
        %1318 = vmatpush1.bf16.xpose.msra.mxu0 0
        %1319 = vmatprep.subr.bf16.mxu0 0
        %1320 = vmatpush1.bf16.xpose.msra.mxu0 0
        %1321 = vmatprep.subr.bf16.mxu0 0
        %1322 = vmatpush1.bf16.xpose.msra.mxu0 0
        %1323 = vmatprep.subr.bf16.mxu0 0
        %1324 = vmatpush1.bf16.xpose.msra.mxu0 0
        %1325 = vmatprep.subr.bf16.mxu0 0
        %1326 = vmatpush1.bf16.xpose.msra.mxu0 0
        %1327 = vmatprep.subr.bf16.mxu0 0
        %1328 = vmatpush1.bf16.xpose.msra.mxu0 0
        %1329 = vmatprep.subr.bf16.mxu0 0
        %1330 = vmatpush1.bf16.xpose.msra.mxu0 %v1313
        %1331 = vmatprep.subr.bf16.mxu0 0
        %1332 = vmatpush2.bf16.xpose.msra.mxu0 0
        %1333 = vmatprep.subr.bf16.mxu0 0
        %1334 = vmatpush2.bf16.xpose.msra.mxu0 0
        %1335 = vmatprep.subr.bf16.mxu0 0
        %1336 = vmatpush2.bf16.xpose.msra.mxu0 0
        %1337 = vmatprep.subr.bf16.mxu0 0
        %1338 = vmatpush2.bf16.xpose.msra.mxu0 0
        %1339 = vmatprep.subr.bf16.mxu0 0
        %1340 = vmatpush2.bf16.xpose.msra.mxu0 0
        %1341 = vmatprep.subr.bf16.mxu0 0
        %1342 = vmatpush2.bf16.xpose.msra.mxu0 0
        %1343 = vmatprep.subr.bf16.mxu0 0
        %1344 = vmatpush2.bf16.xpose.msra.mxu0 0
        %1345 = vmatprep.subr.bf16.mxu0 0
        %1346 = vmatpush2.bf16.xpose.msra.mxu0 0
        %1347 = vmatprep.mubr.bf16.mxu0 0
        %1348 = vmatmul.mubr.bf16.gmra.mxu0 %v1310
        %v1349 = vpop.f32.mrf.mxu0
        %v1350 = vadd.f32 0.0, %v1349
        %v1351 = vpop.f32.mrf.mxu0
        %v1352 = vpop.f32.mrf.mxu0
        %v1353 = vpop.f32.mrf.mxu0
        %1354 = vdwg.mxu0
        %v1355 = vsel %vm1308, %v1350, -inf
        %1356 = vmax.xlane.f32.xlu0 %v1355
        %v1357 = vpop.xlane.xlu0 %1356
        %v1358 = vsub.f32 %v1350, %v1357
        %v1359 = vmul.f32 %v1358, 1.442695
        %v1360 = vpow.pop %v1359
        %v1361 = vsel %vm1308, %v1360, 0.0
        %1362 = vadd.xlane.f32.xlu0 %v1361
        %v1363 = vpop.xlane.xlu0 %1362
        %v1364 = vrcp.pop %v1363
        %v1365 = vmul.f32 %v1360, %v1364
        %v1366 = vpack.c.bf16 %v1365, %v1365
        %v1368 = vsel %vm1308, %v1366, 0
        %vm1370 = vcmask 1043456
        %v1372 = vsel %vm1370, %v1241, 0
        %1374 = vmatprep.subr.bf16.mxu0 0
        %1375 = vmatpush1.bf16.msra.mxu0 0
        %1376 = vmatprep.subr.bf16.mxu0 0
        %1377 = vmatpush1.bf16.msra.mxu0 0
        %1378 = vmatprep.subr.bf16.mxu0 0
        %1379 = vmatpush1.bf16.msra.mxu0 0
        %1380 = vmatprep.subr.bf16.mxu0 0
        %1381 = vmatpush1.bf16.msra.mxu0 0
        %1382 = vmatprep.subr.bf16.mxu0 0
        %1383 = vmatpush1.bf16.msra.mxu0 0
        %1384 = vmatprep.subr.bf16.mxu0 0
        %1385 = vmatpush1.bf16.msra.mxu0 0
        %1386 = vmatprep.subr.bf16.mxu0 0
        %1387 = vmatpush1.bf16.msra.mxu0 0
        %1388 = vmatprep.subr.bf16.mxu0 0
        %1389 = vmatpush1.bf16.msra.mxu0 %v1372
        %1390 = vmatprep.subr.bf16.mxu0 0
        %1391 = vmatpush2.bf16.msra.mxu0 0
        %1392 = vmatprep.subr.bf16.mxu0 0
        %1393 = vmatpush2.bf16.msra.mxu0 0
        %1394 = vmatprep.subr.bf16.mxu0 0
        %1395 = vmatpush2.bf16.msra.mxu0 0
        %1396 = vmatprep.subr.bf16.mxu0 0
        %1397 = vmatpush2.bf16.msra.mxu0 0
        %1398 = vmatprep.subr.bf16.mxu0 0
        %1399 = vmatpush2.bf16.msra.mxu0 0
        %1400 = vmatprep.subr.bf16.mxu0 0
        %1401 = vmatpush2.bf16.msra.mxu0 0
        %1402 = vmatprep.subr.bf16.mxu0 0
        %1403 = vmatpush2.bf16.msra.mxu0 0
        %1404 = vmatprep.subr.bf16.mxu0 0
        %1405 = vmatpush2.bf16.msra.mxu0 0
        %1406 = vmatprep.mubr.bf16.mxu0 0
        %1407 = vmatmul.mubr.bf16.gmra.mxu0 %v1368
        %v1408 = vpop.f32.mrf.mxu0
        %v1409 = vadd.f32 0.0, %v1408
        %v1410 = vpop.f32.mrf.mxu0
        %v1411 = vpop.f32.mrf.mxu0
        %v1412 = vpop.f32.mrf.mxu0
        %1413 = vdwg.mxu0
        %1415 = vrot.lane.b32.xlu0 %v1307, 120
        %v1416 = vpop.permute.xlu0 %1415
        %v1418 = vunpack.c.l.b16 %v1240
        %v1419 = vpack.c.b16 %v1418, %v1418
        %1420 = vrot.lane.b32.xlu0 %v1419, 120
        %v1421 = vpop.permute.xlu0 %1420
        %v1423 = vsel %vm1308, %v1416, 0
        %v1426 = vsel %vm1308, %v1421, 0
        %1428 = vmatprep.subr.bf16.mxu0 0
        %1429 = vmatpush1.bf16.xpose.msra.mxu0 0
        %1430 = vmatprep.subr.bf16.mxu0 0
        %1431 = vmatpush1.bf16.xpose.msra.mxu0 0
        %1432 = vmatprep.subr.bf16.mxu0 0
        %1433 = vmatpush1.bf16.xpose.msra.mxu0 0
        %1434 = vmatprep.subr.bf16.mxu0 0
        %1435 = vmatpush1.bf16.xpose.msra.mxu0 0
        %1436 = vmatprep.subr.bf16.mxu0 0
        %1437 = vmatpush1.bf16.xpose.msra.mxu0 0
        %1438 = vmatprep.subr.bf16.mxu0 0
        %1439 = vmatpush1.bf16.xpose.msra.mxu0 0
        %1440 = vmatprep.subr.bf16.mxu0 0
        %1441 = vmatpush1.bf16.xpose.msra.mxu0 0
        %1442 = vmatprep.subr.bf16.mxu0 0
        %1443 = vmatpush1.bf16.xpose.msra.mxu0 %v1426
        %1444 = vmatprep.subr.bf16.mxu0 0
        %1445 = vmatpush2.bf16.xpose.msra.mxu0 0
        %1446 = vmatprep.subr.bf16.mxu0 0
        %1447 = vmatpush2.bf16.xpose.msra.mxu0 0
        %1448 = vmatprep.subr.bf16.mxu0 0
        %1449 = vmatpush2.bf16.xpose.msra.mxu0 0
        %1450 = vmatprep.subr.bf16.mxu0 0
        %1451 = vmatpush2.bf16.xpose.msra.mxu0 0
        %1452 = vmatprep.subr.bf16.mxu0 0
        %1453 = vmatpush2.bf16.xpose.msra.mxu0 0
        %1454 = vmatprep.subr.bf16.mxu0 0
        %1455 = vmatpush2.bf16.xpose.msra.mxu0 0
        %1456 = vmatprep.subr.bf16.mxu0 0
        %1457 = vmatpush2.bf16.xpose.msra.mxu0 0
        %1458 = vmatprep.subr.bf16.mxu0 0
        %1459 = vmatpush2.bf16.xpose.msra.mxu0 0
        %1460 = vmatprep.mubr.bf16.mxu0 0
        %1461 = vmatmul.mubr.bf16.gmra.mxu0 %v1423
        %v1462 = vpop.f32.mrf.mxu0
        %v1463 = vadd.f32 0.0, %v1462
        %v1464 = vpop.f32.mrf.mxu0
        %v1465 = vpop.f32.mrf.mxu0
        %v1466 = vpop.f32.mrf.mxu0
        %1467 = vdwg.mxu0
        %v1468 = vsel %vm1308, %v1463, -inf
        %1469 = vmax.xlane.f32.xlu0 %v1468
        %v1470 = vpop.xlane.xlu0 %1469
        %v1471 = vsub.f32 %v1463, %v1470
        %v1472 = vmul.f32 %v1471, 1.442695
        %v1473 = vpow.pop %v1472
        %v1474 = vsel %vm1308, %v1473, 0.0
        %1475 = vadd.xlane.f32.xlu0 %v1474
        %v1476 = vpop.xlane.xlu0 %1475
        %v1477 = vrcp.pop %v1476
        %v1478 = vmul.f32 %v1473, %v1477
        %v1479 = vpack.c.bf16 %v1478, %v1478
        %v1481 = vunpack.c.l.b16 %v1241
        %v1482 = vpack.c.b16 %v1481, %v1481
        %1483 = vrot.lane.b32.xlu0 %v1482, 120
        %v1484 = vpop.permute.xlu0 %1483
        %v1486 = vsel %vm1308, %v1479, 0
        %v1489 = vsel %vm1370, %v1484, 0
        %1491 = vmatprep.subr.bf16.mxu0 0
        %1492 = vmatpush1.bf16.msra.mxu0 0
        %1493 = vmatprep.subr.bf16.mxu0 0
        %1494 = vmatpush1.bf16.msra.mxu0 0
        %1495 = vmatprep.subr.bf16.mxu0 0
        %1496 = vmatpush1.bf16.msra.mxu0 0
        %1497 = vmatprep.subr.bf16.mxu0 0
        %1498 = vmatpush1.bf16.msra.mxu0 0
        %1499 = vmatprep.subr.bf16.mxu0 0
        %1500 = vmatpush1.bf16.msra.mxu0 0
        %1501 = vmatprep.subr.bf16.mxu0 0
        %1502 = vmatpush1.bf16.msra.mxu0 0
        %1503 = vmatprep.subr.bf16.mxu0 0
        %1504 = vmatpush1.bf16.msra.mxu0 0
        %1505 = vmatprep.subr.bf16.mxu0 0
        %1506 = vmatpush1.bf16.msra.mxu0 %v1489
        %1507 = vmatprep.subr.bf16.mxu0 0
        %1508 = vmatpush2.bf16.msra.mxu0 0
        %1509 = vmatprep.subr.bf16.mxu0 0
        %1510 = vmatpush2.bf16.msra.mxu0 0
        %1511 = vmatprep.subr.bf16.mxu0 0
        %1512 = vmatpush2.bf16.msra.mxu0 0
        %1513 = vmatprep.subr.bf16.mxu0 0
        %1514 = vmatpush2.bf16.msra.mxu0 0
        %1515 = vmatprep.subr.bf16.mxu0 0
        %1516 = vmatpush2.bf16.msra.mxu0 0
        %1517 = vmatprep.subr.bf16.mxu0 0
        %1518 = vmatpush2.bf16.msra.mxu0 0
        %1519 = vmatprep.subr.bf16.mxu0 0
        %1520 = vmatpush2.bf16.msra.mxu0 0
        %1521 = vmatprep.subr.bf16.mxu0 0
        %1522 = vmatpush2.bf16.msra.mxu0 0
        %1523 = vmatprep.mubr.bf16.mxu0 0
        %1524 = vmatmul.mubr.bf16.gmra.mxu0 %v1486
        %v1525 = vpop.f32.mrf.mxu0
        %v1526 = vadd.f32 0.0, %v1525
        %v1527 = vpop.f32.mrf.mxu0
        %v1528 = vpop.f32.mrf.mxu0
        %v1529 = vpop.f32.mrf.mxu0
        %1530 = vdwg.mxu0
        %1531 = vrot.lane.b32.xlu0 %v1307, 112
        %v1532 = vpop.permute.xlu0 %1531
        %1533 = vrot.lane.b32.xlu0 %v1419, 112
        %v1534 = vpop.permute.xlu0 %1533
        %v1536 = vsel %vm1308, %v1532, 0
        %v1539 = vsel %vm1308, %v1534, 0
        %1541 = vmatprep.subr.bf16.mxu0 0
        %1542 = vmatpush1.bf16.xpose.msra.mxu0 0
        %1543 = vmatprep.subr.bf16.mxu0 0
        %1544 = vmatpush1.bf16.xpose.msra.mxu0 0
        %1545 = vmatprep.subr.bf16.mxu0 0
        %1546 = vmatpush1.bf16.xpose.msra.mxu0 0
        %1547 = vmatprep.subr.bf16.mxu0 0
        %1548 = vmatpush1.bf16.xpose.msra.mxu0 0
        %1549 = vmatprep.subr.bf16.mxu0 0
        %1550 = vmatpush1.bf16.xpose.msra.mxu0 0
        %1551 = vmatprep.subr.bf16.mxu0 0
        %1552 = vmatpush1.bf16.xpose.msra.mxu0 0
        %1553 = vmatprep.subr.bf16.mxu0 0
        %1554 = vmatpush1.bf16.xpose.msra.mxu0 0
        %1555 = vmatprep.subr.bf16.mxu0 0
        %1556 = vmatpush1.bf16.xpose.msra.mxu0 %v1539
        %1557 = vmatprep.subr.bf16.mxu0 0
        %1558 = vmatpush2.bf16.xpose.msra.mxu0 0
        %1559 = vmatprep.subr.bf16.mxu0 0
        %1560 = vmatpush2.bf16.xpose.msra.mxu0 0
        %1561 = vmatprep.subr.bf16.mxu0 0
        %1562 = vmatpush2.bf16.xpose.msra.mxu0 0
        %1563 = vmatprep.subr.bf16.mxu0 0
        %1564 = vmatpush2.bf16.xpose.msra.mxu0 0
        %1565 = vmatprep.subr.bf16.mxu0 0
        %1566 = vmatpush2.bf16.xpose.msra.mxu0 0
        %1567 = vmatprep.subr.bf16.mxu0 0
        %1568 = vmatpush2.bf16.xpose.msra.mxu0 0
        %1569 = vmatprep.subr.bf16.mxu0 0
        %1570 = vmatpush2.bf16.xpose.msra.mxu0 0
        %1571 = vmatprep.subr.bf16.mxu0 0
        %1572 = vmatpush2.bf16.xpose.msra.mxu0 0
        %1573 = vmatprep.mubr.bf16.mxu0 0
        %1574 = vmatmul.mubr.bf16.gmra.mxu0 %v1536
        %v1575 = vpop.f32.mrf.mxu0
        %v1576 = vadd.f32 0.0, %v1575
        %v1577 = vpop.f32.mrf.mxu0
        %v1578 = vpop.f32.mrf.mxu0
        %v1579 = vpop.f32.mrf.mxu0
        %1580 = vdwg.mxu0
        %v1581 = vsel %vm1308, %v1576, -inf
        %1582 = vmax.xlane.f32.xlu0 %v1581
        %v1583 = vpop.xlane.xlu0 %1582
        %v1584 = vsub.f32 %v1576, %v1583
        %v1585 = vmul.f32 %v1584, 1.442695
        %v1586 = vpow.pop %v1585
        %v1587 = vsel %vm1308, %v1586, 0.0
        %1588 = vadd.xlane.f32.xlu0 %v1587
        %v1589 = vpop.xlane.xlu0 %1588
        %v1590 = vrcp.pop %v1589
        %v1591 = vmul.f32 %v1586, %v1590
        %v1592 = vpack.c.bf16 %v1591, %v1591
        %1593 = vrot.lane.b32.xlu0 %v1482, 112
        %v1594 = vpop.permute.xlu0 %1593
        %v1596 = vsel %vm1308, %v1592, 0
        %v1599 = vsel %vm1370, %v1594, 0
        %1601 = vmatprep.subr.bf16.mxu0 0
        %1602 = vmatpush1.bf16.msra.mxu0 0
        %1603 = vmatprep.subr.bf16.mxu0 0
        %1604 = vmatpush1.bf16.msra.mxu0 0
        %1605 = vmatprep.subr.bf16.mxu0 0
        %1606 = vmatpush1.bf16.msra.mxu0 0
        %1607 = vmatprep.subr.bf16.mxu0 0
        %1608 = vmatpush1.bf16.msra.mxu0 0
        %1609 = vmatprep.subr.bf16.mxu0 0
        %1610 = vmatpush1.bf16.msra.mxu0 0
        %1611 = vmatprep.subr.bf16.mxu0 0
        %1612 = vmatpush1.bf16.msra.mxu0 0
        %1613 = vmatprep.subr.bf16.mxu0 0
        %1614 = vmatpush1.bf16.msra.mxu0 0
        %1615 = vmatprep.subr.bf16.mxu0 0
        %1616 = vmatpush1.bf16.msra.mxu0 %v1599
        %1617 = vmatprep.subr.bf16.mxu0 0
        %1618 = vmatpush2.bf16.msra.mxu0 0
        %1619 = vmatprep.subr.bf16.mxu0 0
        %1620 = vmatpush2.bf16.msra.mxu0 0
        %1621 = vmatprep.subr.bf16.mxu0 0
        %1622 = vmatpush2.bf16.msra.mxu0 0
        %1623 = vmatprep.subr.bf16.mxu0 0
        %1624 = vmatpush2.bf16.msra.mxu0 0
        %1625 = vmatprep.subr.bf16.mxu0 0
        %1626 = vmatpush2.bf16.msra.mxu0 0
        %1627 = vmatprep.subr.bf16.mxu0 0
        %1628 = vmatpush2.bf16.msra.mxu0 0
        %1629 = vmatprep.subr.bf16.mxu0 0
        %1630 = vmatpush2.bf16.msra.mxu0 0
        %1631 = vmatprep.subr.bf16.mxu0 0
        %1632 = vmatpush2.bf16.msra.mxu0 0
        %1633 = vmatprep.mubr.bf16.mxu0 0
        %1634 = vmatmul.mubr.bf16.gmra.mxu0 %v1596
        %v1635 = vpop.f32.mrf.mxu0
        %v1636 = vadd.f32 0.0, %v1635
        %v1637 = vpop.f32.mrf.mxu0
        %v1638 = vpop.f32.mrf.mxu0
        %v1639 = vpop.f32.mrf.mxu0
        %1640 = vdwg.mxu0
        %1641 = vrot.lane.b32.xlu0 %v1307, 104
        %v1642 = vpop.permute.xlu0 %1641
        %1643 = vrot.lane.b32.xlu0 %v1419, 104
        %v1644 = vpop.permute.xlu0 %1643
        %v1646 = vsel %vm1308, %v1642, 0
        %v1649 = vsel %vm1308, %v1644, 0
        %1651 = vmatprep.subr.bf16.mxu0 0
        %1652 = vmatpush1.bf16.xpose.msra.mxu0 0
        %1653 = vmatprep.subr.bf16.mxu0 0
        %1654 = vmatpush1.bf16.xpose.msra.mxu0 0
        %1655 = vmatprep.subr.bf16.mxu0 0
        %1656 = vmatpush1.bf16.xpose.msra.mxu0 0
        %1657 = vmatprep.subr.bf16.mxu0 0
        %1658 = vmatpush1.bf16.xpose.msra.mxu0 0
        %1659 = vmatprep.subr.bf16.mxu0 0
        %1660 = vmatpush1.bf16.xpose.msra.mxu0 0
        %1661 = vmatprep.subr.bf16.mxu0 0
        %1662 = vmatpush1.bf16.xpose.msra.mxu0 0
        %1663 = vmatprep.subr.bf16.mxu0 0
        %1664 = vmatpush1.bf16.xpose.msra.mxu0 0
        %1665 = vmatprep.subr.bf16.mxu0 0
        %1666 = vmatpush1.bf16.xpose.msra.mxu0 %v1649
        %1667 = vmatprep.subr.bf16.mxu0 0
        %1668 = vmatpush2.bf16.xpose.msra.mxu0 0
        %1669 = vmatprep.subr.bf16.mxu0 0
        %1670 = vmatpush2.bf16.xpose.msra.mxu0 0
        %1671 = vmatprep.subr.bf16.mxu0 0
        %1672 = vmatpush2.bf16.xpose.msra.mxu0 0
        %1673 = vmatprep.subr.bf16.mxu0 0
        %1674 = vmatpush2.bf16.xpose.msra.mxu0 0
        %1675 = vmatprep.subr.bf16.mxu0 0
        %1676 = vmatpush2.bf16.xpose.msra.mxu0 0
        %1677 = vmatprep.subr.bf16.mxu0 0
        %1678 = vmatpush2.bf16.xpose.msra.mxu0 0
        %1679 = vmatprep.subr.bf16.mxu0 0
        %1680 = vmatpush2.bf16.xpose.msra.mxu0 0
        %1681 = vmatprep.subr.bf16.mxu0 0
        %1682 = vmatpush2.bf16.xpose.msra.mxu0 0
        %1683 = vmatprep.mubr.bf16.mxu0 0
        %1684 = vmatmul.mubr.bf16.gmra.mxu0 %v1646
        %v1685 = vpop.f32.mrf.mxu0
        %v1686 = vadd.f32 0.0, %v1685
        %v1687 = vpop.f32.mrf.mxu0
        %v1688 = vpop.f32.mrf.mxu0
        %v1689 = vpop.f32.mrf.mxu0
        %1690 = vdwg.mxu0
        %v1691 = vsel %vm1308, %v1686, -inf
        %1692 = vmax.xlane.f32.xlu0 %v1691
        %v1693 = vpop.xlane.xlu0 %1692
        %v1694 = vsub.f32 %v1686, %v1693
        %v1695 = vmul.f32 %v1694, 1.442695
        %v1696 = vpow.pop %v1695
        %v1697 = vsel %vm1308, %v1696, 0.0
        %1698 = vadd.xlane.f32.xlu0 %v1697
        %v1699 = vpop.xlane.xlu0 %1698
        %v1700 = vrcp.pop %v1699
        %v1701 = vmul.f32 %v1696, %v1700
        %v1702 = vpack.c.bf16 %v1701, %v1701
        %1703 = vrot.lane.b32.xlu0 %v1482, 104
        %v1704 = vpop.permute.xlu0 %1703
        %v1706 = vsel %vm1308, %v1702, 0
        %v1709 = vsel %vm1370, %v1704, 0
        %1711 = vmatprep.subr.bf16.mxu0 0
        %1712 = vmatpush1.bf16.msra.mxu0 0
        %1713 = vmatprep.subr.bf16.mxu0 0
        %1714 = vmatpush1.bf16.msra.mxu0 0
        %1715 = vmatprep.subr.bf16.mxu0 0
        %1716 = vmatpush1.bf16.msra.mxu0 0
        %1717 = vmatprep.subr.bf16.mxu0 0
        %1718 = vmatpush1.bf16.msra.mxu0 0
        %1719 = vmatprep.subr.bf16.mxu0 0
        %1720 = vmatpush1.bf16.msra.mxu0 0
        %1721 = vmatprep.subr.bf16.mxu0 0
        %1722 = vmatpush1.bf16.msra.mxu0 0
        %1723 = vmatprep.subr.bf16.mxu0 0
        %1724 = vmatpush1.bf16.msra.mxu0 0
        %1725 = vmatprep.subr.bf16.mxu0 0
        %1726 = vmatpush1.bf16.msra.mxu0 %v1709
        %1727 = vmatprep.subr.bf16.mxu0 0
        %1728 = vmatpush2.bf16.msra.mxu0 0
        %1729 = vmatprep.subr.bf16.mxu0 0
        %1730 = vmatpush2.bf16.msra.mxu0 0
        %1731 = vmatprep.subr.bf16.mxu0 0
        %1732 = vmatpush2.bf16.msra.mxu0 0
        %1733 = vmatprep.subr.bf16.mxu0 0
        %1734 = vmatpush2.bf16.msra.mxu0 0
        %1735 = vmatprep.subr.bf16.mxu0 0
        %1736 = vmatpush2.bf16.msra.mxu0 0
        %1737 = vmatprep.subr.bf16.mxu0 0
        %1738 = vmatpush2.bf16.msra.mxu0 0
        %1739 = vmatprep.subr.bf16.mxu0 0
        %1740 = vmatpush2.bf16.msra.mxu0 0
        %1741 = vmatprep.subr.bf16.mxu0 0
        %1742 = vmatpush2.bf16.msra.mxu0 0
        %1743 = vmatprep.mubr.bf16.mxu0 0
        %1744 = vmatmul.mubr.bf16.gmra.mxu0 %v1706
        %v1745 = vpop.f32.mrf.mxu0
        %v1746 = vadd.f32 0.0, %v1745
        %v1747 = vpop.f32.mrf.mxu0
        %v1748 = vpop.f32.mrf.mxu0
        %v1749 = vpop.f32.mrf.mxu0
        %1750 = vdwg.mxu0
        %1752 = vrot.lane.b32.xlu0 %v1526, 8
        %v1753 = vpop.permute.xlu0 %1752
        %1756 = vrot.lane.b32.xlu0 %v1636, 16
        %v1757 = vpop.permute.xlu0 %1756
        %1760 = vrot.lane.b32.xlu0 %v1746, 24
        %v1761 = vpop.permute.xlu0 %1760
        %v1763 = vsel %vm1308, %v1409, %v1753
        %vm1764 = vcmask 130048
        %v1765 = vsel %vm1764, %v1763, %v1757
        %vm1766 = vcmask 195584
        %v1767 = vsel %vm1766, %v1765, %v1761
        %v1768 = vpack.c.bf16 %v1767, %v1767
        %v1773 = vunpack.c.l.b16 %v1246
        %v1774 = vunpack.c.l.b16 %v1247
        %v1775 = vunpack.c.l.b16 %v1248
        %v1776 = vunpack.c.l.b16 %v1249
        %v1777 = vpack.c.b16 %v1774, %v1773
        %v1778 = vpack.c.b16 %v1776, %v1775
        %v1782 = vsel %vm1203, %v1768, 0
        %1784 = vmatprep.subr.bf16.mxu0 0
        %1785 = vmatpush1.bf16.msra.mxu0 0
        %1786 = vmatprep.subr.bf16.mxu0 0
        %1787 = vmatpush1.bf16.msra.mxu0 0
        %1788 = vmatprep.subr.bf16.mxu0 0
        %1789 = vmatpush1.bf16.msra.mxu0 0
        %1790 = vmatprep.subr.bf16.mxu0 0
        %1791 = vmatpush1.bf16.msra.mxu0 0
        %1792 = vmatprep.subr.bf16.mxu0 0
        %1793 = vmatpush1.bf16.msra.mxu0 0
        %1794 = vmatprep.subr.bf16.mxu0 0
        %1795 = vmatpush1.bf16.msra.mxu0 0
        %1796 = vmatprep.subr.bf16.mxu0 0
        %1797 = vmatpush1.bf16.msra.mxu0 %v1778
        %1798 = vmatprep.subr.bf16.mxu0 0
        %1799 = vmatpush1.bf16.msra.mxu0 %v1777
        %1800 = vmatprep.subr.bf16.mxu0 0
        %1801 = vmatpush2.bf16.msra.mxu0 0
        %1802 = vmatprep.subr.bf16.mxu0 0
        %1803 = vmatpush2.bf16.msra.mxu0 0
        %1804 = vmatprep.subr.bf16.mxu0 0
        %1805 = vmatpush2.bf16.msra.mxu0 0
        %1806 = vmatprep.subr.bf16.mxu0 0
        %1807 = vmatpush2.bf16.msra.mxu0 0
        %1808 = vmatprep.subr.bf16.mxu0 0
        %1809 = vmatpush2.bf16.msra.mxu0 0
        %1810 = vmatprep.subr.bf16.mxu0 0
        %1811 = vmatpush2.bf16.msra.mxu0 0
        %1812 = vmatprep.subr.bf16.mxu0 0
        %1813 = vmatpush2.bf16.msra.mxu0 0
        %1814 = vmatprep.subr.bf16.mxu0 0
        %1815 = vmatpush2.bf16.msra.mxu0 0
        %1816 = vmatprep.mubr.bf16.mxu0 0
        %1817 = vmatmul.mubr.bf16.gmra.mxu0 %v1782
        %v1818 = vpop.f32.mrf.mxu0
        %v1819 = vadd.f32 0.0, %v1818
        %v1820 = vpop.f32.mrf.mxu0
        %v1821 = vpop.f32.mrf.mxu0
        %v1822 = vpop.f32.mrf.mxu0
        %1823 = vdwg.mxu0
        %v1824 = vadd.f32 %v1200, %v1819
        %v1825 = vld [vmem:[#allocation14] sm:$0x1]
        %v1826 = vld [vmem:[#allocation15] sm:$0x1]
        %v1827 = vsel %vm1203, %v1824, 0.0
        %1828 = vadd.xlane.f32.xlu0 %v1827
        %v1829 = vpop.xlane.xlu0 %1828
        %v1830 = vmul.f32 %v1829, %v1207
        %v1831 = vsub.f32 %v1824, %v1830
        %v1832 = vmul.f32 %v1831, %v1831
        %v1833 = vsel %vm1203, %v1832, 0.0
        %1834 = vadd.xlane.f32.xlu0 %v1833
        %v1835 = vpop.xlane.xlu0 %1834
        %v1836 = vmul.f32 %v1835, 0.032258064
        %v1837 = vrsqrt.pop %v1836
        %v1838 = vmul.f32 %v1836, %v1837
        %vm1839 = vcmp.eq.f32.partialorder %v1836, inf
        %v1840 = vsel %vm1839, %v1836, %v1838
        %vm1841 = vcmp.eq.f32.partialorder %v1836, 0.0
        %v1842 = vand.u32 %v1836, 2147483648
        %v1843 = vsel %vm1841, %v1842, %v1840
        %v1844 = vadd.f32 %v1843, 1e-06
        %v1845 = vrcp.pop %v1844
        %v1846 = vmul.f32 1.0, %v1845
        %v1847 = vmul.f32 %v1831, %v1846
        %v1849 = vlaneseq
        %v1850 = vshrl.u32 %v1849, 7
        %v1851 = vsub.s32 0, %v1850
        %v1852 = vrot.slane %v1825, %v1851
        %v1854 = vmul.f32 %v1852, %v1847
        %v1856 = vlaneseq
        %v1857 = vshrl.u32 %v1856, 7
        %v1858 = vsub.s32 0, %v1857
        %v1859 = vrot.slane %v1826, %v1858
        %v1861 = vadd.f32 %v1854, %v1859
        %v1862 = vld [vmem:[#allocation4] sm:$0xf]
        %v1863 = vld [vmem:[#allocation5] sm:$0xf]
        %v1864 = vld [vmem:[#allocation17] sm:$0xf]
        %v1865 = vld [vmem:[#allocation17 + $0x4] sm:$0xf]
        %v1866 = vld [vmem:[#allocation17 + $0x8] sm:$0xf]
        %v1867 = vld [vmem:[#allocation17 + $0xc] sm:$0xf]
        %v1868 = vld [vmem:[#allocation21] sm:$0xf]
        %v1869 = vld [vmem:[#allocation21 + $0x4] sm:$0xf]
        %v1870 = vld [vmem:[#allocation21 + $0x8] sm:$0xf]
        %v1871 = vld [vmem:[#allocation21 + $0xc] sm:$0xf]
        %v1872 = vpack.c.bf16 %v1861, %v1861
        %v1877 = vunpack.c.l.b16 %v1864
        %v1878 = vunpack.c.l.b16 %v1865
        %v1879 = vunpack.c.l.b16 %v1866
        %v1880 = vunpack.c.l.b16 %v1867
        %v1881 = vpack.c.b16 %v1878, %v1877
        %v1882 = vpack.c.b16 %v1880, %v1879
        %v1886 = vsel %vm1203, %v1872, 0
        %1888 = vmatprep.subr.bf16.mxu0 0
        %1889 = vmatpush1.bf16.msra.mxu0 0
        %1890 = vmatprep.subr.bf16.mxu0 0
        %1891 = vmatpush1.bf16.msra.mxu0 0
        %1892 = vmatprep.subr.bf16.mxu0 0
        %1893 = vmatpush1.bf16.msra.mxu0 0
        %1894 = vmatprep.subr.bf16.mxu0 0
        %1895 = vmatpush1.bf16.msra.mxu0 0
        %1896 = vmatprep.subr.bf16.mxu0 0
        %1897 = vmatpush1.bf16.msra.mxu0 0
        %1898 = vmatprep.subr.bf16.mxu0 0
        %1899 = vmatpush1.bf16.msra.mxu0 0
        %1900 = vmatprep.subr.bf16.mxu0 0
        %1901 = vmatpush1.bf16.msra.mxu0 %v1882
        %1902 = vmatprep.subr.bf16.mxu0 0
        %1903 = vmatpush1.bf16.msra.mxu0 %v1881
        %1904 = vmatprep.subr.bf16.mxu0 0
        %1905 = vmatpush2.bf16.msra.mxu0 0
        %1906 = vmatprep.subr.bf16.mxu0 0
        %1907 = vmatpush2.bf16.msra.mxu0 0
        %1908 = vmatprep.subr.bf16.mxu0 0
        %1909 = vmatpush2.bf16.msra.mxu0 0
        %1910 = vmatprep.subr.bf16.mxu0 0
        %1911 = vmatpush2.bf16.msra.mxu0 0
        %1912 = vmatprep.subr.bf16.mxu0 0
        %1913 = vmatpush2.bf16.msra.mxu0 0
        %1914 = vmatprep.subr.bf16.mxu0 0
        %1915 = vmatpush2.bf16.msra.mxu0 0
        %1916 = vmatprep.subr.bf16.mxu0 0
        %1917 = vmatpush2.bf16.msra.mxu0 0
        %1918 = vmatprep.subr.bf16.mxu0 0
        %1919 = vmatpush2.bf16.msra.mxu0 0
        %1920 = vmatprep.mubr.bf16.mxu0 0
        %1921 = vmatmul.mubr.bf16.gmra.mxu0 %v1886
        %v1922 = vpop.f32.mrf.mxu0
        %v1923 = vadd.f32 0.0, %v1922
        %v1924 = vpop.f32.mrf.mxu0
        %v1925 = vpop.f32.mrf.mxu0
        %v1926 = vpop.f32.mrf.mxu0
        %1927 = vdwg.mxu0
        %v1928 = vmul.f32 %v1923, 0.35355338
        %v1929 = vpack.c.bf16 %v1928, %v1928
        %v1931 = vsel %vm1308, %v1929, 0
        %v1934 = vsel %vm1308, %v1862, 0
        %1936 = vmatprep.subr.bf16.mxu0 0
        %1937 = vmatpush1.bf16.xpose.msra.mxu0 0
        %1938 = vmatprep.subr.bf16.mxu0 0
        %1939 = vmatpush1.bf16.xpose.msra.mxu0 0
        %1940 = vmatprep.subr.bf16.mxu0 0
        %1941 = vmatpush1.bf16.xpose.msra.mxu0 0
        %1942 = vmatprep.subr.bf16.mxu0 0
        %1943 = vmatpush1.bf16.xpose.msra.mxu0 0
        %1944 = vmatprep.subr.bf16.mxu0 0
        %1945 = vmatpush1.bf16.xpose.msra.mxu0 0
        %1946 = vmatprep.subr.bf16.mxu0 0
        %1947 = vmatpush1.bf16.xpose.msra.mxu0 0
        %1948 = vmatprep.subr.bf16.mxu0 0
        %1949 = vmatpush1.bf16.xpose.msra.mxu0 0
        %1950 = vmatprep.subr.bf16.mxu0 0
        %1951 = vmatpush1.bf16.xpose.msra.mxu0 %v1934
        %1952 = vmatprep.subr.bf16.mxu0 0
        %1953 = vmatpush2.bf16.xpose.msra.mxu0 0
        %1954 = vmatprep.subr.bf16.mxu0 0
        %1955 = vmatpush2.bf16.xpose.msra.mxu0 0
        %1956 = vmatprep.subr.bf16.mxu0 0
        %1957 = vmatpush2.bf16.xpose.msra.mxu0 0
        %1958 = vmatprep.subr.bf16.mxu0 0
        %1959 = vmatpush2.bf16.xpose.msra.mxu0 0
        %1960 = vmatprep.subr.bf16.mxu0 0
        %1961 = vmatpush2.bf16.xpose.msra.mxu0 0
        %1962 = vmatprep.subr.bf16.mxu0 0
        %1963 = vmatpush2.bf16.xpose.msra.mxu0 0
        %1964 = vmatprep.subr.bf16.mxu0 0
        %1965 = vmatpush2.bf16.xpose.msra.mxu0 0
        %1966 = vmatprep.subr.bf16.mxu0 0
        %1967 = vmatpush2.bf16.xpose.msra.mxu0 0
        %1968 = vmatprep.mubr.bf16.mxu0 0
        %1969 = vmatmul.mubr.bf16.gmra.mxu0 %v1931
        %v1970 = vpop.f32.mrf.mxu0
        %v1971 = vadd.f32 0.0, %v1970
        %v1972 = vpop.f32.mrf.mxu0
        %v1973 = vpop.f32.mrf.mxu0
        %v1974 = vpop.f32.mrf.mxu0
        %1975 = vdwg.mxu0
        %v1976 = vsel %vm1308, %v1971, -inf
        %1977 = vmax.xlane.f32.xlu0 %v1976
        %v1978 = vpop.xlane.xlu0 %1977
        %v1979 = vsub.f32 %v1971, %v1978
        %v1980 = vmul.f32 %v1979, 1.442695
        %v1981 = vpow.pop %v1980
        %v1982 = vsel %vm1308, %v1981, 0.0
        %1983 = vadd.xlane.f32.xlu0 %v1982
        %v1984 = vpop.xlane.xlu0 %1983
        %v1985 = vrcp.pop %v1984
        %v1986 = vmul.f32 %v1981, %v1985
        %v1987 = vpack.c.bf16 %v1986, %v1986
        %v1989 = vsel %vm1308, %v1987, 0
        %v1992 = vsel %vm1370, %v1863, 0
        %1994 = vmatprep.subr.bf16.mxu0 0
        %1995 = vmatpush1.bf16.msra.mxu0 0
        %1996 = vmatprep.subr.bf16.mxu0 0
        %1997 = vmatpush1.bf16.msra.mxu0 0
        %1998 = vmatprep.subr.bf16.mxu0 0
        %1999 = vmatpush1.bf16.msra.mxu0 0
        %2000 = vmatprep.subr.bf16.mxu0 0
        %2001 = vmatpush1.bf16.msra.mxu0 0
        %2002 = vmatprep.subr.bf16.mxu0 0
        %2003 = vmatpush1.bf16.msra.mxu0 0
        %2004 = vmatprep.subr.bf16.mxu0 0
        %2005 = vmatpush1.bf16.msra.mxu0 0
        %2006 = vmatprep.subr.bf16.mxu0 0
        %2007 = vmatpush1.bf16.msra.mxu0 0
        %2008 = vmatprep.subr.bf16.mxu0 0
        %2009 = vmatpush1.bf16.msra.mxu0 %v1992
        %2010 = vmatprep.subr.bf16.mxu0 0
        %2011 = vmatpush2.bf16.msra.mxu0 0
        %2012 = vmatprep.subr.bf16.mxu0 0
        %2013 = vmatpush2.bf16.msra.mxu0 0
        %2014 = vmatprep.subr.bf16.mxu0 0
        %2015 = vmatpush2.bf16.msra.mxu0 0
        %2016 = vmatprep.subr.bf16.mxu0 0
        %2017 = vmatpush2.bf16.msra.mxu0 0
        %2018 = vmatprep.subr.bf16.mxu0 0
        %2019 = vmatpush2.bf16.msra.mxu0 0
        %2020 = vmatprep.subr.bf16.mxu0 0
        %2021 = vmatpush2.bf16.msra.mxu0 0
        %2022 = vmatprep.subr.bf16.mxu0 0
        %2023 = vmatpush2.bf16.msra.mxu0 0
        %2024 = vmatprep.subr.bf16.mxu0 0
        %2025 = vmatpush2.bf16.msra.mxu0 0
        %2026 = vmatprep.mubr.bf16.mxu0 0
        %2027 = vmatmul.mubr.bf16.gmra.mxu0 %v1989
        %v2028 = vpop.f32.mrf.mxu0
        %v2029 = vadd.f32 0.0, %v2028
        %v2030 = vpop.f32.mrf.mxu0
        %v2031 = vpop.f32.mrf.mxu0
        %v2032 = vpop.f32.mrf.mxu0
        %2033 = vdwg.mxu0
        %2035 = vrot.lane.b32.xlu0 %v1929, 120
        %v2036 = vpop.permute.xlu0 %2035
        %v2038 = vunpack.c.l.b16 %v1862
        %v2039 = vpack.c.b16 %v2038, %v2038
        %2040 = vrot.lane.b32.xlu0 %v2039, 120
        %v2041 = vpop.permute.xlu0 %2040
        %v2043 = vsel %vm1308, %v2036, 0
        %v2046 = vsel %vm1308, %v2041, 0
        %2048 = vmatprep.subr.bf16.mxu0 0
        %2049 = vmatpush1.bf16.xpose.msra.mxu0 0
        %2050 = vmatprep.subr.bf16.mxu0 0
        %2051 = vmatpush1.bf16.xpose.msra.mxu0 0
        %2052 = vmatprep.subr.bf16.mxu0 0
        %2053 = vmatpush1.bf16.xpose.msra.mxu0 0
        %2054 = vmatprep.subr.bf16.mxu0 0
        %2055 = vmatpush1.bf16.xpose.msra.mxu0 0
        %2056 = vmatprep.subr.bf16.mxu0 0
        %2057 = vmatpush1.bf16.xpose.msra.mxu0 0
        %2058 = vmatprep.subr.bf16.mxu0 0
        %2059 = vmatpush1.bf16.xpose.msra.mxu0 0
        %2060 = vmatprep.subr.bf16.mxu0 0
        %2061 = vmatpush1.bf16.xpose.msra.mxu0 0
        %2062 = vmatprep.subr.bf16.mxu0 0
        %2063 = vmatpush1.bf16.xpose.msra.mxu0 %v2046
        %2064 = vmatprep.subr.bf16.mxu0 0
        %2065 = vmatpush2.bf16.xpose.msra.mxu0 0
        %2066 = vmatprep.subr.bf16.mxu0 0
        %2067 = vmatpush2.bf16.xpose.msra.mxu0 0
        %2068 = vmatprep.subr.bf16.mxu0 0
        %2069 = vmatpush2.bf16.xpose.msra.mxu0 0
        %2070 = vmatprep.subr.bf16.mxu0 0
        %2071 = vmatpush2.bf16.xpose.msra.mxu0 0
        %2072 = vmatprep.subr.bf16.mxu0 0
        %2073 = vmatpush2.bf16.xpose.msra.mxu0 0
        %2074 = vmatprep.subr.bf16.mxu0 0
        %2075 = vmatpush2.bf16.xpose.msra.mxu0 0
        %2076 = vmatprep.subr.bf16.mxu0 0
        %2077 = vmatpush2.bf16.xpose.msra.mxu0 0
        %2078 = vmatprep.subr.bf16.mxu0 0
        %2079 = vmatpush2.bf16.xpose.msra.mxu0 0
        %2080 = vmatprep.mubr.bf16.mxu0 0
        %2081 = vmatmul.mubr.bf16.gmra.mxu0 %v2043
        %v2082 = vpop.f32.mrf.mxu0
        %v2083 = vadd.f32 0.0, %v2082
        %v2084 = vpop.f32.mrf.mxu0
        %v2085 = vpop.f32.mrf.mxu0
        %v2086 = vpop.f32.mrf.mxu0
        %2087 = vdwg.mxu0
        %v2088 = vsel %vm1308, %v2083, -inf
        %2089 = vmax.xlane.f32.xlu0 %v2088
        %v2090 = vpop.xlane.xlu0 %2089
        %v2091 = vsub.f32 %v2083, %v2090
        %v2092 = vmul.f32 %v2091, 1.442695
        %v2093 = vpow.pop %v2092
        %v2094 = vsel %vm1308, %v2093, 0.0
        %2095 = vadd.xlane.f32.xlu0 %v2094
        %v2096 = vpop.xlane.xlu0 %2095
        %v2097 = vrcp.pop %v2096
        %v2098 = vmul.f32 %v2093, %v2097
        %v2099 = vpack.c.bf16 %v2098, %v2098
        %v2101 = vunpack.c.l.b16 %v1863
        %v2102 = vpack.c.b16 %v2101, %v2101
        %2103 = vrot.lane.b32.xlu0 %v2102, 120
        %v2104 = vpop.permute.xlu0 %2103
        %v2106 = vsel %vm1308, %v2099, 0
        %v2109 = vsel %vm1370, %v2104, 0
        %2111 = vmatprep.subr.bf16.mxu0 0
        %2112 = vmatpush1.bf16.msra.mxu0 0
        %2113 = vmatprep.subr.bf16.mxu0 0
        %2114 = vmatpush1.bf16.msra.mxu0 0
        %2115 = vmatprep.subr.bf16.mxu0 0
        %2116 = vmatpush1.bf16.msra.mxu0 0
        %2117 = vmatprep.subr.bf16.mxu0 0
        %2118 = vmatpush1.bf16.msra.mxu0 0
        %2119 = vmatprep.subr.bf16.mxu0 0
        %2120 = vmatpush1.bf16.msra.mxu0 0
        %2121 = vmatprep.subr.bf16.mxu0 0
        %2122 = vmatpush1.bf16.msra.mxu0 0
        %2123 = vmatprep.subr.bf16.mxu0 0
        %2124 = vmatpush1.bf16.msra.mxu0 0
        %2125 = vmatprep.subr.bf16.mxu0 0
        %2126 = vmatpush1.bf16.msra.mxu0 %v2109
        %2127 = vmatprep.subr.bf16.mxu0 0
        %2128 = vmatpush2.bf16.msra.mxu0 0
        %2129 = vmatprep.subr.bf16.mxu0 0
        %2130 = vmatpush2.bf16.msra.mxu0 0
        %2131 = vmatprep.subr.bf16.mxu0 0
        %2132 = vmatpush2.bf16.msra.mxu0 0
        %2133 = vmatprep.subr.bf16.mxu0 0
        %2134 = vmatpush2.bf16.msra.mxu0 0
        %2135 = vmatprep.subr.bf16.mxu0 0
        %2136 = vmatpush2.bf16.msra.mxu0 0
        %2137 = vmatprep.subr.bf16.mxu0 0
        %2138 = vmatpush2.bf16.msra.mxu0 0
        %2139 = vmatprep.subr.bf16.mxu0 0
        %2140 = vmatpush2.bf16.msra.mxu0 0
        %2141 = vmatprep.subr.bf16.mxu0 0
        %2142 = vmatpush2.bf16.msra.mxu0 0
        %2143 = vmatprep.mubr.bf16.mxu0 0
        %2144 = vmatmul.mubr.bf16.gmra.mxu0 %v2106
        %v2145 = vpop.f32.mrf.mxu0
        %v2146 = vadd.f32 0.0, %v2145
        %v2147 = vpop.f32.mrf.mxu0
        %v2148 = vpop.f32.mrf.mxu0
        %v2149 = vpop.f32.mrf.mxu0
        %2150 = vdwg.mxu0
        %2151 = vrot.lane.b32.xlu0 %v1929, 112
        %v2152 = vpop.permute.xlu0 %2151
        %2153 = vrot.lane.b32.xlu0 %v2039, 112
        %v2154 = vpop.permute.xlu0 %2153
        %v2156 = vsel %vm1308, %v2152, 0
        %v2159 = vsel %vm1308, %v2154, 0
        %2161 = vmatprep.subr.bf16.mxu0 0
        %2162 = vmatpush1.bf16.xpose.msra.mxu0 0
        %2163 = vmatprep.subr.bf16.mxu0 0
        %2164 = vmatpush1.bf16.xpose.msra.mxu0 0
        %2165 = vmatprep.subr.bf16.mxu0 0
        %2166 = vmatpush1.bf16.xpose.msra.mxu0 0
        %2167 = vmatprep.subr.bf16.mxu0 0
        %2168 = vmatpush1.bf16.xpose.msra.mxu0 0
        %2169 = vmatprep.subr.bf16.mxu0 0
        %2170 = vmatpush1.bf16.xpose.msra.mxu0 0
        %2171 = vmatprep.subr.bf16.mxu0 0
        %2172 = vmatpush1.bf16.xpose.msra.mxu0 0
        %2173 = vmatprep.subr.bf16.mxu0 0
        %2174 = vmatpush1.bf16.xpose.msra.mxu0 0
        %2175 = vmatprep.subr.bf16.mxu0 0
        %2176 = vmatpush1.bf16.xpose.msra.mxu0 %v2159
        %2177 = vmatprep.subr.bf16.mxu0 0
        %2178 = vmatpush2.bf16.xpose.msra.mxu0 0
        %2179 = vmatprep.subr.bf16.mxu0 0
        %2180 = vmatpush2.bf16.xpose.msra.mxu0 0
        %2181 = vmatprep.subr.bf16.mxu0 0
        %2182 = vmatpush2.bf16.xpose.msra.mxu0 0
        %2183 = vmatprep.subr.bf16.mxu0 0
        %2184 = vmatpush2.bf16.xpose.msra.mxu0 0
        %2185 = vmatprep.subr.bf16.mxu0 0
        %2186 = vmatpush2.bf16.xpose.msra.mxu0 0
        %2187 = vmatprep.subr.bf16.mxu0 0
        %2188 = vmatpush2.bf16.xpose.msra.mxu0 0
        %2189 = vmatprep.subr.bf16.mxu0 0
        %2190 = vmatpush2.bf16.xpose.msra.mxu0 0
        %2191 = vmatprep.subr.bf16.mxu0 0
        %2192 = vmatpush2.bf16.xpose.msra.mxu0 0
        %2193 = vmatprep.mubr.bf16.mxu0 0
        %2194 = vmatmul.mubr.bf16.gmra.mxu0 %v2156
        %v2195 = vpop.f32.mrf.mxu0
        %v2196 = vadd.f32 0.0, %v2195
        %v2197 = vpop.f32.mrf.mxu0
        %v2198 = vpop.f32.mrf.mxu0
        %v2199 = vpop.f32.mrf.mxu0
        %2200 = vdwg.mxu0
        %v2201 = vsel %vm1308, %v2196, -inf
        %2202 = vmax.xlane.f32.xlu0 %v2201
        %v2203 = vpop.xlane.xlu0 %2202
        %v2204 = vsub.f32 %v2196, %v2203
        %v2205 = vmul.f32 %v2204, 1.442695
        %v2206 = vpow.pop %v2205
        %v2207 = vsel %vm1308, %v2206, 0.0
        %2208 = vadd.xlane.f32.xlu0 %v2207
        %v2209 = vpop.xlane.xlu0 %2208
        %v2210 = vrcp.pop %v2209
        %v2211 = vmul.f32 %v2206, %v2210
        %v2212 = vpack.c.bf16 %v2211, %v2211
        %2213 = vrot.lane.b32.xlu0 %v2102, 112
        %v2214 = vpop.permute.xlu0 %2213
        %v2216 = vsel %vm1308, %v2212, 0
        %v2219 = vsel %vm1370, %v2214, 0
        %2221 = vmatprep.subr.bf16.mxu0 0
        %2222 = vmatpush1.bf16.msra.mxu0 0
        %2223 = vmatprep.subr.bf16.mxu0 0
        %2224 = vmatpush1.bf16.msra.mxu0 0
        %2225 = vmatprep.subr.bf16.mxu0 0
        %2226 = vmatpush1.bf16.msra.mxu0 0
        %2227 = vmatprep.subr.bf16.mxu0 0
        %2228 = vmatpush1.bf16.msra.mxu0 0
        %2229 = vmatprep.subr.bf16.mxu0 0
        %2230 = vmatpush1.bf16.msra.mxu0 0
        %2231 = vmatprep.subr.bf16.mxu0 0
        %2232 = vmatpush1.bf16.msra.mxu0 0
        %2233 = vmatprep.subr.bf16.mxu0 0
        %2234 = vmatpush1.bf16.msra.mxu0 0
        %2235 = vmatprep.subr.bf16.mxu0 0
        %2236 = vmatpush1.bf16.msra.mxu0 %v2219
        %2237 = vmatprep.subr.bf16.mxu0 0
        %2238 = vmatpush2.bf16.msra.mxu0 0
        %2239 = vmatprep.subr.bf16.mxu0 0
        %2240 = vmatpush2.bf16.msra.mxu0 0
        %2241 = vmatprep.subr.bf16.mxu0 0
        %2242 = vmatpush2.bf16.msra.mxu0 0
        %2243 = vmatprep.subr.bf16.mxu0 0
        %2244 = vmatpush2.bf16.msra.mxu0 0
        %2245 = vmatprep.subr.bf16.mxu0 0
        %2246 = vmatpush2.bf16.msra.mxu0 0
        %2247 = vmatprep.subr.bf16.mxu0 0
        %2248 = vmatpush2.bf16.msra.mxu0 0
        %2249 = vmatprep.subr.bf16.mxu0 0
        %2250 = vmatpush2.bf16.msra.mxu0 0
        %2251 = vmatprep.subr.bf16.mxu0 0
        %2252 = vmatpush2.bf16.msra.mxu0 0
        %2253 = vmatprep.mubr.bf16.mxu0 0
        %2254 = vmatmul.mubr.bf16.gmra.mxu0 %v2216
        %v2255 = vpop.f32.mrf.mxu0
        %v2256 = vadd.f32 0.0, %v2255
        %v2257 = vpop.f32.mrf.mxu0
        %v2258 = vpop.f32.mrf.mxu0
        %v2259 = vpop.f32.mrf.mxu0
        %2260 = vdwg.mxu0
        %2261 = vrot.lane.b32.xlu0 %v1929, 104
        %v2262 = vpop.permute.xlu0 %2261
        %2263 = vrot.lane.b32.xlu0 %v2039, 104
        %v2264 = vpop.permute.xlu0 %2263
        %v2266 = vsel %vm1308, %v2262, 0
        %v2269 = vsel %vm1308, %v2264, 0
        %2271 = vmatprep.subr.bf16.mxu0 0
        %2272 = vmatpush1.bf16.xpose.msra.mxu0 0
        %2273 = vmatprep.subr.bf16.mxu0 0
        %2274 = vmatpush1.bf16.xpose.msra.mxu0 0
        %2275 = vmatprep.subr.bf16.mxu0 0
        %2276 = vmatpush1.bf16.xpose.msra.mxu0 0
        %2277 = vmatprep.subr.bf16.mxu0 0
        %2278 = vmatpush1.bf16.xpose.msra.mxu0 0
        %2279 = vmatprep.subr.bf16.mxu0 0
        %2280 = vmatpush1.bf16.xpose.msra.mxu0 0
        %2281 = vmatprep.subr.bf16.mxu0 0
        %2282 = vmatpush1.bf16.xpose.msra.mxu0 0
        %2283 = vmatprep.subr.bf16.mxu0 0
        %2284 = vmatpush1.bf16.xpose.msra.mxu0 0
        %2285 = vmatprep.subr.bf16.mxu0 0
        %2286 = vmatpush1.bf16.xpose.msra.mxu0 %v2269
        %2287 = vmatprep.subr.bf16.mxu0 0
        %2288 = vmatpush2.bf16.xpose.msra.mxu0 0
        %2289 = vmatprep.subr.bf16.mxu0 0
        %2290 = vmatpush2.bf16.xpose.msra.mxu0 0
        %2291 = vmatprep.subr.bf16.mxu0 0
        %2292 = vmatpush2.bf16.xpose.msra.mxu0 0
        %2293 = vmatprep.subr.bf16.mxu0 0
        %2294 = vmatpush2.bf16.xpose.msra.mxu0 0
        %2295 = vmatprep.subr.bf16.mxu0 0
        %2296 = vmatpush2.bf16.xpose.msra.mxu0 0
        %2297 = vmatprep.subr.bf16.mxu0 0
        %2298 = vmatpush2.bf16.xpose.msra.mxu0 0
        %2299 = vmatprep.subr.bf16.mxu0 0
        %2300 = vmatpush2.bf16.xpose.msra.mxu0 0
        %2301 = vmatprep.subr.bf16.mxu0 0
        %2302 = vmatpush2.bf16.xpose.msra.mxu0 0
        %2303 = vmatprep.mubr.bf16.mxu0 0
        %2304 = vmatmul.mubr.bf16.gmra.mxu0 %v2266
        %v2305 = vpop.f32.mrf.mxu0
        %v2306 = vadd.f32 0.0, %v2305
        %v2307 = vpop.f32.mrf.mxu0
        %v2308 = vpop.f32.mrf.mxu0
        %v2309 = vpop.f32.mrf.mxu0
        %2310 = vdwg.mxu0
        %v2311 = vsel %vm1308, %v2306, -inf
        %2312 = vmax.xlane.f32.xlu0 %v2311
        %v2313 = vpop.xlane.xlu0 %2312
        %v2314 = vsub.f32 %v2306, %v2313
        %v2315 = vmul.f32 %v2314, 1.442695
        %v2316 = vpow.pop %v2315
        %v2317 = vsel %vm1308, %v2316, 0.0
        %2318 = vadd.xlane.f32.xlu0 %v2317
        %v2319 = vpop.xlane.xlu0 %2318
        %v2320 = vrcp.pop %v2319
        %v2321 = vmul.f32 %v2316, %v2320
        %v2322 = vpack.c.bf16 %v2321, %v2321
        %2323 = vrot.lane.b32.xlu0 %v2102, 104
        %v2324 = vpop.permute.xlu0 %2323
        %v2326 = vsel %vm1308, %v2322, 0
        %v2329 = vsel %vm1370, %v2324, 0
        %2331 = vmatprep.subr.bf16.mxu0 0
        %2332 = vmatpush1.bf16.msra.mxu0 0
        %2333 = vmatprep.subr.bf16.mxu0 0
        %2334 = vmatpush1.bf16.msra.mxu0 0
        %2335 = vmatprep.subr.bf16.mxu0 0
        %2336 = vmatpush1.bf16.msra.mxu0 0
        %2337 = vmatprep.subr.bf16.mxu0 0
        %2338 = vmatpush1.bf16.msra.mxu0 0
        %2339 = vmatprep.subr.bf16.mxu0 0
        %2340 = vmatpush1.bf16.msra.mxu0 0
        %2341 = vmatprep.subr.bf16.mxu0 0
        %2342 = vmatpush1.bf16.msra.mxu0 0
        %2343 = vmatprep.subr.bf16.mxu0 0
        %2344 = vmatpush1.bf16.msra.mxu0 0
        %2345 = vmatprep.subr.bf16.mxu0 0
        %2346 = vmatpush1.bf16.msra.mxu0 %v2329
        %2347 = vmatprep.subr.bf16.mxu0 0
        %2348 = vmatpush2.bf16.msra.mxu0 0
        %2349 = vmatprep.subr.bf16.mxu0 0
        %2350 = vmatpush2.bf16.msra.mxu0 0
        %2351 = vmatprep.subr.bf16.mxu0 0
        %2352 = vmatpush2.bf16.msra.mxu0 0
        %2353 = vmatprep.subr.bf16.mxu0 0
        %2354 = vmatpush2.bf16.msra.mxu0 0
        %2355 = vmatprep.subr.bf16.mxu0 0
        %2356 = vmatpush2.bf16.msra.mxu0 0
        %2357 = vmatprep.subr.bf16.mxu0 0
        %2358 = vmatpush2.bf16.msra.mxu0 0
        %2359 = vmatprep.subr.bf16.mxu0 0
        %2360 = vmatpush2.bf16.msra.mxu0 0
        %2361 = vmatprep.subr.bf16.mxu0 0
        %2362 = vmatpush2.bf16.msra.mxu0 0
        %2363 = vmatprep.mubr.bf16.mxu0 0
        %2364 = vmatmul.mubr.bf16.gmra.mxu0 %v2326
        %v2365 = vpop.f32.mrf.mxu0
        %v2366 = vadd.f32 0.0, %v2365
        %v2367 = vpop.f32.mrf.mxu0
        %v2368 = vpop.f32.mrf.mxu0
        %v2369 = vpop.f32.mrf.mxu0
        %2370 = vdwg.mxu0
        %2372 = vrot.lane.b32.xlu0 %v2146, 8
        %v2373 = vpop.permute.xlu0 %2372
        %2376 = vrot.lane.b32.xlu0 %v2256, 16
        %v2377 = vpop.permute.xlu0 %2376
        %2380 = vrot.lane.b32.xlu0 %v2366, 24
        %v2381 = vpop.permute.xlu0 %2380
        %v2383 = vsel %vm1308, %v2029, %v2373
        %v2384 = vsel %vm1764, %v2383, %v2377
        %v2385 = vsel %vm1766, %v2384, %v2381
        %v2386 = vpack.c.bf16 %v2385, %v2385
        %v2391 = vunpack.c.l.b16 %v1868
        %v2392 = vunpack.c.l.b16 %v1869
        %v2393 = vunpack.c.l.b16 %v1870
        %v2394 = vunpack.c.l.b16 %v1871
        %v2395 = vpack.c.b16 %v2392, %v2391
        %v2396 = vpack.c.b16 %v2394, %v2393
        %v2400 = vsel %vm1203, %v2386, 0
        %2402 = vmatprep.subr.bf16.mxu0 0
        %2403 = vmatpush1.bf16.msra.mxu0 0
        %2404 = vmatprep.subr.bf16.mxu0 0
        %2405 = vmatpush1.bf16.msra.mxu0 0
        %2406 = vmatprep.subr.bf16.mxu0 0
        %2407 = vmatpush1.bf16.msra.mxu0 0
        %2408 = vmatprep.subr.bf16.mxu0 0
        %2409 = vmatpush1.bf16.msra.mxu0 0
        %2410 = vmatprep.subr.bf16.mxu0 0
        %2411 = vmatpush1.bf16.msra.mxu0 0
        %2412 = vmatprep.subr.bf16.mxu0 0
        %2413 = vmatpush1.bf16.msra.mxu0 0
        %2414 = vmatprep.subr.bf16.mxu0 0
        %2415 = vmatpush1.bf16.msra.mxu0 %v2396
        %2416 = vmatprep.subr.bf16.mxu0 0
        %2417 = vmatpush1.bf16.msra.mxu0 %v2395
        %2418 = vmatprep.subr.bf16.mxu0 0
        %2419 = vmatpush2.bf16.msra.mxu0 0
        %2420 = vmatprep.subr.bf16.mxu0 0
        %2421 = vmatpush2.bf16.msra.mxu0 0
        %2422 = vmatprep.subr.bf16.mxu0 0
        %2423 = vmatpush2.bf16.msra.mxu0 0
        %2424 = vmatprep.subr.bf16.mxu0 0
        %2425 = vmatpush2.bf16.msra.mxu0 0
        %2426 = vmatprep.subr.bf16.mxu0 0
        %2427 = vmatpush2.bf16.msra.mxu0 0
        %2428 = vmatprep.subr.bf16.mxu0 0
        %2429 = vmatpush2.bf16.msra.mxu0 0
        %2430 = vmatprep.subr.bf16.mxu0 0
        %2431 = vmatpush2.bf16.msra.mxu0 0
        %2432 = vmatprep.subr.bf16.mxu0 0
        %2433 = vmatpush2.bf16.msra.mxu0 0
        %2434 = vmatprep.mubr.bf16.mxu0 0
        %2435 = vmatmul.mubr.bf16.gmra.mxu0 %v2400
        %v2436 = vpop.f32.mrf.mxu0
        %v2437 = vadd.f32 0.0, %v2436
        %v2438 = vpop.f32.mrf.mxu0
        %v2439 = vpop.f32.mrf.mxu0
        %v2440 = vpop.f32.mrf.mxu0
        %2441 = vdwg.mxu0
        %v2442 = vadd.f32 %v1824, %v2437
        %v2443 = vld [vmem:[#allocation23] sm:$0x1]
        %v2444 = vld [vmem:[#allocation24] sm:$0x1]
        %v2445 = vsel %vm1203, %v2442, 0.0
        %2446 = vadd.xlane.f32.xlu0 %v2445
        %v2447 = vpop.xlane.xlu0 %2446
        %v2448 = vmul.f32 %v2447, %v1207
        %v2449 = vsub.f32 %v2442, %v2448
        %v2450 = vmul.f32 %v2449, %v2449
        %v2451 = vsel %vm1203, %v2450, 0.0
        %2452 = vadd.xlane.f32.xlu0 %v2451
        %v2453 = vpop.xlane.xlu0 %2452
        %v2454 = vmul.f32 %v2453, 0.032258064
        %v2455 = vrsqrt.pop %v2454
        %v2456 = vmul.f32 %v2454, %v2455
        %vm2457 = vcmp.eq.f32.partialorder %v2454, inf
        %v2458 = vsel %vm2457, %v2454, %v2456
        %vm2459 = vcmp.eq.f32.partialorder %v2454, 0.0
        %v2460 = vand.u32 %v2454, 2147483648
        %v2461 = vsel %vm2459, %v2460, %v2458
        %v2462 = vadd.f32 %v2461, 1e-06
        %v2463 = vrcp.pop %v2462
        %v2464 = vmul.f32 1.0, %v2463
        %v2465 = vmul.f32 %v2449, %v2464
        %v2467 = vlaneseq
        %v2468 = vshrl.u32 %v2467, 7
        %v2469 = vsub.s32 0, %v2468
        %v2470 = vrot.slane %v2443, %v2469
        %v2472 = vmul.f32 %v2470, %v2465
        %v2474 = vlaneseq
        %v2475 = vshrl.u32 %v2474, 7
        %v2476 = vsub.s32 0, %v2475
        %v2477 = vrot.slane %v2444, %v2476
        %v2479 = vadd.f32 %v2472, %v2477
        %v2480 = vpack.c.bf16 %v2479, %v2479
        %v2481 = vld [vmem:[#allocation26] sm:$0xf]
        %v2482 = vld [vmem:[#allocation26 + $0x4] sm:$0xf]
        %v2483 = vld [vmem:[#allocation26 + $0x8] sm:$0xf]
        %v2484 = vld [vmem:[#allocation26 + $0xc] sm:$0xf]
        %v2485 = vld [vmem:[#allocation27] sm:$0x1]
        %v2487 = vlaneseq
        %v2488 = vshrl.u32 %v2487, 7
        %v2489 = vsub.s32 0, %v2488
        %v2490 = vrot.slane %v2485, %v2489
        %v2496 = vunpack.c.l.b16 %v2481
        %v2497 = vunpack.c.l.b16 %v2482
        %v2498 = vunpack.c.l.b16 %v2483
        %v2499 = vunpack.c.l.b16 %v2484
        %v2500 = vpack.c.b16 %v2497, %v2496
        %v2501 = vpack.c.b16 %v2499, %v2498
        %v2505 = vsel %vm1203, %v2480, 0
        %2507 = vmatprep.subr.bf16.mxu0 0
        %2508 = vmatpush1.bf16.msra.mxu0 0
        %2509 = vmatprep.subr.bf16.mxu0 0
        %2510 = vmatpush1.bf16.msra.mxu0 0
        %2511 = vmatprep.subr.bf16.mxu0 0
        %2512 = vmatpush1.bf16.msra.mxu0 0
        %2513 = vmatprep.subr.bf16.mxu0 0
        %2514 = vmatpush1.bf16.msra.mxu0 0
        %2515 = vmatprep.subr.bf16.mxu0 0
        %2516 = vmatpush1.bf16.msra.mxu0 0
        %2517 = vmatprep.subr.bf16.mxu0 0
        %2518 = vmatpush1.bf16.msra.mxu0 0
        %2519 = vmatprep.subr.bf16.mxu0 0
        %2520 = vmatpush1.bf16.msra.mxu0 %v2501
        %2521 = vmatprep.subr.bf16.mxu0 0
        %2522 = vmatpush1.bf16.msra.mxu0 %v2500
        %2523 = vmatprep.subr.bf16.mxu0 0
        %2524 = vmatpush2.bf16.msra.mxu0 0
        %2525 = vmatprep.subr.bf16.mxu0 0
        %2526 = vmatpush2.bf16.msra.mxu0 0
        %2527 = vmatprep.subr.bf16.mxu0 0
        %2528 = vmatpush2.bf16.msra.mxu0 0
        %2529 = vmatprep.subr.bf16.mxu0 0
        %2530 = vmatpush2.bf16.msra.mxu0 0
        %2531 = vmatprep.subr.bf16.mxu0 0
        %2532 = vmatpush2.bf16.msra.mxu0 0
        %2533 = vmatprep.subr.bf16.mxu0 0
        %2534 = vmatpush2.bf16.msra.mxu0 0
        %2535 = vmatprep.subr.bf16.mxu0 0
        %2536 = vmatpush2.bf16.msra.mxu0 0
        %2537 = vmatprep.subr.bf16.mxu0 0
        %2538 = vmatpush2.bf16.msra.mxu0 0
        %2539 = vmatprep.mubr.bf16.mxu0 0
        %2540 = vmatmul.mubr.bf16.gmra.mxu0 %v2505
        %v2541 = vpop.f32.mrf.mxu0
        %v2542 = vadd.f32 %v2490, %v2541
        %v2543 = vpop.f32.mrf.mxu0
        %v2544 = vpop.f32.mrf.mxu0
        %v2545 = vpop.f32.mrf.mxu0
        %2546 = vdwg.mxu0
        %v2547 = vmax.f32 %v2542, 0.0
        %v2548 = vpack.c.bf16 %v2547, %v2547
        %v2549 = vld [vmem:[%s19] sm:$0xf]
        %v2550 = vld [vmem:[%s19 + $0x4] sm:$0xf]
        %v2551 = vld [vmem:[%s19 + $0x8] sm:$0xf]
        %v2552 = vld [vmem:[%s19 + $0xc] sm:$0xf]
        %v2553 = vld [vmem:[%s19 + $0x10] sm:$0xf]
        %v2554 = vld [vmem:[%s19 + $0x14] sm:$0xf]
        %v2555 = vld [vmem:[%s19 + $0x18] sm:$0xf]
        %v2556 = vld [vmem:[%s19 + $0x1c] sm:$0xf]
        %v2557 = vld [vmem:[#allocation29] sm:$0x1]
        %v2559 = vlaneseq
        %v2560 = vshrl.u32 %v2559, 7
        %v2561 = vsub.s32 0, %v2560
        %v2562 = vrot.slane %v2557, %v2561
        %v2572 = vunpack.c.l.b16 %v2549
        %v2573 = vunpack.c.l.b16 %v2550
        %v2574 = vunpack.c.l.b16 %v2551
        %v2575 = vunpack.c.l.b16 %v2552
        %v2576 = vunpack.c.l.b16 %v2553
        %v2577 = vunpack.c.l.b16 %v2554
        %v2578 = vunpack.c.l.b16 %v2555
        %v2579 = vunpack.c.l.b16 %v2556
        %v2580 = vpack.c.b16 %v2573, %v2572
        %v2581 = vpack.c.b16 %v2575, %v2574
        %v2582 = vpack.c.b16 %v2577, %v2576
        %v2583 = vpack.c.b16 %v2579, %v2578
        %vm2588 = vcmask 523264
        %v2590 = vsel %vm2588, %v2548, 0
        %2592 = vmatprep.subr.bf16.mxu0 0
        %2593 = vmatpush1.bf16.msra.mxu0 0
        %2594 = vmatprep.subr.bf16.mxu0 0
        %2595 = vmatpush1.bf16.msra.mxu0 0
        %2596 = vmatprep.subr.bf16.mxu0 0
        %2597 = vmatpush1.bf16.msra.mxu0 0
        %2598 = vmatprep.subr.bf16.mxu0 0
        %2599 = vmatpush1.bf16.msra.mxu0 0
        %2600 = vmatprep.subr.bf16.mxu0 0
        %2601 = vmatpush1.bf16.msra.mxu0 %v2583
        %2602 = vmatprep.subr.bf16.mxu0 0
        %2603 = vmatpush1.bf16.msra.mxu0 %v2582
        %2604 = vmatprep.subr.bf16.mxu0 0
        %2605 = vmatpush1.bf16.msra.mxu0 %v2581
        %2606 = vmatprep.subr.bf16.mxu0 0
        %2607 = vmatpush1.bf16.msra.mxu0 %v2580
        %2608 = vmatprep.subr.bf16.mxu0 0
        %2609 = vmatpush2.bf16.msra.mxu0 0
        %2610 = vmatprep.subr.bf16.mxu0 0
        %2611 = vmatpush2.bf16.msra.mxu0 0
        %2612 = vmatprep.subr.bf16.mxu0 0
        %2613 = vmatpush2.bf16.msra.mxu0 0
        %2614 = vmatprep.subr.bf16.mxu0 0
        %2615 = vmatpush2.bf16.msra.mxu0 0
        %2616 = vmatprep.subr.bf16.mxu0 0
        %2617 = vmatpush2.bf16.msra.mxu0 0
        %2618 = vmatprep.subr.bf16.mxu0 0
        %2619 = vmatpush2.bf16.msra.mxu0 0
        %2620 = vmatprep.subr.bf16.mxu0 0
        %2621 = vmatpush2.bf16.msra.mxu0 0
        %2622 = vmatprep.subr.bf16.mxu0 0
        %2623 = vmatpush2.bf16.msra.mxu0 0
        %2624 = vmatprep.mubr.bf16.mxu0 0
        %2625 = vmatmul.mubr.bf16.gmra.mxu0 %v2590
        %v2626 = vpop.f32.mrf.mxu0
        %v2627 = vadd.f32 %v2562, %v2626
        %v2628 = vpop.f32.mrf.mxu0
        %v2629 = vpop.f32.mrf.mxu0
        %v2630 = vpop.f32.mrf.mxu0
        %2631 = vdwg.mxu0
        %v2632 = vadd.f32 %v2442, %v2627
        %2633 = vst.msk [vmem:[%s897] sm:$0xff] %vm1203, %v2632
        %s2634 = sand.u32 %s523, 1
        %s2635 = scalar_lea.sflag [#allocation8], %s2634
        %s2636 = sand.u32 %s523, 1
        %s2637 = smul.addr %s2636, 8
        %s2638 = scalar_lea.vmem [#allocation30], %s2637
        // Predicated region
        $region169: #{decoder_block_forward.1} parent=103 // pred_check
          %p2639 = pneg %p533
        $region170: #{decoder_block_forward.1} parent=103 // pred_check_branch
          %2641 = sbr.rel (%p2639) target = $region172
        $region171: #{decoder_block_forward.1} parent=103 // pred_region
          %s2643 = ssub.s32 128, 128
          %2644 = vsyncadd %s2635, %s2643
          %s2645 = sadd.s32 %s48, %s47
          %s2646 = smul.addr %s2645, 128
          %s2647 = scalar_lea.hbm %s21, %s2646
          %s2649 = sshll.u32 %s2638, 4
          %s2650 = int_to_ptr.vmem [resolvable:$true] %s2649
          %2652 = dma.vmem_to_hbm [thread:$0]  %s2650, 128, %s2647, %s2635
        $region172: #{decoder_block_forward.1} parent=103 // pred_fallthru
          _
      $region104: #{decoder_block_forward.1} parent=5 // pred_fallthru
        _
      %p2653 = scmp.le.s32.totalorder 2, %s38
      // Predicated region
      $region173: #{decoder_block_forward.1} parent=5 // pred_check
        %p2654 = pneg %p2653
      $region174: #{decoder_block_forward.1} parent=5 // pred_check_branch
        %2656 = sbr.rel (%p2654) target = $region176
      $region175: #{decoder_block_forward.1} parent=5 // pred_region
        %s2657 = ssub.s32 %s38, 2
        // Predicated region
        $region177: #{decoder_block_forward.1} parent=175 // pred_check
          %p2658 = pneg %p539
        $region178: #{decoder_block_forward.1} parent=175 // pred_check_branch
          %2660 = sbr.rel (%p2658) target = $region180
        $region179: #{decoder_block_forward.1} parent=175 // pred_region
          %s2661 = sand.u32 %s524, 1
          %s2662 = scalar_lea.sflag [#allocation8], %s2661
          %s2663 = sand.u32 %s524, 1
          %s2664 = smul.addr %s2663, 8
          %s2665 = scalar_lea.vmem [#allocation30], %s2664
          %2666 = dma.done %s2662, 128
        $region180: #{decoder_block_forward.1} parent=175 // pred_fallthru
          _
      $region176: #{decoder_block_forward.1} parent=5 // pred_fallthru
        _
    $region6: #{decoder_block_forward.1} parent=1 // loop_footer
      %s42 = sadd.s32 1, %s38
    $region7: #{decoder_block_forward.1} parent=1 // loop_footer_branch
      %37 = sbr.rel target = $region3
    $region8: #{decoder_block_forward.1} parent=1 // loop_exit
      _
    %2667 = vsyncpa [#allocation7], 1
    %s2668 = scalar_lea.sflag [#allocation7], 1
    %2669 = vsyncpa %s2668, 1
    %2670 = vsyncpa [#allocation10], 1
    %2671 = vsyncpa [#allocation13], 1
    %2672 = vsyncpa [#allocation16], 1
    %2673 = vsyncpa [#allocation19], 1
    %2674 = vsyncpa [#allocation22], 1
    %2675 = vsyncpa [#allocation25], 1
    %2676 = vsyncpa [#allocation28], 1
    %2677 = vsyncpa [#allocation8], 1
    %s2678 = scalar_lea.sflag [#allocation8], 1
    %2679 = vsyncpa %s2678, 1

</llo_original>
